<compile_context>
chip_gen: v7x
topology: tpu7x:2x2x1
jax: 0.10.0
libtpu: 0.0.40
codegen_flags: <defaults>
</compile_context>

<pallas_src>
import jax
import jax.numpy as jnp
from jax.experimental import pallas as pl
from jax.experimental.pallas import tpu as pltpu


def _round_up(x, m):
    return (x + m - 1) // m * m


# --------------------------------------------------------------------------
# Generation-aware sizing helpers.
# --------------------------------------------------------------------------
def _tpu_vmem_capacity_bytes():
    try:
        return int(pltpu.get_tpu_info().vmem_capacity_bytes)
    except Exception:
        return 64 * 1024 * 1024          # conservative (v7x-sized) default


def _vmem_limit_bytes():
    cap = _tpu_vmem_capacity_bytes()
    if cap <= 64 * 1024 * 1024:          # v7x-class: 64 MiB physical VMEM
        return min(48 * 1024 * 1024, cap * 3 // 4)
    return min(96 * 1024 * 1024, cap * 3 // 4)   # v5e/v6e: 128 MiB physical


def _row_tile_target():
    # 256 fills the 256-wide MXU M dim on v6e/v7x; larger tiles are free on
    # 128-MiB-VMEM parts and amortize per-grid-step overhead further.
    return 512 if _tpu_vmem_capacity_bytes() >= 128 * 1024 * 1024 else 256


def _pick_row_tile(b, t):
    """Tile size along the sequence axis (rows of the fused MLP)."""
    target = _row_tile_target()
    if t <= target:
        tt = t                           # whole t axis in one block (always legal)
    else:
        tt = max(16, (target // 16) * 16)   # multiple of 16 (bf16 sublane packing)
    # Megacore gating: only split a would-be single-step grid when both halves
    # still keep the MXU fed (>= 256 rows each); never shrink tiles otherwise.
    if b == 1 and tt == t and t >= 512:
        tt = _round_up(-(-t // 2), 16)
    return tt


# --------------------------------------------------------------------------
# Capability probe: per-BlockSpec pipeline_mode (single-buffered weights).
# --------------------------------------------------------------------------
def _probe_single_buffer_support():
    if not hasattr(pl, "Buffered"):
        return False
    try:
        pl.BlockSpec((8, 128), lambda i: (0, 0), pipeline_mode=pl.Buffered(1))
        return True
    except TypeError:
        return False


_SINGLE_BUFFER_WEIGHTS = _probe_single_buffer_support()


# --------------------------------------------------------------------------
# Kernel body.
# --------------------------------------------------------------------------
def decoder_mlp_kernel(x_ref,
                       w1_ref, b1_ref,
                       w2_ref, b2_ref,
                       w3_ref, b3_ref,
                       w4_ref, b4_ref,
                       o_ref):
    """Fused 4-layer MLP on one (tt, e) row tile + fused channel rearrange.

    x_ref:  (tt, d0) bf16
    wN_ref: bf16 weights, bN_ref: (1, dN) f32 biases
    o_ref:  (ch, tt, e2) f32   -- batch dim squeezed by the BlockSpec
    Matmul inputs are bf16, accumulation f32; bias add / ReLU stay f32.
    """
    h = jnp.dot(x_ref[...], w1_ref[...],
                preferred_element_type=jnp.float32) + b1_ref[...]
    h = jnp.maximum(h, 0.0)
    h = jnp.dot(h.astype(jnp.bfloat16), w2_ref[...],
                preferred_element_type=jnp.float32) + b2_ref[...]
    h = jnp.maximum(h, 0.0)
    h = jnp.dot(h.astype(jnp.bfloat16), w3_ref[...],
                preferred_element_type=jnp.float32) + b3_ref[...]
    h = jnp.maximum(h, 0.0)
    h = jnp.dot(h.astype(jnp.bfloat16), w4_ref[...],
                preferred_element_type=jnp.float32) + b4_ref[...]

    # Fused '(t)(ch e2) -> (ch, t, e2)' rearrange: 16 static lane slices,
    # stored per channel.  In the production config e2 is a multiple of 128,
    # so slices are vreg-aligned and stores are unmasked / lane-dense.
    ch, tt, e2 = o_ref.shape
    out = h.astype(o_ref.dtype)
    for c in range(ch):                      # static unroll, ch == 16
        o_ref[c] = out[:, c * e2:(c + 1) * e2]


# --------------------------------------------------------------------------
# pallas_call builder + wrapper.
# --------------------------------------------------------------------------
def _build_decoder_call(b, t_pad, tt, dims, ch, e2):
    d0, d1, d2, d3, d4 = dims

    def const_spec(shape):
        # Weight / bias blocks never change across the grid.
        idx_map = lambda bi, ti: tuple(0 for _ in shape)
        if _SINGLE_BUFFER_WEIGHTS:
            return pl.BlockSpec(shape, idx_map, pipeline_mode=pl.Buffered(1))
        return pl.BlockSpec(shape, idx_map)

    n_rows = b * t_pad
    flops = 2 * n_rows * (d0 * d1 + d1 * d2 + d2 * d3 + d3 * d4)
    bytes_accessed = (
        n_rows * d0 * 2                                   # x (bf16 in)
        + (d0 * d1 + d1 * d2 + d2 * d3 + d3 * d4) * 2     # weights (bf16)
        + (d1 + d2 + d3 + d4) * 4                         # biases (f32)
        + n_rows * d4 * 4                                 # output (f32)
    )

    return pl.pallas_call(
        decoder_mlp_kernel,
        out_shape=jax.ShapeDtypeStruct((b, ch, t_pad, e2), jnp.float32),
        grid_spec=pltpu.PrefetchScalarGridSpec(
            num_scalar_prefetch=0,
            grid=(b, t_pad // tt),
            in_specs=[
                # x row tile (batch dim squeezed).
                pl.BlockSpec((None, tt, d0), lambda bi, ti: (bi, ti, 0)),
                const_spec((d0, d1)), const_spec((1, d1)),   # layer 1
                const_spec((d1, d2)), const_spec((1, d2)),   # layer 2
                const_spec((d2, d3)), const_spec((1, d3)),   # layer 3
                const_spec((d3, d4)), const_spec((1, d4)),   # layer 4
            ],
            out_specs=pl.BlockSpec((None, ch, tt, e2),
                                   lambda bi, ti: (bi, 0, ti, 0)),
        ),
        compiler_params=pltpu.CompilerParams(
            dimension_semantics=("parallel", "parallel"),
            vmem_limit_bytes=_vmem_limit_bytes(),
        ),
        cost_estimate=pl.CostEstimate(
            flops=flops, transcendentals=0, bytes_accessed=bytes_accessed),
    )


def decoder_mae_forward(x, params):
    """x: (b, t, e) float32.  Returns (b, 16, t * (input_size // 16)) float32."""
    b, t, e = x.shape
    (w1, b1), (w2, b2), (w3, b3), (w4, b4) = params
    d0, d1 = w1.shape
    d2 = w2.shape[1]
    d3 = w3.shape[1]
    d4 = w4.shape[1]
    assert e == d0
    ch = 16
    assert d4 % ch == 0
    e2 = d4 // ch

    tt = _pick_row_tile(b, t)
    t_pad = _round_up(t, tt)

    # bf16 x / weights at the call boundary (halves their HBM traffic and the
    # in-kernel cast work); f32 biases.
    xb = x.astype(jnp.bfloat16)
    if t_pad != t:
        xb = jnp.pad(xb, ((0, 0), (0, t_pad - t), (0, 0)))
    w1b, w2b, w3b, w4b = (w.astype(jnp.bfloat16) for w in (w1, w2, w3, w4))
    b1f, b2f, b3f, b4f = (bb.astype(jnp.float32).reshape(1, -1)
                          for bb in (b1, b2, b3, b4))

    dims = (d0, d1, d2, d3, d4)
    out4 = _build_decoder_call(b, t_pad, tt, dims, ch, e2)(
        xb, w1b, b1f, w2b, b2f, w3b, b3f, w4b, b4f)

    if t_pad != t:
        out4 = out4[:, :, :t, :]
    # Contiguous (free) flatten of the last two dims -> (b, ch, t*e2).
    return out4.reshape(b, ch, t * e2)


# --------------------------------------------------------------------------
# Parameter init + plain-JAX reference.
# --------------------------------------------------------------------------
def init_params(key, dims):
    """Deterministic PyTorch-style uniform init; weights stored (in, out)."""
    params = []
    for i in range(len(dims) - 1):
        fan_in, fan_out = dims[i], dims[i + 1]
        key, kw, kb = jax.random.split(key, 3)
        bound = 1.0 / (fan_in ** 0.5)
        w = jax.random.uniform(kw, (fan_in, fan_out), jnp.float32, -bound, bound)
        bias = jax.random.uniform(kb, (1, fan_out), jnp.float32, -bound, bound)
        params.append((w, bias))
    return params


def reference_forward(x, params):
    """Plain-JAX f32 reference of the PyTorch forward."""
    b, t, e = x.shape
    h = x.reshape(b * t, e)
    n_layers = len(params)
    for i, (w, bias) in enumerate(params):
        h = h @ w + bias
        if i < n_layers - 1:
            h = jnp.maximum(h, 0.0)
    ch = 16
    e2 = h.shape[-1] // ch
    return h.reshape(b, t, ch, e2).transpose(0, 2, 1, 3).reshape(b, ch, t * e2)


if __name__ == "__main__":
    # Small, module-consistent sizes: output_size=128 -> hidden 256/512/1024,
    # input_size = 16 * 64 = 1024 (divisible by ch=16).
    output_size = 128
    input_size = 16 * 64
    layer_dims = (output_size, output_size * 2, output_size * 4,
                  output_size * 8, input_size)

    b, t = 2, 8
    key = jax.random.PRNGKey(0)
    key, kx = jax.random.split(key)
    x = jax.random.normal(kx, (b, t, output_size), jnp.float32)

    params = init_params(jax.random.PRNGKey(1), layer_dims)

    out = jax.block_until_ready(decoder_mae_forward(x, params))
    ref = jax.block_until_ready(reference_forward(x, params))

    assert out.shape == (b, 16, t * (input_size // 16)), out.shape
    # bf16 matmul inputs / bf16 x (f32 accumulation) -> loosened tolerance.
    max_err = float(jnp.max(jnp.abs(out - ref)))
    assert jnp.allclose(out, ref, atol=7.5e-2, rtol=7.5e-2), max_err

    print("KERNEL_OK")
</pallas_src>

<mosaic_0001>
module attributes {stable_mosaic.version = 11 : i64} {
  func.func @decoder_mlp_kernel(%arg0: i32, %arg1: i32, %arg2: memref<1x8x128xbf16, #tpu.memory_space<vmem>>, %arg3: memref<128x256xbf16, #tpu.memory_space<vmem>>, %arg4: memref<1x256xf32, #tpu.memory_space<vmem>>, %arg5: memref<256x512xbf16, #tpu.memory_space<vmem>>, %arg6: memref<1x512xf32, #tpu.memory_space<vmem>>, %arg7: memref<512x1024xbf16, #tpu.memory_space<vmem>>, %arg8: memref<1x1024xf32, #tpu.memory_space<vmem>>, %arg9: memref<1024x1024xbf16, #tpu.memory_space<vmem>>, %arg10: memref<1x1024xf32, #tpu.memory_space<vmem>>, %arg11: memref<1x16x8x64xf32, #tpu.memory_space<vmem>>) attributes {dimension_semantics = [#tpu.dimension_semantics<parallel>, #tpu.dimension_semantics<parallel>], iteration_bounds = array<i64: 2, 1>, scalar_prefetch = 0 : i64, scratch_operands = 0 : i64, tpu.core_type = #tpu.core_type<tc>, window_params = [{transform_indices = @transform_0, window_bounds = array<i64: 1, 8, 128>}, {pipeline_mode = #tpu.pipeline_mode<synchronous>, transform_indices = @transform_1, window_bounds = array<i64: 128, 256>}, {pipeline_mode = #tpu.pipeline_mode<synchronous>, transform_indices = @transform_2, window_bounds = array<i64: 1, 256>}, {pipeline_mode = #tpu.pipeline_mode<synchronous>, transform_indices = @transform_3, window_bounds = array<i64: 256, 512>}, {pipeline_mode = #tpu.pipeline_mode<synchronous>, transform_indices = @transform_4, window_bounds = array<i64: 1, 512>}, {pipeline_mode = #tpu.pipeline_mode<synchronous>, transform_indices = @transform_5, window_bounds = array<i64: 512, 1024>}, {pipeline_mode = #tpu.pipeline_mode<synchronous>, transform_indices = @transform_6, window_bounds = array<i64: 1, 1024>}, {pipeline_mode = #tpu.pipeline_mode<synchronous>, transform_indices = @transform_7, window_bounds = array<i64: 1024, 1024>}, {pipeline_mode = #tpu.pipeline_mode<synchronous>, transform_indices = @transform_8, window_bounds = array<i64: 1, 1024>}, {transform_indices = @transform_9, window_bounds = array<i64: 1, 16, 8, 64>}]} {
    %c0 = arith.constant 0 : index
    %c0_0 = arith.constant 0 : index
    %c0_1 = arith.constant 0 : index
    %0 = vector.load %arg2[%c0, %c0_0, %c0_1] : memref<1x8x128xbf16, #tpu.memory_space<vmem>>, vector<1x8x128xbf16>
    %1 = vector.shape_cast %0 : vector<1x8x128xbf16> to vector<8x128xbf16>
    %c0_2 = arith.constant 0 : index
    %c0_3 = arith.constant 0 : index
    %2 = vector.load %arg3[%c0_2, %c0_3] : memref<128x256xbf16, #tpu.memory_space<vmem>>, vector<128x256xbf16>
    %cst = arith.constant dense<0.000000e+00> : vector<8x256xf32>
    %3 = tpu.matmul %1, %2, %cst {dimension_numbers = #tpu.dot_dimension_numbers<[1], [0], [0], [1], [0, 0, 1, 1], [], []>} : vector<8x128xbf16>, vector<128x256xbf16>, vector<8x256xf32> -> vector<8x256xf32>
    %c0_4 = arith.constant 0 : index
    %c0_5 = arith.constant 0 : index
    %4 = vector.load %arg4[%c0_4, %c0_5] : memref<1x256xf32, #tpu.memory_space<vmem>>, vector<1x256xf32>
    %5 = vector.broadcast %4 : vector<1x256xf32> to vector<8x256xf32>
    %6 = arith.addf %3, %5 : vector<8x256xf32>
    %cst_6 = arith.constant 0.000000e+00 : f32
    %7 = vector.broadcast %cst_6 : f32 to vector<8x256xf32>
    %8 = arith.maximumf %6, %7 : vector<8x256xf32>
    %9 = arith.truncf %8 : vector<8x256xf32> to vector<8x256xbf16>
    %c0_7 = arith.constant 0 : index
    %c0_8 = arith.constant 0 : index
    %10 = vector.load %arg5[%c0_7, %c0_8] : memref<256x512xbf16, #tpu.memory_space<vmem>>, vector<256x512xbf16>
    %cst_9 = arith.constant dense<0.000000e+00> : vector<8x512xf32>
    %11 = tpu.matmul %9, %10, %cst_9 {dimension_numbers = #tpu.dot_dimension_numbers<[1], [0], [0], [1], [0, 0, 1, 1], [], []>} : vector<8x256xbf16>, vector<256x512xbf16>, vector<8x512xf32> -> vector<8x512xf32>
    %c0_10 = arith.constant 0 : index
    %c0_11 = arith.constant 0 : index
    %12 = vector.load %arg6[%c0_10, %c0_11] : memref<1x512xf32, #tpu.memory_space<vmem>>, vector<1x512xf32>
    %13 = vector.broadcast %12 : vector<1x512xf32> to vector<8x512xf32>
    %14 = arith.addf %11, %13 : vector<8x512xf32>
    %cst_12 = arith.constant 0.000000e+00 : f32
    %15 = vector.broadcast %cst_12 : f32 to vector<8x512xf32>
    %16 = arith.maximumf %14, %15 : vector<8x512xf32>
    %17 = arith.truncf %16 : vector<8x512xf32> to vector<8x512xbf16>
    %c0_13 = arith.constant 0 : index
    %c0_14 = arith.constant 0 : index
    %18 = vector.load %arg7[%c0_13, %c0_14] : memref<512x1024xbf16, #tpu.memory_space<vmem>>, vector<512x1024xbf16>
    %cst_15 = arith.constant dense<0.000000e+00> : vector<8x1024xf32>
    %19 = tpu.matmul %17, %18, %cst_15 {dimension_numbers = #tpu.dot_dimension_numbers<[1], [0], [0], [1], [0, 0, 1, 1], [], []>} : vector<8x512xbf16>, vector<512x1024xbf16>, vector<8x1024xf32> -> vector<8x1024xf32>
    %c0_16 = arith.constant 0 : index
    %c0_17 = arith.constant 0 : index
    %20 = vector.load %arg8[%c0_16, %c0_17] : memref<1x1024xf32, #tpu.memory_space<vmem>>, vector<1x1024xf32>
    %21 = vector.broadcast %20 : vector<1x1024xf32> to vector<8x1024xf32>
    %22 = arith.addf %19, %21 : vector<8x1024xf32>
    %cst_18 = arith.constant 0.000000e+00 : f32
    %23 = vector.broadcast %cst_18 : f32 to vector<8x1024xf32>
    %24 = arith.maximumf %22, %23 : vector<8x1024xf32>
    %25 = arith.truncf %24 : vector<8x1024xf32> to vector<8x1024xbf16>
    %c0_19 = arith.constant 0 : index
    %c0_20 = arith.constant 0 : index
    %26 = vector.load %arg9[%c0_19, %c0_20] : memref<1024x1024xbf16, #tpu.memory_space<vmem>>, vector<1024x1024xbf16>
    %cst_21 = arith.constant dense<0.000000e+00> : vector<8x1024xf32>
    %27 = tpu.matmul %25, %26, %cst_21 {dimension_numbers = #tpu.dot_dimension_numbers<[1], [0], [0], [1], [0, 0, 1, 1], [], []>} : vector<8x1024xbf16>, vector<1024x1024xbf16>, vector<8x1024xf32> -> vector<8x1024xf32>
    %c0_22 = arith.constant 0 : index
    %c0_23 = arith.constant 0 : index
    %28 = vector.load %arg10[%c0_22, %c0_23] : memref<1x1024xf32, #tpu.memory_space<vmem>>, vector<1x1024xf32>
    %29 = vector.broadcast %28 : vector<1x1024xf32> to vector<8x1024xf32>
    %30 = arith.addf %27, %29 : vector<8x1024xf32>
    %31 = vector.extract_strided_slice %30 {offsets = [0, 0], sizes = [8, 64], strides = [1, 1]} : vector<8x1024xf32> to vector<8x64xf32>
    %c0_24 = arith.constant 0 : index
    %c0_25 = arith.constant 0 : index
    %c0_26 = arith.constant 0 : index
    %c0_27 = arith.constant 0 : index
    %32 = vector.load %arg11[%c0_24, %c0_25, %c0_26, %c0_27] : memref<1x16x8x64xf32, #tpu.memory_space<vmem>>, vector<1x1x8x64xf32>
    %33 = vector.shape_cast %32 : vector<1x1x8x64xf32> to vector<8x64xf32>
    %34 = vector.shape_cast %31 : vector<8x64xf32> to vector<1x1x8x64xf32>
    tpu.vector_store %arg11[%c0_24, %c0_25, %c0_26, %c0_27], %34 {strides = array<i32>} : memref<1x16x8x64xf32, #tpu.memory_space<vmem>>, vector<1x1x8x64xf32>,
    %35 = vector.extract_strided_slice %30 {offsets = [0, 64], sizes = [8, 64], strides = [1, 1]} : vector<8x1024xf32> to vector<8x64xf32>
    %c0_28 = arith.constant 0 : index
    %c1 = arith.constant 1 : index
    %c0_29 = arith.constant 0 : index
    %c0_30 = arith.constant 0 : index
    %36 = vector.load %arg11[%c0_28, %c1, %c0_29, %c0_30] : memref<1x16x8x64xf32, #tpu.memory_space<vmem>>, vector<1x1x8x64xf32>
    %37 = vector.shape_cast %36 : vector<1x1x8x64xf32> to vector<8x64xf32>
    %38 = vector.shape_cast %35 : vector<8x64xf32> to vector<1x1x8x64xf32>
    tpu.vector_store %arg11[%c0_28, %c1, %c0_29, %c0_30], %38 {strides = array<i32>} : memref<1x16x8x64xf32, #tpu.memory_space<vmem>>, vector<1x1x8x64xf32>,
    %39 = vector.extract_strided_slice %30 {offsets = [0, 128], sizes = [8, 64], strides = [1, 1]} : vector<8x1024xf32> to vector<8x64xf32>
    %c0_31 = arith.constant 0 : index
    %c2 = arith.constant 2 : index
    %c0_32 = arith.constant 0 : index
    %c0_33 = arith.constant 0 : index
    %40 = vector.load %arg11[%c0_31, %c2, %c0_32, %c0_33] : memref<1x16x8x64xf32, #tpu.memory_space<vmem>>, vector<1x1x8x64xf32>
    %41 = vector.shape_cast %40 : vector<1x1x8x64xf32> to vector<8x64xf32>
    %42 = vector.shape_cast %39 : vector<8x64xf32> to vector<1x1x8x64xf32>
    tpu.vector_store %arg11[%c0_31, %c2, %c0_32, %c0_33], %42 {strides = array<i32>} : memref<1x16x8x64xf32, #tpu.memory_space<vmem>>, vector<1x1x8x64xf32>,
    %43 = vector.extract_strided_slice %30 {offsets = [0, 192], sizes = [8, 64], strides = [1, 1]} : vector<8x1024xf32> to vector<8x64xf32>
    %c0_34 = arith.constant 0 : index
    %c3 = arith.constant 3 : index
    %c0_35 = arith.constant 0 : index
    %c0_36 = arith.constant 0 : index
    %44 = vector.load %arg11[%c0_34, %c3, %c0_35, %c0_36] : memref<1x16x8x64xf32, #tpu.memory_space<vmem>>, vector<1x1x8x64xf32>
    %45 = vector.shape_cast %44 : vector<1x1x8x64xf32> to vector<8x64xf32>
    %46 = vector.shape_cast %43 : vector<8x64xf32> to vector<1x1x8x64xf32>
    tpu.vector_store %arg11[%c0_34, %c3, %c0_35, %c0_36], %46 {strides = array<i32>} : memref<1x16x8x64xf32, #tpu.memory_space<vmem>>, vector<1x1x8x64xf32>,
    %47 = vector.extract_strided_slice %30 {offsets = [0, 256], sizes = [8, 64], strides = [1, 1]} : vector<8x1024xf32> to vector<8x64xf32>
    %c0_37 = arith.constant 0 : index
    %c4 = arith.constant 4 : index
    %c0_38 = arith.constant 0 : index
    %c0_39 = arith.constant 0 : index
    %48 = vector.load %arg11[%c0_37, %c4, %c0_38, %c0_39] : memref<1x16x8x64xf32, #tpu.memory_space<vmem>>, vector<1x1x8x64xf32>
    %49 = vector.shape_cast %48 : vector<1x1x8x64xf32> to vector<8x64xf32>
    %50 = vector.shape_cast %47 : vector<8x64xf32> to vector<1x1x8x64xf32>
    tpu.vector_store %arg11[%c0_37, %c4, %c0_38, %c0_39], %50 {strides = array<i32>} : memref<1x16x8x64xf32, #tpu.memory_space<vmem>>, vector<1x1x8x64xf32>,
    %51 = vector.extract_strided_slice %30 {offsets = [0, 320], sizes = [8, 64], strides = [1, 1]} : vector<8x1024xf32> to vector<8x64xf32>
    %c0_40 = arith.constant 0 : index
    %c5 = arith.constant 5 : index
    %c0_41 = arith.constant 0 : index
    %c0_42 = arith.constant 0 : index
    %52 = vector.load %arg11[%c0_40, %c5, %c0_41, %c0_42] : memref<1x16x8x64xf32, #tpu.memory_space<vmem>>, vector<1x1x8x64xf32>
    %53 = vector.shape_cast %52 : vector<1x1x8x64xf32> to vector<8x64xf32>
    %54 = vector.shape_cast %51 : vector<8x64xf32> to vector<1x1x8x64xf32>
    tpu.vector_store %arg11[%c0_40, %c5, %c0_41, %c0_42], %54 {strides = array<i32>} : memref<1x16x8x64xf32, #tpu.memory_space<vmem>>, vector<1x1x8x64xf32>,
    %55 = vector.extract_strided_slice %30 {offsets = [0, 384], sizes = [8, 64], strides = [1, 1]} : vector<8x1024xf32> to vector<8x64xf32>
    %c0_43 = arith.constant 0 : index
    %c6 = arith.constant 6 : index
    %c0_44 = arith.constant 0 : index
    %c0_45 = arith.constant 0 : index
    %56 = vector.load %arg11[%c0_43, %c6, %c0_44, %c0_45] : memref<1x16x8x64xf32, #tpu.memory_space<vmem>>, vector<1x1x8x64xf32>
    %57 = vector.shape_cast %56 : vector<1x1x8x64xf32> to vector<8x64xf32>
    %58 = vector.shape_cast %55 : vector<8x64xf32> to vector<1x1x8x64xf32>
    tpu.vector_store %arg11[%c0_43, %c6, %c0_44, %c0_45], %58 {strides = array<i32>} : memref<1x16x8x64xf32, #tpu.memory_space<vmem>>, vector<1x1x8x64xf32>,
    %59 = vector.extract_strided_slice %30 {offsets = [0, 448], sizes = [8, 64], strides = [1, 1]} : vector<8x1024xf32> to vector<8x64xf32>
    %c0_46 = arith.constant 0 : index
    %c7 = arith.constant 7 : index
    %c0_47 = arith.constant 0 : index
    %c0_48 = arith.constant 0 : index
    %60 = vector.load %arg11[%c0_46, %c7, %c0_47, %c0_48] : memref<1x16x8x64xf32, #tpu.memory_space<vmem>>, vector<1x1x8x64xf32>
    %61 = vector.shape_cast %60 : vector<1x1x8x64xf32> to vector<8x64xf32>
    %62 = vector.shape_cast %59 : vector<8x64xf32> to vector<1x1x8x64xf32>
    tpu.vector_store %arg11[%c0_46, %c7, %c0_47, %c0_48], %62 {strides = array<i32>} : memref<1x16x8x64xf32, #tpu.memory_space<vmem>>, vector<1x1x8x64xf32>,
    %63 = vector.extract_strided_slice %30 {offsets = [0, 512], sizes = [8, 64], strides = [1, 1]} : vector<8x1024xf32> to vector<8x64xf32>
    %c0_49 = arith.constant 0 : index
    %c8 = arith.constant 8 : index
    %c0_50 = arith.constant 0 : index
    %c0_51 = arith.constant 0 : index
    %64 = vector.load %arg11[%c0_49, %c8, %c0_50, %c0_51] : memref<1x16x8x64xf32, #tpu.memory_space<vmem>>, vector<1x1x8x64xf32>
    %65 = vector.shape_cast %64 : vector<1x1x8x64xf32> to vector<8x64xf32>
    %66 = vector.shape_cast %63 : vector<8x64xf32> to vector<1x1x8x64xf32>
    tpu.vector_store %arg11[%c0_49, %c8, %c0_50, %c0_51], %66 {strides = array<i32>} : memref<1x16x8x64xf32, #tpu.memory_space<vmem>>, vector<1x1x8x64xf32>,
    %67 = vector.extract_strided_slice %30 {offsets = [0, 576], sizes = [8, 64], strides = [1, 1]} : vector<8x1024xf32> to vector<8x64xf32>
    %c0_52 = arith.constant 0 : index
    %c9 = arith.constant 9 : index
    %c0_53 = arith.constant 0 : index
    %c0_54 = arith.constant 0 : index
    %68 = vector.load %arg11[%c0_52, %c9, %c0_53, %c0_54] : memref<1x16x8x64xf32, #tpu.memory_space<vmem>>, vector<1x1x8x64xf32>
    %69 = vector.shape_cast %68 : vector<1x1x8x64xf32> to vector<8x64xf32>
    %70 = vector.shape_cast %67 : vector<8x64xf32> to vector<1x1x8x64xf32>
    tpu.vector_store %arg11[%c0_52, %c9, %c0_53, %c0_54], %70 {strides = array<i32>} : memref<1x16x8x64xf32, #tpu.memory_space<vmem>>, vector<1x1x8x64xf32>,
    %71 = vector.extract_strided_slice %30 {offsets = [0, 640], sizes = [8, 64], strides = [1, 1]} : vector<8x1024xf32> to vector<8x64xf32>
    %c0_55 = arith.constant 0 : index
    %c10 = arith.constant 10 : index
    %c0_56 = arith.constant 0 : index
    %c0_57 = arith.constant 0 : index
    %72 = vector.load %arg11[%c0_55, %c10, %c0_56, %c0_57] : memref<1x16x8x64xf32, #tpu.memory_space<vmem>>, vector<1x1x8x64xf32>
    %73 = vector.shape_cast %72 : vector<1x1x8x64xf32> to vector<8x64xf32>
    %74 = vector.shape_cast %71 : vector<8x64xf32> to vector<1x1x8x64xf32>
    tpu.vector_store %arg11[%c0_55, %c10, %c0_56, %c0_57], %74 {strides = array<i32>} : memref<1x16x8x64xf32, #tpu.memory_space<vmem>>, vector<1x1x8x64xf32>,
    %75 = vector.extract_strided_slice %30 {offsets = [0, 704], sizes = [8, 64], strides = [1, 1]} : vector<8x1024xf32> to vector<8x64xf32>
    %c0_58 = arith.constant 0 : index
    %c11 = arith.constant 11 : index
    %c0_59 = arith.constant 0 : index
    %c0_60 = arith.constant 0 : index
    %76 = vector.load %arg11[%c0_58, %c11, %c0_59, %c0_60] : memref<1x16x8x64xf32, #tpu.memory_space<vmem>>, vector<1x1x8x64xf32>
    %77 = vector.shape_cast %76 : vector<1x1x8x64xf32> to vector<8x64xf32>
    %78 = vector.shape_cast %75 : vector<8x64xf32> to vector<1x1x8x64xf32>
    tpu.vector_store %arg11[%c0_58, %c11, %c0_59, %c0_60], %78 {strides = array<i32>} : memref<1x16x8x64xf32, #tpu.memory_space<vmem>>, vector<1x1x8x64xf32>,
    %79 = vector.extract_strided_slice %30 {offsets = [0, 768], sizes = [8, 64], strides = [1, 1]} : vector<8x1024xf32> to vector<8x64xf32>
    %c0_61 = arith.constant 0 : index
    %c12 = arith.constant 12 : index
    %c0_62 = arith.constant 0 : index
    %c0_63 = arith.constant 0 : index
    %80 = vector.load %arg11[%c0_61, %c12, %c0_62, %c0_63] : memref<1x16x8x64xf32, #tpu.memory_space<vmem>>, vector<1x1x8x64xf32>
    %81 = vector.shape_cast %80 : vector<1x1x8x64xf32> to vector<8x64xf32>
    %82 = vector.shape_cast %79 : vector<8x64xf32> to vector<1x1x8x64xf32>
    tpu.vector_store %arg11[%c0_61, %c12, %c0_62, %c0_63], %82 {strides = array<i32>} : memref<1x16x8x64xf32, #tpu.memory_space<vmem>>, vector<1x1x8x64xf32>,
    %83 = vector.extract_strided_slice %30 {offsets = [0, 832], sizes = [8, 64], strides = [1, 1]} : vector<8x1024xf32> to vector<8x64xf32>
    %c0_64 = arith.constant 0 : index
    %c13 = arith.constant 13 : index
    %c0_65 = arith.constant 0 : index
    %c0_66 = arith.constant 0 : index
    %84 = vector.load %arg11[%c0_64, %c13, %c0_65, %c0_66] : memref<1x16x8x64xf32, #tpu.memory_space<vmem>>, vector<1x1x8x64xf32>
    %85 = vector.shape_cast %84 : vector<1x1x8x64xf32> to vector<8x64xf32>
    %86 = vector.shape_cast %83 : vector<8x64xf32> to vector<1x1x8x64xf32>
    tpu.vector_store %arg11[%c0_64, %c13, %c0_65, %c0_66], %86 {strides = array<i32>} : memref<1x16x8x64xf32, #tpu.memory_space<vmem>>, vector<1x1x8x64xf32>,
    %87 = vector.extract_strided_slice %30 {offsets = [0, 896], sizes = [8, 64], strides = [1, 1]} : vector<8x1024xf32> to vector<8x64xf32>
    %c0_67 = arith.constant 0 : index
    %c14 = arith.constant 14 : index
    %c0_68 = arith.constant 0 : index
    %c0_69 = arith.constant 0 : index
    %88 = vector.load %arg11[%c0_67, %c14, %c0_68, %c0_69] : memref<1x16x8x64xf32, #tpu.memory_space<vmem>>, vector<1x1x8x64xf32>
    %89 = vector.shape_cast %88 : vector<1x1x8x64xf32> to vector<8x64xf32>
    %90 = vector.shape_cast %87 : vector<8x64xf32> to vector<1x1x8x64xf32>
    tpu.vector_store %arg11[%c0_67, %c14, %c0_68, %c0_69], %90 {strides = array<i32>} : memref<1x16x8x64xf32, #tpu.memory_space<vmem>>, vector<1x1x8x64xf32>,
    %91 = vector.extract_strided_slice %30 {offsets = [0, 960], sizes = [8, 64], strides = [1, 1]} : vector<8x1024xf32> to vector<8x64xf32>
    %c0_70 = arith.constant 0 : index
    %c15 = arith.constant 15 : index
    %c0_71 = arith.constant 0 : index
    %c0_72 = arith.constant 0 : index
    %92 = vector.load %arg11[%c0_70, %c15, %c0_71, %c0_72] : memref<1x16x8x64xf32, #tpu.memory_space<vmem>>, vector<1x1x8x64xf32>
    %93 = vector.shape_cast %92 : vector<1x1x8x64xf32> to vector<8x64xf32>
    %94 = vector.shape_cast %91 : vector<8x64xf32> to vector<1x1x8x64xf32>
    tpu.vector_store %arg11[%c0_70, %c15, %c0_71, %c0_72], %94 {strides = array<i32>} : memref<1x16x8x64xf32, #tpu.memory_space<vmem>>, vector<1x1x8x64xf32>,
    return
  }
  func.func @transform_0(%arg0: i32, %arg1: i32) -> (i32, i32, i32) {
    %c0_i32 = arith.constant 0 : i32
    %c0_i32_0 = arith.constant 0 : i32
    return %arg0, %arg1, %c0_i32 : i32, i32, i32
  }
  func.func @transform_1(%arg0: i32, %arg1: i32) -> (i32, i32) {
    %c0_i32 = arith.constant 0 : i32
    %c0_i32_0 = arith.constant 0 : i32
    %c0_i32_1 = arith.constant 0 : i32
    return %c0_i32, %c0_i32_0 : i32, i32
  }
  func.func @transform_2(%arg0: i32, %arg1: i32) -> (i32, i32) {
    %c0_i32 = arith.constant 0 : i32
    %c0_i32_0 = arith.constant 0 : i32
    %c0_i32_1 = arith.constant 0 : i32
    return %c0_i32, %c0_i32_0 : i32, i32
  }
  func.func @transform_3(%arg0: i32, %arg1: i32) -> (i32, i32) {
    %c0_i32 = arith.constant 0 : i32
    %c0_i32_0 = arith.constant 0 : i32
    %c0_i32_1 = arith.constant 0 : i32
    return %c0_i32, %c0_i32_0 : i32, i32
  }
  func.func @transform_4(%arg0: i32, %arg1: i32) -> (i32, i32) {
    %c0_i32 = arith.constant 0 : i32
    %c0_i32_0 = arith.constant 0 : i32
    %c0_i32_1 = arith.constant 0 : i32
    return %c0_i32, %c0_i32_0 : i32, i32
  }
  func.func @transform_5(%arg0: i32, %arg1: i32) -> (i32, i32) {
    %c0_i32 = arith.constant 0 : i32
    %c0_i32_0 = arith.constant 0 : i32
    %c0_i32_1 = arith.constant 0 : i32
    return %c0_i32, %c0_i32_0 : i32, i32
  }
  func.func @transform_6(%arg0: i32, %arg1: i32) -> (i32, i32) {
    %c0_i32 = arith.constant 0 : i32
    %c0_i32_0 = arith.constant 0 : i32
    %c0_i32_1 = arith.constant 0 : i32
    return %c0_i32, %c0_i32_0 : i32, i32
  }
  func.func @transform_7(%arg0: i32, %arg1: i32) -> (i32, i32) {
    %c0_i32 = arith.constant 0 : i32
    %c0_i32_0 = arith.constant 0 : i32
    %c0_i32_1 = arith.constant 0 : i32
    return %c0_i32, %c0_i32_0 : i32, i32
  }
  func.func @transform_8(%arg0: i32, %arg1: i32) -> (i32, i32) {
    %c0_i32 = arith.constant 0 : i32
    %c0_i32_0 = arith.constant 0 : i32
    %c0_i32_1 = arith.constant 0 : i32
    return %c0_i32, %c0_i32_0 : i32, i32
  }
  func.func @transform_9(%arg0: i32, %arg1: i32) -> (i32, i32, i32, i32) {
    %c0_i32 = arith.constant 0 : i32
    %c0_i32_0 = arith.constant 0 : i32
    %c0_i32_1 = arith.constant 0 : i32
    return %arg0, %c0_i32, %arg1, %c0_i32_0 : i32, i32, i32, i32
  }
}

</mosaic_0001>

<llo_original>
// kernel: tpu_custom_call.1
$region0: #{tpu_custom_call.1}
  #allocation0 [shape = 'u32[]', space=smem, size = 0x4, offset = 0x4, fixed_abs, tag = 'smem constant byte address 0x4 - core index']
  #allocation1 [shape = 'u32[144,128]{1,0:T(1,128)}', space=vmem, size = 0x12000, scoped, tag = 'internal scratch']
  %s0 = inlined_call_operand.hbm [shape: bf16[2,8,128], index: 0, kind: input, shape index: {}]
  %s1 = inlined_call_operand.hbm [shape: bf16[128,256], index: 1, kind: input, shape index: {}]
  %s2 = inlined_call_operand.hbm [shape: f32[1,256], index: 2, kind: input, shape index: {}]
  %s3 = inlined_call_operand.hbm [shape: bf16[256,512], index: 3, kind: input, shape index: {}]
  %s4 = inlined_call_operand.hbm [shape: f32[1,512], index: 4, kind: input, shape index: {}]
  %s5 = inlined_call_operand.hbm [shape: bf16[512,1024], index: 5, kind: input, shape index: {}]
  %s6 = inlined_call_operand.hbm [shape: f32[1,1024], index: 6, kind: input, shape index: {}]
  %s7 = inlined_call_operand.hbm [shape: bf16[1024,1024], index: 7, kind: input, shape index: {}]
  %s8 = inlined_call_operand.hbm [shape: f32[1,1024], index: 8, kind: input, shape index: {}]
  %s9 = inlined_call_operand.hbm [shape: f32[2,16,8,64], index: 9, kind: output, shape index: {}]
  %s10 = sld [smem:[#allocation0]]
  $region105: #{tpu_custom_call.1} parent=0
    _
  %s12 = ssub.s32 1, %s10
  %s13 = scalar_select 0, %s12, %s10
  $region1: #{tpu_custom_call.1} parent=0
    #allocation2 [shape = 'u8[4096]{0}', space=vmem, size = 0x1000, scoped, tag = 'input window, operand 0']
    #allocation3 [shape = 's32[2]{0}', space=sflag, size = 0x8, scoped, tag = 'scoped memory for tpu_custom_call.1']
    #allocation4 [shape = 's32[2]{0}', space=sflag, size = 0x8, scoped, tag = 'scoped memory for tpu_custom_call.1']
    #allocation5 [shape = 'u8[65536]{0}', space=vmem, size = 0x10000, scoped, tag = 'input window, operand 1, single buffered']
    #allocation6 [shape = 's32[1]{0}', space=sflag, size = 0x4, scoped, tag = 'scoped memory for tpu_custom_call.1']
    #allocation7 [shape = 'u8[1024]{0}', space=vmem, size = 0x400, scoped, tag = 'input window, operand 2, single buffered']
    #allocation8 [shape = 'u8[262144]{0}', space=vmem, size = 0x40000, scoped, tag = 'input window, operand 3, single buffered']
    #allocation9 [shape = 's32[1]{0}', space=sflag, size = 0x4, scoped, tag = 'scoped memory for tpu_custom_call.1']
    #allocation10 [shape = 'u8[2048]{0}', space=vmem, size = 0x800, scoped, tag = 'input window, operand 4, single buffered']
    #allocation11 [shape = 'u8[1048576]{0}', space=vmem, size = 0x100000, scoped, tag = 'input window, operand 5, single buffered']
    #allocation12 [shape = 's32[1]{0}', space=sflag, size = 0x4, scoped, tag = 'scoped memory for tpu_custom_call.1']
    #allocation13 [shape = 'u8[4096]{0}', space=vmem, size = 0x1000, scoped, tag = 'input window, operand 6, single buffered']
    #allocation14 [shape = 'u8[2097152]{0}', space=vmem, size = 0x200000, scoped, tag = 'input window, operand 7, single buffered']
    #allocation15 [shape = 's32[1]{0}', space=sflag, size = 0x4, scoped, tag = 'scoped memory for tpu_custom_call.1']
    #allocation16 [shape = 'u8[4096]{0}', space=vmem, size = 0x1000, scoped, tag = 'input window, operand 8, single buffered']
    #allocation17 [shape = 'u8[131072]{0}', space=vmem, size = 0x20000, scoped, tag = 'output window, operand 0']
    %14 = vsyncpa [#allocation3], 0
    %s15 = scalar_lea.sflag [#allocation3], 1
    %16 = vsyncpa %s15, 0
    %17 = vsyncpa [#allocation6], 0
    %18 = vsyncpa [#allocation9], 0
    %19 = vsyncpa [#allocation12], 0
    %20 = vsyncpa [#allocation15], 0
    %21 = vsyncpa [#allocation4], 0
    %s22 = scalar_lea.sflag [#allocation4], 1
    %23 = vsyncpa %s22, 0
    loop: start=0, step=1, limit=4
    $region2: #{tpu_custom_call.1} parent=1 // loop_pre_header
      _
    $region3: #{tpu_custom_call.1} parent=1 // loop_header
      %s25 = sphi 0, %s29
      %p26 = scmp.ge.s32.totalorder %s25, 4
      %s32 = sphi 0, %s44
      %s33 = sphi 0, %s40
      %s34 = sphi 0, %s32
      %s35 = sphi 0, %s33
      %s36 = sphi 0, %s34
      %s37 = sphi 0, %s35
      %s49 = sphi 0, %s51
      %s52 = sphi 0, %s49
      %s53 = sphi 0, %s52
      %s69 = sphi 0, %s53
      %s73 = sphi 0, %s73
      %s75 = sphi 0, %s73
      %s76 = sphi 0, %s75
      %s90 = sphi 0, %s76
      %s94 = sphi 0, %s94
      %s96 = sphi 0, %s94
      %s97 = sphi 0, %s96
      %s111 = sphi 0, %s97
      %s115 = sphi 0, %s115
      %s117 = sphi 0, %s115
      %s118 = sphi 0, %s117
      %s132 = sphi 0, %s118
      %s136 = sphi 0, %s136
      %s138 = sphi 0, %s136
      %s139 = sphi 0, %s138
      %s153 = sphi 0, %s139
      %s157 = sphi 0, %s157
      %s159 = sphi 0, %s157
      %s160 = sphi 0, %s159
      %s174 = sphi 0, %s160
      %s178 = sphi 0, %s178
      %s180 = sphi 0, %s178
      %s181 = sphi 0, %s180
      %s195 = sphi 0, %s181
      %s199 = sphi 0, %s199
      %s201 = sphi 0, %s199
      %s202 = sphi 0, %s201
      %s216 = sphi 0, %s202
      %s220 = sphi 0, %s220
      %s222 = sphi 0, %s220
      %s223 = sphi 0, %s222
      %s237 = sphi 0, %s223
      %s245 = sphi 0, %s247
      %s248 = sphi 0, %s245
      %s249 = sphi 0, %s248
      %s265 = sphi 0, %s249
    $region4: #{tpu_custom_call.1} parent=1 // loop_header_branch
      %28 = sbr.rel (%p26) target = $region8
    $region5: #{tpu_custom_call.1} parent=1 // loop_body
      %s30 = ssub.s32 %s25, 1
      %s31 = ssub.s32 %s25, 2
      %s38 = sadd.s32 1, %s33
      %p39 = scmp.ge.s32.totalorder %s38, 1
      %s40 = scalar_select %p39, 0, %s38
      %s41 = sadd.s32 1, %s32
      %s42 = scalar_select %p39, %s41, %s32
      %p43 = scmp.ge.s32.totalorder %s42, 2
      %s44 = scalar_select %p43, 0, %s42
      %s45 = ssub.s32 %s32, %s44
      %s46 = ssub.s32 %s33, %s40
      %s47 = sor.u32 %s45, %s46
      %p48 = scmp.eq.s32.totalorder %s47, 0
      %s50 = sadd.s32 %s49, 1
      %s51 = scalar_select %p48, %s49, %s50
      %p54 = pneg %p48
      %p55 = scmp.eq.s32.totalorder %s25, 1
      %p56 = por %p54, %p55
      %p57 = scmp.ne.s32.totalorder %s49, %s52
      %p58 = scmp.eq.s32.totalorder %s25, 0
      %p59 = por %p57, %p58
      %p60 = scmp.ne.s32.totalorder %s49, %s52
      %p61 = scmp.eq.s32.totalorder %s30, 1
      %p62 = por %p60, %p61
      %p63 = scmp.ne.s32.totalorder %s52, %s53
      %p64 = scmp.eq.s32.totalorder %s30, 0
      %p65 = por %p63, %p64
      %p66 = scmp.ne.s32.totalorder %s52, %s53
      %p67 = scmp.eq.s32.totalorder %s31, 1
      %p68 = por %p66, %p67
      %p70 = scmp.ne.s32.totalorder %s53, %s69
      %p71 = scmp.eq.s32.totalorder %s31, 0
      %p72 = por %p70, %p71
      %s74 = sadd.s32 %s73, 1
      %p77 = scmp.eq.s32.totalorder %s25, 1
      %p78 = scmp.ne.s32.totalorder %s73, %s75
      %p79 = scmp.eq.s32.totalorder %s25, 0
      %p80 = por %p78, %p79
      %p81 = scmp.ne.s32.totalorder %s73, %s75
      %p82 = scmp.eq.s32.totalorder %s30, 1
      %p83 = por %p81, %p82
      %p84 = scmp.ne.s32.totalorder %s75, %s76
      %p85 = scmp.eq.s32.totalorder %s30, 0
      %p86 = por %p84, %p85
      %p87 = scmp.ne.s32.totalorder %s75, %s76
      %p88 = scmp.eq.s32.totalorder %s31, 1
      %p89 = por %p87, %p88
      %p91 = scmp.ne.s32.totalorder %s76, %s90
      %p92 = scmp.eq.s32.totalorder %s31, 0
      %p93 = por %p91, %p92
      %s95 = sadd.s32 %s94, 1
      %p98 = scmp.eq.s32.totalorder %s25, 1
      %p99 = scmp.ne.s32.totalorder %s94, %s96
      %p100 = scmp.eq.s32.totalorder %s25, 0
      %p101 = por %p99, %p100
      %p102 = scmp.ne.s32.totalorder %s94, %s96
      %p103 = scmp.eq.s32.totalorder %s30, 1
      %p104 = por %p102, %p103
      %p105 = scmp.ne.s32.totalorder %s96, %s97
      %p106 = scmp.eq.s32.totalorder %s30, 0
      %p107 = por %p105, %p106
      %p108 = scmp.ne.s32.totalorder %s96, %s97
      %p109 = scmp.eq.s32.totalorder %s31, 1
      %p110 = por %p108, %p109
      %p112 = scmp.ne.s32.totalorder %s97, %s111
      %p113 = scmp.eq.s32.totalorder %s31, 0
      %p114 = por %p112, %p113
      %s116 = sadd.s32 %s115, 1
      %p119 = scmp.eq.s32.totalorder %s25, 1
      %p120 = scmp.ne.s32.totalorder %s115, %s117
      %p121 = scmp.eq.s32.totalorder %s25, 0
      %p122 = por %p120, %p121
      %p123 = scmp.ne.s32.totalorder %s115, %s117
      %p124 = scmp.eq.s32.totalorder %s30, 1
      %p125 = por %p123, %p124
      %p126 = scmp.ne.s32.totalorder %s117, %s118
      %p127 = scmp.eq.s32.totalorder %s30, 0
      %p128 = por %p126, %p127
      %p129 = scmp.ne.s32.totalorder %s117, %s118
      %p130 = scmp.eq.s32.totalorder %s31, 1
      %p131 = por %p129, %p130
      %p133 = scmp.ne.s32.totalorder %s118, %s132
      %p134 = scmp.eq.s32.totalorder %s31, 0
      %p135 = por %p133, %p134
      %s137 = sadd.s32 %s136, 1
      %p140 = scmp.eq.s32.totalorder %s25, 1
      %p141 = scmp.ne.s32.totalorder %s136, %s138
      %p142 = scmp.eq.s32.totalorder %s25, 0
      %p143 = por %p141, %p142
      %p144 = scmp.ne.s32.totalorder %s136, %s138
      %p145 = scmp.eq.s32.totalorder %s30, 1
      %p146 = por %p144, %p145
      %p147 = scmp.ne.s32.totalorder %s138, %s139
      %p148 = scmp.eq.s32.totalorder %s30, 0
      %p149 = por %p147, %p148
      %p150 = scmp.ne.s32.totalorder %s138, %s139
      %p151 = scmp.eq.s32.totalorder %s31, 1
      %p152 = por %p150, %p151
      %p154 = scmp.ne.s32.totalorder %s139, %s153
      %p155 = scmp.eq.s32.totalorder %s31, 0
      %p156 = por %p154, %p155
      %s158 = sadd.s32 %s157, 1
      %p161 = scmp.eq.s32.totalorder %s25, 1
      %p162 = scmp.ne.s32.totalorder %s157, %s159
      %p163 = scmp.eq.s32.totalorder %s25, 0
      %p164 = por %p162, %p163
      %p165 = scmp.ne.s32.totalorder %s157, %s159
      %p166 = scmp.eq.s32.totalorder %s30, 1
      %p167 = por %p165, %p166
      %p168 = scmp.ne.s32.totalorder %s159, %s160
      %p169 = scmp.eq.s32.totalorder %s30, 0
      %p170 = por %p168, %p169
      %p171 = scmp.ne.s32.totalorder %s159, %s160
      %p172 = scmp.eq.s32.totalorder %s31, 1
      %p173 = por %p171, %p172
      %p175 = scmp.ne.s32.totalorder %s160, %s174
      %p176 = scmp.eq.s32.totalorder %s31, 0
      %p177 = por %p175, %p176
      %s179 = sadd.s32 %s178, 1
      %p182 = scmp.eq.s32.totalorder %s25, 1
      %p183 = scmp.ne.s32.totalorder %s178, %s180
      %p184 = scmp.eq.s32.totalorder %s25, 0
      %p185 = por %p183, %p184
      %p186 = scmp.ne.s32.totalorder %s178, %s180
      %p187 = scmp.eq.s32.totalorder %s30, 1
      %p188 = por %p186, %p187
      %p189 = scmp.ne.s32.totalorder %s180, %s181
      %p190 = scmp.eq.s32.totalorder %s30, 0
      %p191 = por %p189, %p190
      %p192 = scmp.ne.s32.totalorder %s180, %s181
      %p193 = scmp.eq.s32.totalorder %s31, 1
      %p194 = por %p192, %p193
      %p196 = scmp.ne.s32.totalorder %s181, %s195
      %p197 = scmp.eq.s32.totalorder %s31, 0
      %p198 = por %p196, %p197
      %s200 = sadd.s32 %s199, 1
      %p203 = scmp.eq.s32.totalorder %s25, 1
      %p204 = scmp.ne.s32.totalorder %s199, %s201
      %p205 = scmp.eq.s32.totalorder %s25, 0
      %p206 = por %p204, %p205
      %p207 = scmp.ne.s32.totalorder %s199, %s201
      %p208 = scmp.eq.s32.totalorder %s30, 1
      %p209 = por %p207, %p208
      %p210 = scmp.ne.s32.totalorder %s201, %s202
      %p211 = scmp.eq.s32.totalorder %s30, 0
      %p212 = por %p210, %p211
      %p213 = scmp.ne.s32.totalorder %s201, %s202
      %p214 = scmp.eq.s32.totalorder %s31, 1
      %p215 = por %p213, %p214
      %p217 = scmp.ne.s32.totalorder %s202, %s216
      %p218 = scmp.eq.s32.totalorder %s31, 0
      %p219 = por %p217, %p218
      %s221 = sadd.s32 %s220, 1
      %p224 = scmp.eq.s32.totalorder %s25, 1
      %p225 = scmp.ne.s32.totalorder %s220, %s222
      %p226 = scmp.eq.s32.totalorder %s25, 0
      %p227 = por %p225, %p226
      %p228 = scmp.ne.s32.totalorder %s220, %s222
      %p229 = scmp.eq.s32.totalorder %s30, 1
      %p230 = por %p228, %p229
      %p231 = scmp.ne.s32.totalorder %s222, %s223
      %p232 = scmp.eq.s32.totalorder %s30, 0
      %p233 = por %p231, %p232
      %p234 = scmp.ne.s32.totalorder %s222, %s223
      %p235 = scmp.eq.s32.totalorder %s31, 1
      %p236 = por %p234, %p235
      %p238 = scmp.ne.s32.totalorder %s223, %s237
      %p239 = scmp.eq.s32.totalorder %s31, 0
      %p240 = por %p238, %p239
      %s241 = ssub.s32 %s32, %s44
      %s242 = ssub.s32 %s33, %s40
      %s243 = sor.u32 %s241, %s242
      %p244 = scmp.eq.s32.totalorder %s243, 0
      %s246 = sadd.s32 %s245, 1
      %s247 = scalar_select %p244, %s245, %s246
      %p250 = pneg %p244
      %p251 = scmp.eq.s32.totalorder %s25, 1
      %p252 = por %p250, %p251
      %p253 = scmp.ne.s32.totalorder %s245, %s248
      %p254 = scmp.eq.s32.totalorder %s25, 0
      %p255 = por %p253, %p254
      %p256 = scmp.ne.s32.totalorder %s245, %s248
      %p257 = scmp.eq.s32.totalorder %s30, 1
      %p258 = por %p256, %p257
      %p259 = scmp.ne.s32.totalorder %s248, %s249
      %p260 = scmp.eq.s32.totalorder %s30, 0
      %p261 = por %p259, %p260
      %p262 = scmp.ne.s32.totalorder %s248, %s249
      %p263 = scmp.eq.s32.totalorder %s31, 1
      %p264 = por %p262, %p263
      %p266 = scmp.ne.s32.totalorder %s249, %s265
      %p267 = scmp.eq.s32.totalorder %s31, 0
      %p268 = por %p266, %p267
      %p269 = scmp.le.s32.totalorder 1, %s25
      %p270 = scmp.lt.s32.totalorder %s25, 3
      %p271 = pnand %p269, %p270
      %p272 = pneg %p271
      // Predicated region
      $region9: #{tpu_custom_call.1} parent=5 // pred_check
        _
      $region10: #{tpu_custom_call.1} parent=5 // pred_check_branch
        %274 = sbr.rel (%p271) target = $region12
      $region11: #{tpu_custom_call.1} parent=5 // pred_region
        %s275 = ssub.s32 %s25, 1
        // Predicated region
        $region13: #{tpu_custom_call.1} parent=11 // pred_check
          %p276 = pneg %p86
        $region14: #{tpu_custom_call.1} parent=11 // pred_check_branch
          %278 = sbr.rel (%p276) target = $region16
        $region15: #{tpu_custom_call.1} parent=11 // pred_region
          %s280 = ssub.s32 2048, 2048
          %281 = vsyncadd [#allocation6], %s280
          %s282 = sshll.u32 [#allocation5], 4
          %s283 = int_to_ptr.vmem [resolvable:$true] %s282
          %288 = dma.hbm_to_vmem [thread:$0]  %s1, 2048, %s283, [#allocation6], 128, 128, 8
        $region16: #{tpu_custom_call.1} parent=11 // pred_fallthru
          _
        // Predicated region
        $region17: #{tpu_custom_call.1} parent=11 // pred_check
          %p289 = pneg %p107
        $region18: #{tpu_custom_call.1} parent=11 // pred_check_branch
          %291 = sbr.rel (%p289) target = $region20
        $region19: #{tpu_custom_call.1} parent=11 // pred_region
          %s293 = ssub.s32 32, 32
          %294 = vsyncadd [#allocation6], %s293
          %s296 = sshll.u32 [#allocation7], 4
          %s297 = int_to_ptr.vmem [resolvable:$true] %s296
          %299 = dma.hbm_to_vmem [thread:$0]  %s2, 32, %s297, [#allocation6]
        $region20: #{tpu_custom_call.1} parent=11 // pred_fallthru
          _
        // Predicated region
        $region21: #{tpu_custom_call.1} parent=11 // pred_check
          %p300 = pneg %p128
        $region22: #{tpu_custom_call.1} parent=11 // pred_check_branch
          %302 = sbr.rel (%p300) target = $region24
        $region23: #{tpu_custom_call.1} parent=11 // pred_region
          %s304 = ssub.s32 8192, 8192
          %305 = vsyncadd [#allocation9], %s304
          %s306 = sshll.u32 [#allocation8], 4
          %s307 = int_to_ptr.vmem [resolvable:$true] %s306
          %312 = dma.hbm_to_vmem [thread:$0]  %s3, 8192, %s307, [#allocation9], 256, 256, 16
        $region24: #{tpu_custom_call.1} parent=11 // pred_fallthru
          _
        // Predicated region
        $region25: #{tpu_custom_call.1} parent=11 // pred_check
          %p313 = pneg %p149
        $region26: #{tpu_custom_call.1} parent=11 // pred_check_branch
          %315 = sbr.rel (%p313) target = $region28
        $region27: #{tpu_custom_call.1} parent=11 // pred_region
          %s317 = ssub.s32 64, 64
          %318 = vsyncadd [#allocation9], %s317
          %s320 = sshll.u32 [#allocation10], 4
          %s321 = int_to_ptr.vmem [resolvable:$true] %s320
          %323 = dma.hbm_to_vmem [thread:$0]  %s4, 64, %s321, [#allocation9]
        $region28: #{tpu_custom_call.1} parent=11 // pred_fallthru
          _
        // Predicated region
        $region29: #{tpu_custom_call.1} parent=11 // pred_check
          %p324 = pneg %p170
        $region30: #{tpu_custom_call.1} parent=11 // pred_check_branch
          %326 = sbr.rel (%p324) target = $region32
        $region31: #{tpu_custom_call.1} parent=11 // pred_region
          %s328 = ssub.s32 32768, 32768
          %329 = vsyncadd [#allocation12], %s328
          %s330 = sshll.u32 [#allocation11], 4
          %s331 = int_to_ptr.vmem [resolvable:$true] %s330
          %336 = dma.hbm_to_vmem [thread:$0]  %s5, 32768, %s331, [#allocation12], 512, 512, 32
        $region32: #{tpu_custom_call.1} parent=11 // pred_fallthru
          _
        // Predicated region
        $region33: #{tpu_custom_call.1} parent=11 // pred_check
          %p337 = pneg %p191
        $region34: #{tpu_custom_call.1} parent=11 // pred_check_branch
          %339 = sbr.rel (%p337) target = $region36
        $region35: #{tpu_custom_call.1} parent=11 // pred_region
          %s341 = ssub.s32 128, 128
          %342 = vsyncadd [#allocation12], %s341
          %s344 = sshll.u32 [#allocation13], 4
          %s345 = int_to_ptr.vmem [resolvable:$true] %s344
          %347 = dma.hbm_to_vmem [thread:$0]  %s6, 128, %s345, [#allocation12]
        $region36: #{tpu_custom_call.1} parent=11 // pred_fallthru
          _
        // Predicated region
        $region37: #{tpu_custom_call.1} parent=11 // pred_check
          %p348 = pneg %p212
        $region38: #{tpu_custom_call.1} parent=11 // pred_check_branch
          %350 = sbr.rel (%p348) target = $region40
        $region39: #{tpu_custom_call.1} parent=11 // pred_region
          %s352 = ssub.s32 65536, 65536
          %353 = vsyncadd [#allocation15], %s352
          %s354 = sshll.u32 [#allocation14], 4
          %s355 = int_to_ptr.vmem [resolvable:$true] %s354
          %360 = dma.hbm_to_vmem [thread:$0]  %s7, 65536, %s355, [#allocation15], 512, 512, 32
        $region40: #{tpu_custom_call.1} parent=11 // pred_fallthru
          _
        // Predicated region
        $region41: #{tpu_custom_call.1} parent=11 // pred_check
          %p361 = pneg %p233
        $region42: #{tpu_custom_call.1} parent=11 // pred_check_branch
          %363 = sbr.rel (%p361) target = $region44
        $region43: #{tpu_custom_call.1} parent=11 // pred_region
          %s365 = ssub.s32 128, 128
          %366 = vsyncadd [#allocation15], %s365
          %s368 = sshll.u32 [#allocation16], 4
          %s369 = int_to_ptr.vmem [resolvable:$true] %s368
          %371 = dma.hbm_to_vmem [thread:$0]  %s8, 128, %s369, [#allocation15]
        $region44: #{tpu_custom_call.1} parent=11 // pred_fallthru
          _
      $region12: #{tpu_custom_call.1} parent=5 // pred_fallthru
        _
      %p372 = scmp.lt.s32.totalorder %s25, 2
      // Predicated region
      $region45: #{tpu_custom_call.1} parent=5 // pred_check
        %p373 = pneg %p372
      $region46: #{tpu_custom_call.1} parent=5 // pred_check_branch
        %375 = sbr.rel (%p373) target = $region48
      $region47: #{tpu_custom_call.1} parent=5 // pred_region
        // Predicated region
        $region49: #{tpu_custom_call.1} parent=47 // pred_check
          %p376 = pneg %p59
        $region50: #{tpu_custom_call.1} parent=47 // pred_check_branch
          %378 = sbr.rel (%p376) target = $region52
        $region51: #{tpu_custom_call.1} parent=47 // pred_region
          %s379 = sand.u32 %s49, 1
          %s380 = scalar_lea.sflag [#allocation3], %s379
          %s381 = sand.u32 %s49, 1
          %s382 = smul.addr %s381, 4
          %s383 = scalar_lea.vmem [#allocation2], %s382
          %s385 = ssub.s32 64, 64
          %386 = vsyncadd %s380, %s385
          %s387 = sadd.s32 %s33, %s32
          %s388 = smul.addr %s387, 64
          %s389 = scalar_lea.hbm %s0, %s388
          %s391 = sshll.u32 %s383, 4
          %s392 = int_to_ptr.vmem [resolvable:$true] %s391
          %394 = dma.hbm_to_vmem [thread:$0]  %s389, 64, %s392, %s380
        $region52: #{tpu_custom_call.1} parent=47 // pred_fallthru
          _
      $region48: #{tpu_custom_call.1} parent=5 // pred_fallthru
        _
      %p395 = scmp.le.s32.totalorder 1, %s25
      %p396 = scmp.lt.s32.totalorder %s25, 3
      %p397 = pnand %p395, %p396
      %p398 = pneg %p397
      // Predicated region
      $region53: #{tpu_custom_call.1} parent=5 // pred_check
        _
      $region54: #{tpu_custom_call.1} parent=5 // pred_check_branch
        %400 = sbr.rel (%p397) target = $region56
      $region55: #{tpu_custom_call.1} parent=5 // pred_region
        %s401 = ssub.s32 %s25, 1
        %s402 = sand.u32 %s52, 1
        %s403 = scalar_lea.sflag [#allocation3], %s402
        %s404 = sand.u32 %s52, 1
        %s405 = smul.addr %s404, 4
        %s406 = scalar_lea.vmem [#allocation2], %s405
        // Predicated region
        $region57: #{tpu_custom_call.1} parent=55 // pred_check
          %p407 = pneg %p65
        $region58: #{tpu_custom_call.1} parent=55 // pred_check_branch
          %409 = sbr.rel (%p407) target = $region60
        $region59: #{tpu_custom_call.1} parent=55 // pred_region
          %410 = dma.done %s403, 64
        $region60: #{tpu_custom_call.1} parent=55 // pred_fallthru
          _
        // Predicated region
        $region61: #{tpu_custom_call.1} parent=55 // pred_check
          %p411 = pneg %p86
        $region62: #{tpu_custom_call.1} parent=55 // pred_check_branch
          %413 = sbr.rel (%p411) target = $region64
        $region63: #{tpu_custom_call.1} parent=55 // pred_region
          %414 = dma.done [#allocation6], 2048
        $region64: #{tpu_custom_call.1} parent=55 // pred_fallthru
          _
        // Predicated region
        $region65: #{tpu_custom_call.1} parent=55 // pred_check
          %p415 = pneg %p107
        $region66: #{tpu_custom_call.1} parent=55 // pred_check_branch
          %417 = sbr.rel (%p415) target = $region68
        $region67: #{tpu_custom_call.1} parent=55 // pred_region
          %418 = dma.done [#allocation6], 32
        $region68: #{tpu_custom_call.1} parent=55 // pred_fallthru
          _
        // Predicated region
        $region69: #{tpu_custom_call.1} parent=55 // pred_check
          %p419 = pneg %p128
        $region70: #{tpu_custom_call.1} parent=55 // pred_check_branch
          %421 = sbr.rel (%p419) target = $region72
        $region71: #{tpu_custom_call.1} parent=55 // pred_region
          %422 = dma.done [#allocation9], 8192
        $region72: #{tpu_custom_call.1} parent=55 // pred_fallthru
          _
        // Predicated region
        $region73: #{tpu_custom_call.1} parent=55 // pred_check
          %p423 = pneg %p149
        $region74: #{tpu_custom_call.1} parent=55 // pred_check_branch
          %425 = sbr.rel (%p423) target = $region76
        $region75: #{tpu_custom_call.1} parent=55 // pred_region
          %426 = dma.done [#allocation9], 64
        $region76: #{tpu_custom_call.1} parent=55 // pred_fallthru
          _
        // Predicated region
        $region77: #{tpu_custom_call.1} parent=55 // pred_check
          %p427 = pneg %p170
        $region78: #{tpu_custom_call.1} parent=55 // pred_check_branch
          %429 = sbr.rel (%p427) target = $region80
        $region79: #{tpu_custom_call.1} parent=55 // pred_region
          %430 = dma.done [#allocation12], 32768
        $region80: #{tpu_custom_call.1} parent=55 // pred_fallthru
          _
        // Predicated region
        $region81: #{tpu_custom_call.1} parent=55 // pred_check
          %p431 = pneg %p191
        $region82: #{tpu_custom_call.1} parent=55 // pred_check_branch
          %433 = sbr.rel (%p431) target = $region84
        $region83: #{tpu_custom_call.1} parent=55 // pred_region
          %434 = dma.done [#allocation12], 128
        $region84: #{tpu_custom_call.1} parent=55 // pred_fallthru
          _
        // Predicated region
        $region85: #{tpu_custom_call.1} parent=55 // pred_check
          %p435 = pneg %p212
        $region86: #{tpu_custom_call.1} parent=55 // pred_check_branch
          %437 = sbr.rel (%p435) target = $region88
        $region87: #{tpu_custom_call.1} parent=55 // pred_region
          %438 = dma.done [#allocation15], 65536
        $region88: #{tpu_custom_call.1} parent=55 // pred_fallthru
          _
        // Predicated region
        $region89: #{tpu_custom_call.1} parent=55 // pred_check
          %p439 = pneg %p233
        $region90: #{tpu_custom_call.1} parent=55 // pred_check_branch
          %441 = sbr.rel (%p439) target = $region92
        $region91: #{tpu_custom_call.1} parent=55 // pred_region
          %442 = dma.done [#allocation15], 128
        $region92: #{tpu_custom_call.1} parent=55 // pred_fallthru
          _
        %s443 = sand.u32 %s52, 1
        %s444 = scalar_lea.sflag [#allocation3], %s443
        %s445 = sand.u32 %s52, 1
        %s446 = smul.addr %s445, 4
        %s447 = scalar_lea.vmem [#allocation2], %s446
        %p448 = pneg %p65
        %p449 = pneg %p62
        %p450 = pneg %p86
        %p451 = pneg %p83
        %p452 = pneg %p107
        %p453 = pneg %p104
        %p454 = pneg %p128
        %p455 = pneg %p125
        %p456 = pneg %p149
        %p457 = pneg %p146
        %p458 = pneg %p170
        %p459 = pneg %p167
        %p460 = pneg %p191
        %p461 = pneg %p188
        %p462 = pneg %p212
        %p463 = pneg %p209
        %p464 = pneg %p233
        %p465 = pneg %p230
        %p466 = pneg %p261
        %p467 = pneg %p258
        %s468 = sand.u32 %s248, 1
        %s469 = scalar_lea.sflag [#allocation4], %s468
        %s470 = sand.u32 %s248, 1
        %s471 = smul.addr %s470, 128
        %s472 = scalar_lea.vmem [#allocation17], %s471
        %v474 = vld [vmem:[%s406] sm:$0xf]
        %v475 = vld [vmem:[#allocation5] sm:$0xff]
        %v476 = vld [vmem:[#allocation5 + $0x8] sm:$0xff]
        %v477 = vld [vmem:[#allocation5 + $0x10] sm:$0xff]
        %v478 = vld [vmem:[#allocation5 + $0x18] sm:$0xff]
        %v479 = vld [vmem:[#allocation5 + $0x20] sm:$0xff]
        %v480 = vld [vmem:[#allocation5 + $0x28] sm:$0xff]
        %v481 = vld [vmem:[#allocation5 + $0x30] sm:$0xff]
        %v482 = vld [vmem:[#allocation5 + $0x38] sm:$0xff]
        %v483 = vld [vmem:[#allocation5 + $0x40] sm:$0xff]
        %v484 = vld [vmem:[#allocation5 + $0x48] sm:$0xff]
        %v485 = vld [vmem:[#allocation5 + $0x50] sm:$0xff]
        %v486 = vld [vmem:[#allocation5 + $0x58] sm:$0xff]
        %v487 = vld [vmem:[#allocation5 + $0x60] sm:$0xff]
        %v488 = vld [vmem:[#allocation5 + $0x68] sm:$0xff]
        %v489 = vld [vmem:[#allocation5 + $0x70] sm:$0xff]
        %v490 = vld [vmem:[#allocation5 + $0x78] sm:$0xff]
        %v491 = vld [vmem:[#allocation7] sm:$0x3]
        %v493 = vlaneseq
        %v494 = vshrl.u32 %v493, 7
        %v495 = vsub.s32 0, %v494
        %v496 = vrot.slane %v491, %v495
        %v497 = vlaneseq
        %v498 = vshrl.u32 %v497, 7
        %v499 = vsub.s32 1, %v498
        %v500 = vrot.slane %v491, %v499
        %v519 = vunpack.c.l.b16 %v475
        %v520 = vunpack.c.h.b16 %v475
        %v521 = vunpack.c.l.b16 %v476
        %v522 = vunpack.c.h.b16 %v476
        %v523 = vunpack.c.l.b16 %v477
        %v524 = vunpack.c.h.b16 %v477
        %v525 = vunpack.c.l.b16 %v478
        %v526 = vunpack.c.h.b16 %v478
        %v527 = vunpack.c.l.b16 %v479
        %v528 = vunpack.c.h.b16 %v479
        %v529 = vunpack.c.l.b16 %v480
        %v530 = vunpack.c.h.b16 %v480
        %v531 = vunpack.c.l.b16 %v481
        %v532 = vunpack.c.h.b16 %v481
        %v533 = vunpack.c.l.b16 %v482
        %v534 = vunpack.c.h.b16 %v482
        %v535 = vunpack.c.l.b16 %v483
        %v536 = vunpack.c.h.b16 %v483
        %v537 = vunpack.c.l.b16 %v484
        %v538 = vunpack.c.h.b16 %v484
        %v539 = vunpack.c.l.b16 %v485
        %v540 = vunpack.c.h.b16 %v485
        %v541 = vunpack.c.l.b16 %v486
        %v542 = vunpack.c.h.b16 %v486
        %v543 = vunpack.c.l.b16 %v487
        %v544 = vunpack.c.h.b16 %v487
        %v545 = vunpack.c.l.b16 %v488
        %v546 = vunpack.c.h.b16 %v488
        %v547 = vunpack.c.l.b16 %v489
        %v548 = vunpack.c.h.b16 %v489
        %v549 = vunpack.c.l.b16 %v490
        %v550 = vunpack.c.h.b16 %v490
        %v551 = vpack.c.b16 %v521, %v519
        %v552 = vpack.c.b16 %v522, %v520
        %v553 = vpack.c.b16 %v525, %v523
        %v554 = vpack.c.b16 %v526, %v524
        %v555 = vpack.c.b16 %v529, %v527
        %v556 = vpack.c.b16 %v530, %v528
        %v557 = vpack.c.b16 %v533, %v531
        %v558 = vpack.c.b16 %v534, %v532
        %v559 = vpack.c.b16 %v537, %v535
        %v560 = vpack.c.b16 %v538, %v536
        %v561 = vpack.c.b16 %v541, %v539
        %v562 = vpack.c.b16 %v542, %v540
        %v563 = vpack.c.b16 %v545, %v543
        %v564 = vpack.c.b16 %v546, %v544
        %v565 = vpack.c.b16 %v549, %v547
        %v566 = vpack.c.b16 %v550, %v548
        %583 = vmatprep.subr.bf16.mxu0 %v552
        %584 = vmatpush1.bf16.msra.mxu0 %v551
        %585 = vmatprep.subr.bf16.mxu0 %v554
        %586 = vmatpush1.bf16.msra.mxu0 %v553
        %587 = vmatprep.subr.bf16.mxu0 %v556
        %588 = vmatpush1.bf16.msra.mxu0 %v555
        %589 = vmatprep.subr.bf16.mxu0 %v558
        %590 = vmatpush1.bf16.msra.mxu0 %v557
        %591 = vmatprep.subr.bf16.mxu0 %v560
        %592 = vmatpush1.bf16.msra.mxu0 %v559
        %593 = vmatprep.subr.bf16.mxu0 %v562
        %594 = vmatpush1.bf16.msra.mxu0 %v561
        %595 = vmatprep.subr.bf16.mxu0 %v564
        %596 = vmatpush1.bf16.msra.mxu0 %v563
        %597 = vmatprep.subr.bf16.mxu0 %v566
        %598 = vmatpush1.bf16.msra.mxu0 %v565
        %599 = vmatprep.subr.bf16.mxu0 0
        %600 = vmatpush1.bf16.msra.mxu0 0
        %601 = vmatprep.subr.bf16.mxu0 0
        %602 = vmatpush1.bf16.msra.mxu0 0
        %603 = vmatprep.subr.bf16.mxu0 0
        %604 = vmatpush1.bf16.msra.mxu0 0
        %605 = vmatprep.subr.bf16.mxu0 0
        %606 = vmatpush1.bf16.msra.mxu0 0
        %607 = vmatprep.subr.bf16.mxu0 0
        %608 = vmatpush1.bf16.msra.mxu0 0
        %609 = vmatprep.subr.bf16.mxu0 0
        %610 = vmatpush1.bf16.msra.mxu0 0
        %611 = vmatprep.subr.bf16.mxu0 0
        %612 = vmatpush1.bf16.msra.mxu0 0
        %613 = vmatprep.subr.bf16.mxu0 0
        %614 = vmatpush1.bf16.msra.mxu0 0
        %615 = vmatprep.mubr.bf16.mxu0 0
        %616 = vmatmul.mubr.bf16.gmra.mrb[0].mxu0 %v474
        %v617 = vpop.f32.mrb[0].mxu0
        %v618 = vadd.f32 %v496, %v617
        %v619 = vpop.f32.mrb[0].mxu0
        %v620 = vadd.f32 %v500, %v619
        %v621 = vpop.f32.mrb[0].mxu0
        %v622 = vpop.f32.mrb[0].mxu0
        %623 = vdwg.mxu0
        %v624 = vmax.f32 %v618, 0.0
        %v625 = vmax.f32 %v620, 0.0
        %v626 = vpack.c.bf16 %v624, %v624
        %v627 = vpack.c.bf16 %v625, %v625
        %v628 = vld [vmem:[#allocation8] sm:$0xff]
        %v629 = vld [vmem:[#allocation8 + $0x8] sm:$0xff]
        %v630 = vld [vmem:[#allocation8 + $0x10] sm:$0xff]
        %v631 = vld [vmem:[#allocation8 + $0x18] sm:$0xff]
        %v632 = vld [vmem:[#allocation8 + $0x20] sm:$0xff]
        %v633 = vld [vmem:[#allocation8 + $0x28] sm:$0xff]
        %v634 = vld [vmem:[#allocation8 + $0x30] sm:$0xff]
        %v635 = vld [vmem:[#allocation8 + $0x38] sm:$0xff]
        %v636 = vld [vmem:[#allocation8 + $0x40] sm:$0xff]
        %v637 = vld [vmem:[#allocation8 + $0x48] sm:$0xff]
        %v638 = vld [vmem:[#allocation8 + $0x50] sm:$0xff]
        %v639 = vld [vmem:[#allocation8 + $0x58] sm:$0xff]
        %v640 = vld [vmem:[#allocation8 + $0x60] sm:$0xff]
        %v641 = vld [vmem:[#allocation8 + $0x68] sm:$0xff]
        %v642 = vld [vmem:[#allocation8 + $0x70] sm:$0xff]
        %v643 = vld [vmem:[#allocation8 + $0x78] sm:$0xff]
        %v644 = vld [vmem:[#allocation8 + $0x80] sm:$0xff]
        %v645 = vld [vmem:[#allocation8 + $0x88] sm:$0xff]
        %v646 = vld [vmem:[#allocation8 + $0x90] sm:$0xff]
        %v647 = vld [vmem:[#allocation8 + $0x98] sm:$0xff]
        %v648 = vld [vmem:[#allocation8 + $0xa0] sm:$0xff]
        %v649 = vld [vmem:[#allocation8 + $0xa8] sm:$0xff]
        %v650 = vld [vmem:[#allocation8 + $0xb0] sm:$0xff]
        %v651 = vld [vmem:[#allocation8 + $0xb8] sm:$0xff]
        %v652 = vld [vmem:[#allocation8 + $0xc0] sm:$0xff]
        %v653 = vld [vmem:[#allocation8 + $0xc8] sm:$0xff]
        %v654 = vld [vmem:[#allocation8 + $0xd0] sm:$0xff]
        %v655 = vld [vmem:[#allocation8 + $0xd8] sm:$0xff]
        %v656 = vld [vmem:[#allocation8 + $0xe0] sm:$0xff]
        %v657 = vld [vmem:[#allocation8 + $0xe8] sm:$0xff]
        %v658 = vld [vmem:[#allocation8 + $0xf0] sm:$0xff]
        %v659 = vld [vmem:[#allocation8 + $0xf8] sm:$0xff]
        %v660 = vld [vmem:[#allocation8 + $0x100] sm:$0xff]
        %v661 = vld [vmem:[#allocation8 + $0x108] sm:$0xff]
        %v662 = vld [vmem:[#allocation8 + $0x110] sm:$0xff]
        %v663 = vld [vmem:[#allocation8 + $0x118] sm:$0xff]
        %v664 = vld [vmem:[#allocation8 + $0x120] sm:$0xff]
        %v665 = vld [vmem:[#allocation8 + $0x128] sm:$0xff]
        %v666 = vld [vmem:[#allocation8 + $0x130] sm:$0xff]
        %v667 = vld [vmem:[#allocation8 + $0x138] sm:$0xff]
        %v668 = vld [vmem:[#allocation8 + $0x140] sm:$0xff]
        %v669 = vld [vmem:[#allocation8 + $0x148] sm:$0xff]
        %v670 = vld [vmem:[#allocation8 + $0x150] sm:$0xff]
        %v671 = vld [vmem:[#allocation8 + $0x158] sm:$0xff]
        %v672 = vld [vmem:[#allocation8 + $0x160] sm:$0xff]
        %v673 = vld [vmem:[#allocation8 + $0x168] sm:$0xff]
        %v674 = vld [vmem:[#allocation8 + $0x170] sm:$0xff]
        %v675 = vld [vmem:[#allocation8 + $0x178] sm:$0xff]
        %v676 = vld [vmem:[#allocation8 + $0x180] sm:$0xff]
        %v677 = vld [vmem:[#allocation8 + $0x188] sm:$0xff]
        %v678 = vld [vmem:[#allocation8 + $0x190] sm:$0xff]
        %v679 = vld [vmem:[#allocation8 + $0x198] sm:$0xff]
        %v680 = vld [vmem:[#allocation8 + $0x1a0] sm:$0xff]
        %v681 = vld [vmem:[#allocation8 + $0x1a8] sm:$0xff]
        %v682 = vld [vmem:[#allocation8 + $0x1b0] sm:$0xff]
        %v683 = vld [vmem:[#allocation8 + $0x1b8] sm:$0xff]
        %v684 = vld [vmem:[#allocation8 + $0x1c0] sm:$0xff]
        %v685 = vld [vmem:[#allocation8 + $0x1c8] sm:$0xff]
        %v686 = vld [vmem:[#allocation8 + $0x1d0] sm:$0xff]
        %v687 = vld [vmem:[#allocation8 + $0x1d8] sm:$0xff]
        %v688 = vld [vmem:[#allocation8 + $0x1e0] sm:$0xff]
        %v689 = vld [vmem:[#allocation8 + $0x1e8] sm:$0xff]
        %v690 = vld [vmem:[#allocation8 + $0x1f0] sm:$0xff]
        %v691 = vld [vmem:[#allocation8 + $0x1f8] sm:$0xff]
        %v692 = vld [vmem:[#allocation10] sm:$0xf]
        %v694 = vlaneseq
        %v695 = vshrl.u32 %v694, 7
        %v696 = vsub.s32 0, %v695
        %v697 = vrot.slane %v692, %v696
        %v698 = vlaneseq
        %v699 = vshrl.u32 %v698, 7
        %v700 = vsub.s32 1, %v699
        %v701 = vrot.slane %v692, %v700
        %v702 = vlaneseq
        %v703 = vshrl.u32 %v702, 7
        %v704 = vsub.s32 2, %v703
        %v705 = vrot.slane %v692, %v704
        %v706 = vlaneseq
        %v707 = vshrl.u32 %v706, 7
        %v708 = vsub.s32 3, %v707
        %v709 = vrot.slane %v692, %v708
        %v778 = vunpack.c.l.b16 %v628
        %v779 = vunpack.c.h.b16 %v628
        %v780 = vunpack.c.l.b16 %v629
        %v781 = vunpack.c.h.b16 %v629
        %v782 = vunpack.c.l.b16 %v630
        %v783 = vunpack.c.h.b16 %v630
        %v784 = vunpack.c.l.b16 %v631
        %v785 = vunpack.c.h.b16 %v631
        %v786 = vunpack.c.l.b16 %v632
        %v787 = vunpack.c.h.b16 %v632
        %v788 = vunpack.c.l.b16 %v633
        %v789 = vunpack.c.h.b16 %v633
        %v790 = vunpack.c.l.b16 %v634
        %v791 = vunpack.c.h.b16 %v634
        %v792 = vunpack.c.l.b16 %v635
        %v793 = vunpack.c.h.b16 %v635
        %v794 = vunpack.c.l.b16 %v636
        %v795 = vunpack.c.h.b16 %v636
        %v796 = vunpack.c.l.b16 %v637
        %v797 = vunpack.c.h.b16 %v637
        %v798 = vunpack.c.l.b16 %v638
        %v799 = vunpack.c.h.b16 %v638
        %v800 = vunpack.c.l.b16 %v639
        %v801 = vunpack.c.h.b16 %v639
        %v802 = vunpack.c.l.b16 %v640
        %v803 = vunpack.c.h.b16 %v640
        %v804 = vunpack.c.l.b16 %v641
        %v805 = vunpack.c.h.b16 %v641
        %v806 = vunpack.c.l.b16 %v642
        %v807 = vunpack.c.h.b16 %v642
        %v808 = vunpack.c.l.b16 %v643
        %v809 = vunpack.c.h.b16 %v643
        %v810 = vunpack.c.l.b16 %v644
        %v811 = vunpack.c.h.b16 %v644
        %v812 = vunpack.c.l.b16 %v645
        %v813 = vunpack.c.h.b16 %v645
        %v814 = vunpack.c.l.b16 %v646
        %v815 = vunpack.c.h.b16 %v646
        %v816 = vunpack.c.l.b16 %v647
        %v817 = vunpack.c.h.b16 %v647
        %v818 = vunpack.c.l.b16 %v648
        %v819 = vunpack.c.h.b16 %v648
        %v820 = vunpack.c.l.b16 %v649
        %v821 = vunpack.c.h.b16 %v649
        %v822 = vunpack.c.l.b16 %v650
        %v823 = vunpack.c.h.b16 %v650
        %v824 = vunpack.c.l.b16 %v651
        %v825 = vunpack.c.h.b16 %v651
        %v826 = vunpack.c.l.b16 %v652
        %v827 = vunpack.c.h.b16 %v652
        %v828 = vunpack.c.l.b16 %v653
        %v829 = vunpack.c.h.b16 %v653
        %v830 = vunpack.c.l.b16 %v654
        %v831 = vunpack.c.h.b16 %v654
        %v832 = vunpack.c.l.b16 %v655
        %v833 = vunpack.c.h.b16 %v655
        %v834 = vunpack.c.l.b16 %v656
        %v835 = vunpack.c.h.b16 %v656
        %v836 = vunpack.c.l.b16 %v657
        %v837 = vunpack.c.h.b16 %v657
        %v838 = vunpack.c.l.b16 %v658
        %v839 = vunpack.c.h.b16 %v658
        %v840 = vunpack.c.l.b16 %v659
        %v841 = vunpack.c.h.b16 %v659
        %v842 = vunpack.c.l.b16 %v660
        %v843 = vunpack.c.h.b16 %v660
        %v844 = vunpack.c.l.b16 %v661
        %v845 = vunpack.c.h.b16 %v661
        %v846 = vunpack.c.l.b16 %v662
        %v847 = vunpack.c.h.b16 %v662
        %v848 = vunpack.c.l.b16 %v663
        %v849 = vunpack.c.h.b16 %v663
        %v850 = vunpack.c.l.b16 %v664
        %v851 = vunpack.c.h.b16 %v664
        %v852 = vunpack.c.l.b16 %v665
        %v853 = vunpack.c.h.b16 %v665
        %v854 = vunpack.c.l.b16 %v666
        %v855 = vunpack.c.h.b16 %v666
        %v856 = vunpack.c.l.b16 %v667
        %v857 = vunpack.c.h.b16 %v667
        %v858 = vunpack.c.l.b16 %v668
        %v859 = vunpack.c.h.b16 %v668
        %v860 = vunpack.c.l.b16 %v669
        %v861 = vunpack.c.h.b16 %v669
        %v862 = vunpack.c.l.b16 %v670
        %v863 = vunpack.c.h.b16 %v670
        %v864 = vunpack.c.l.b16 %v671
        %v865 = vunpack.c.h.b16 %v671
        %v866 = vunpack.c.l.b16 %v672
        %v867 = vunpack.c.h.b16 %v672
        %v868 = vunpack.c.l.b16 %v673
        %v869 = vunpack.c.h.b16 %v673
        %v870 = vunpack.c.l.b16 %v674
        %v871 = vunpack.c.h.b16 %v674
        %v872 = vunpack.c.l.b16 %v675
        %v873 = vunpack.c.h.b16 %v675
        %v874 = vunpack.c.l.b16 %v676
        %v875 = vunpack.c.h.b16 %v676
        %v876 = vunpack.c.l.b16 %v677
        %v877 = vunpack.c.h.b16 %v677
        %v878 = vunpack.c.l.b16 %v678
        %v879 = vunpack.c.h.b16 %v678
        %v880 = vunpack.c.l.b16 %v679
        %v881 = vunpack.c.h.b16 %v679
        %v882 = vunpack.c.l.b16 %v680
        %v883 = vunpack.c.h.b16 %v680
        %v884 = vunpack.c.l.b16 %v681
        %v885 = vunpack.c.h.b16 %v681
        %v886 = vunpack.c.l.b16 %v682
        %v887 = vunpack.c.h.b16 %v682
        %v888 = vunpack.c.l.b16 %v683
        %v889 = vunpack.c.h.b16 %v683
        %v890 = vunpack.c.l.b16 %v684
        %v891 = vunpack.c.h.b16 %v684
        %v892 = vunpack.c.l.b16 %v685
        %v893 = vunpack.c.h.b16 %v685
        %v894 = vunpack.c.l.b16 %v686
        %v895 = vunpack.c.h.b16 %v686
        %v896 = vunpack.c.l.b16 %v687
        %v897 = vunpack.c.h.b16 %v687
        %v898 = vunpack.c.l.b16 %v688
        %v899 = vunpack.c.h.b16 %v688
        %v900 = vunpack.c.l.b16 %v689
        %v901 = vunpack.c.h.b16 %v689
        %v902 = vunpack.c.l.b16 %v690
        %v903 = vunpack.c.h.b16 %v690
        %v904 = vunpack.c.l.b16 %v691
        %v905 = vunpack.c.h.b16 %v691
        %v906 = vpack.c.b16 %v782, %v778
        %v907 = vpack.c.b16 %v783, %v779
        %v908 = vpack.c.b16 %v784, %v780
        %v909 = vpack.c.b16 %v785, %v781
        %v910 = vpack.c.b16 %v790, %v786
        %v911 = vpack.c.b16 %v791, %v787
        %v912 = vpack.c.b16 %v792, %v788
        %v913 = vpack.c.b16 %v793, %v789
        %v914 = vpack.c.b16 %v798, %v794
        %v915 = vpack.c.b16 %v799, %v795
        %v916 = vpack.c.b16 %v800, %v796
        %v917 = vpack.c.b16 %v801, %v797
        %v918 = vpack.c.b16 %v806, %v802
        %v919 = vpack.c.b16 %v807, %v803
        %v920 = vpack.c.b16 %v808, %v804
        %v921 = vpack.c.b16 %v809, %v805
        %v922 = vpack.c.b16 %v814, %v810
        %v923 = vpack.c.b16 %v815, %v811
        %v924 = vpack.c.b16 %v816, %v812
        %v925 = vpack.c.b16 %v817, %v813
        %v926 = vpack.c.b16 %v822, %v818
        %v927 = vpack.c.b16 %v823, %v819
        %v928 = vpack.c.b16 %v824, %v820
        %v929 = vpack.c.b16 %v825, %v821
        %v930 = vpack.c.b16 %v830, %v826
        %v931 = vpack.c.b16 %v831, %v827
        %v932 = vpack.c.b16 %v832, %v828
        %v933 = vpack.c.b16 %v833, %v829
        %v934 = vpack.c.b16 %v838, %v834
        %v935 = vpack.c.b16 %v839, %v835
        %v936 = vpack.c.b16 %v840, %v836
        %v937 = vpack.c.b16 %v841, %v837
        %v938 = vpack.c.b16 %v846, %v842
        %v939 = vpack.c.b16 %v847, %v843
        %v940 = vpack.c.b16 %v848, %v844
        %v941 = vpack.c.b16 %v849, %v845
        %v942 = vpack.c.b16 %v854, %v850
        %v943 = vpack.c.b16 %v855, %v851
        %v944 = vpack.c.b16 %v856, %v852
        %v945 = vpack.c.b16 %v857, %v853
        %v946 = vpack.c.b16 %v862, %v858
        %v947 = vpack.c.b16 %v863, %v859
        %v948 = vpack.c.b16 %v864, %v860
        %v949 = vpack.c.b16 %v865, %v861
        %v950 = vpack.c.b16 %v870, %v866
        %v951 = vpack.c.b16 %v871, %v867
        %v952 = vpack.c.b16 %v872, %v868
        %v953 = vpack.c.b16 %v873, %v869
        %v954 = vpack.c.b16 %v878, %v874
        %v955 = vpack.c.b16 %v879, %v875
        %v956 = vpack.c.b16 %v880, %v876
        %v957 = vpack.c.b16 %v881, %v877
        %v958 = vpack.c.b16 %v886, %v882
        %v959 = vpack.c.b16 %v887, %v883
        %v960 = vpack.c.b16 %v888, %v884
        %v961 = vpack.c.b16 %v889, %v885
        %v962 = vpack.c.b16 %v894, %v890
        %v963 = vpack.c.b16 %v895, %v891
        %v964 = vpack.c.b16 %v896, %v892
        %v965 = vpack.c.b16 %v897, %v893
        %v966 = vpack.c.b16 %v902, %v898
        %v967 = vpack.c.b16 %v903, %v899
        %v968 = vpack.c.b16 %v904, %v900
        %v969 = vpack.c.b16 %v905, %v901
        %1034 = vmatprep.subr.bf16.mxu0 %v907
        %1035 = vmatpush1.bf16.msra.mxu0 %v906
        %1036 = vmatprep.subr.bf16.mxu0 %v911
        %1037 = vmatpush1.bf16.msra.mxu0 %v910
        %1038 = vmatprep.subr.bf16.mxu0 %v915
        %1039 = vmatpush1.bf16.msra.mxu0 %v914
        %1040 = vmatprep.subr.bf16.mxu0 %v919
        %1041 = vmatpush1.bf16.msra.mxu0 %v918
        %1042 = vmatprep.subr.bf16.mxu0 %v923
        %1043 = vmatpush1.bf16.msra.mxu0 %v922
        %1044 = vmatprep.subr.bf16.mxu0 %v927
        %1045 = vmatpush1.bf16.msra.mxu0 %v926
        %1046 = vmatprep.subr.bf16.mxu0 %v931
        %1047 = vmatpush1.bf16.msra.mxu0 %v930
        %1048 = vmatprep.subr.bf16.mxu0 %v935
        %1049 = vmatpush1.bf16.msra.mxu0 %v934
        %1050 = vmatprep.subr.bf16.mxu0 %v939
        %1051 = vmatpush1.bf16.msra.mxu0 %v938
        %1052 = vmatprep.subr.bf16.mxu0 %v943
        %1053 = vmatpush1.bf16.msra.mxu0 %v942
        %1054 = vmatprep.subr.bf16.mxu0 %v947
        %1055 = vmatpush1.bf16.msra.mxu0 %v946
        %1056 = vmatprep.subr.bf16.mxu0 %v951
        %1057 = vmatpush1.bf16.msra.mxu0 %v950
        %1058 = vmatprep.subr.bf16.mxu0 %v955
        %1059 = vmatpush1.bf16.msra.mxu0 %v954
        %1060 = vmatprep.subr.bf16.mxu0 %v959
        %1061 = vmatpush1.bf16.msra.mxu0 %v958
        %1062 = vmatprep.subr.bf16.mxu0 %v963
        %1063 = vmatpush1.bf16.msra.mxu0 %v962
        %1064 = vmatprep.subr.bf16.mxu0 %v967
        %1065 = vmatpush1.bf16.msra.mxu0 %v966
        %1066 = vmatprep.mubr.bf16.mxu0 %v627
        %1067 = vmatmul.mubr.bf16.gmra.mrb[0].mxu0 %v626
        %v1068 = vpop.f32.mrb[0].mxu0
        %v1069 = vadd.f32 %v697, %v1068
        %v1070 = vpop.f32.mrb[0].mxu0
        %v1071 = vadd.f32 %v701, %v1070
        %v1072 = vpop.f32.mrb[0].mxu0
        %v1073 = vpop.f32.mrb[0].mxu0
        %1074 = vdwg.mxu0
        %1075 = vmatprep.subr.bf16.mxu0 %v909
        %1076 = vmatpush1.bf16.msra.mxu0 %v908
        %1077 = vmatprep.subr.bf16.mxu0 %v913
        %1078 = vmatpush1.bf16.msra.mxu0 %v912
        %1079 = vmatprep.subr.bf16.mxu0 %v917
        %1080 = vmatpush1.bf16.msra.mxu0 %v916
        %1081 = vmatprep.subr.bf16.mxu0 %v921
        %1082 = vmatpush1.bf16.msra.mxu0 %v920
        %1083 = vmatprep.subr.bf16.mxu0 %v925
        %1084 = vmatpush1.bf16.msra.mxu0 %v924
        %1085 = vmatprep.subr.bf16.mxu0 %v929
        %1086 = vmatpush1.bf16.msra.mxu0 %v928
        %1087 = vmatprep.subr.bf16.mxu0 %v933
        %1088 = vmatpush1.bf16.msra.mxu0 %v932
        %1089 = vmatprep.subr.bf16.mxu0 %v937
        %1090 = vmatpush1.bf16.msra.mxu0 %v936
        %1091 = vmatprep.subr.bf16.mxu0 %v941
        %1092 = vmatpush1.bf16.msra.mxu0 %v940
        %1093 = vmatprep.subr.bf16.mxu0 %v945
        %1094 = vmatpush1.bf16.msra.mxu0 %v944
        %1095 = vmatprep.subr.bf16.mxu0 %v949
        %1096 = vmatpush1.bf16.msra.mxu0 %v948
        %1097 = vmatprep.subr.bf16.mxu0 %v953
        %1098 = vmatpush1.bf16.msra.mxu0 %v952
        %1099 = vmatprep.subr.bf16.mxu0 %v957
        %1100 = vmatpush1.bf16.msra.mxu0 %v956
        %1101 = vmatprep.subr.bf16.mxu0 %v961
        %1102 = vmatpush1.bf16.msra.mxu0 %v960
        %1103 = vmatprep.subr.bf16.mxu0 %v965
        %1104 = vmatpush1.bf16.msra.mxu0 %v964
        %1105 = vmatprep.subr.bf16.mxu0 %v969
        %1106 = vmatpush1.bf16.msra.mxu0 %v968
        %1107 = vmatprep.mubr.bf16.mxu0 %v627
        %1108 = vmatmul.mubr.bf16.gmra.mrb[0].mxu0 %v626
        %v1109 = vpop.f32.mrb[0].mxu0
        %v1110 = vadd.f32 %v705, %v1109
        %v1111 = vpop.f32.mrb[0].mxu0
        %v1112 = vadd.f32 %v709, %v1111
        %v1113 = vpop.f32.mrb[0].mxu0
        %v1114 = vpop.f32.mrb[0].mxu0
        %1115 = vdwg.mxu0
        %v1116 = vmax.f32 %v1069, 0.0
        %v1117 = vmax.f32 %v1071, 0.0
        %v1118 = vmax.f32 %v1110, 0.0
        %v1119 = vmax.f32 %v1112, 0.0
        %v1120 = vpack.c.bf16 %v1116, %v1116
        %v1121 = vpack.c.bf16 %v1117, %v1117
        %v1122 = vpack.c.bf16 %v1118, %v1118
        %v1123 = vpack.c.bf16 %v1119, %v1119
        %v1124 = vld [vmem:[#allocation11] sm:$0xff]
        %v1125 = vld [vmem:[#allocation11 + $0x8] sm:$0xff]
        %v1126 = vld [vmem:[#allocation11 + $0x10] sm:$0xff]
        %v1127 = vld [vmem:[#allocation11 + $0x18] sm:$0xff]
        %v1128 = vld [vmem:[#allocation11 + $0x20] sm:$0xff]
        %v1129 = vld [vmem:[#allocation11 + $0x28] sm:$0xff]
        %v1130 = vld [vmem:[#allocation11 + $0x30] sm:$0xff]
        %v1131 = vld [vmem:[#allocation11 + $0x38] sm:$0xff]
        %v1132 = vld [vmem:[#allocation11 + $0x40] sm:$0xff]
        %v1133 = vld [vmem:[#allocation11 + $0x48] sm:$0xff]
        %v1134 = vld [vmem:[#allocation11 + $0x50] sm:$0xff]
        %v1135 = vld [vmem:[#allocation11 + $0x58] sm:$0xff]
        %v1136 = vld [vmem:[#allocation11 + $0x60] sm:$0xff]
        %v1137 = vld [vmem:[#allocation11 + $0x68] sm:$0xff]
        %v1138 = vld [vmem:[#allocation11 + $0x70] sm:$0xff]
        %v1139 = vld [vmem:[#allocation11 + $0x78] sm:$0xff]
        %v1140 = vld [vmem:[#allocation11 + $0x80] sm:$0xff]
        %v1141 = vld [vmem:[#allocation11 + $0x88] sm:$0xff]
        %v1142 = vld [vmem:[#allocation11 + $0x90] sm:$0xff]
        %v1143 = vld [vmem:[#allocation11 + $0x98] sm:$0xff]
        %v1144 = vld [vmem:[#allocation11 + $0xa0] sm:$0xff]
        %v1145 = vld [vmem:[#allocation11 + $0xa8] sm:$0xff]
        %v1146 = vld [vmem:[#allocation11 + $0xb0] sm:$0xff]
        %v1147 = vld [vmem:[#allocation11 + $0xb8] sm:$0xff]
        %v1148 = vld [vmem:[#allocation11 + $0xc0] sm:$0xff]
        %v1149 = vld [vmem:[#allocation11 + $0xc8] sm:$0xff]
        %v1150 = vld [vmem:[#allocation11 + $0xd0] sm:$0xff]
        %v1151 = vld [vmem:[#allocation11 + $0xd8] sm:$0xff]
        %v1152 = vld [vmem:[#allocation11 + $0xe0] sm:$0xff]
        %v1153 = vld [vmem:[#allocation11 + $0xe8] sm:$0xff]
        %v1154 = vld [vmem:[#allocation11 + $0xf0] sm:$0xff]
        %v1155 = vld [vmem:[#allocation11 + $0xf8] sm:$0xff]
        %v1156 = vld [vmem:[#allocation11 + $0x100] sm:$0xff]
        %v1157 = vld [vmem:[#allocation11 + $0x108] sm:$0xff]
        %v1158 = vld [vmem:[#allocation11 + $0x110] sm:$0xff]
        %v1159 = vld [vmem:[#allocation11 + $0x118] sm:$0xff]
        %v1160 = vld [vmem:[#allocation11 + $0x120] sm:$0xff]
        %v1161 = vld [vmem:[#allocation11 + $0x128] sm:$0xff]
        %v1162 = vld [vmem:[#allocation11 + $0x130] sm:$0xff]
        %v1163 = vld [vmem:[#allocation11 + $0x138] sm:$0xff]
        %v1164 = vld [vmem:[#allocation11 + $0x140] sm:$0xff]
        %v1165 = vld [vmem:[#allocation11 + $0x148] sm:$0xff]
        %v1166 = vld [vmem:[#allocation11 + $0x150] sm:$0xff]
        %v1167 = vld [vmem:[#allocation11 + $0x158] sm:$0xff]
        %v1168 = vld [vmem:[#allocation11 + $0x160] sm:$0xff]
        %v1169 = vld [vmem:[#allocation11 + $0x168] sm:$0xff]
        %v1170 = vld [vmem:[#allocation11 + $0x170] sm:$0xff]
        %v1171 = vld [vmem:[#allocation11 + $0x178] sm:$0xff]
        %v1172 = vld [vmem:[#allocation11 + $0x180] sm:$0xff]
        %v1173 = vld [vmem:[#allocation11 + $0x188] sm:$0xff]
        %v1174 = vld [vmem:[#allocation11 + $0x190] sm:$0xff]
        %v1175 = vld [vmem:[#allocation11 + $0x198] sm:$0xff]
        %v1176 = vld [vmem:[#allocation11 + $0x1a0] sm:$0xff]
        %v1177 = vld [vmem:[#allocation11 + $0x1a8] sm:$0xff]
        %v1178 = vld [vmem:[#allocation11 + $0x1b0] sm:$0xff]
        %v1179 = vld [vmem:[#allocation11 + $0x1b8] sm:$0xff]
        %v1180 = vld [vmem:[#allocation11 + $0x1c0] sm:$0xff]
        %v1181 = vld [vmem:[#allocation11 + $0x1c8] sm:$0xff]
        %v1182 = vld [vmem:[#allocation11 + $0x1d0] sm:$0xff]
        %v1183 = vld [vmem:[#allocation11 + $0x1d8] sm:$0xff]
        %v1184 = vld [vmem:[#allocation11 + $0x1e0] sm:$0xff]
        %v1185 = vld [vmem:[#allocation11 + $0x1e8] sm:$0xff]
        %v1186 = vld [vmem:[#allocation11 + $0x1f0] sm:$0xff]
        %v1187 = vld [vmem:[#allocation11 + $0x1f8] sm:$0xff]
        %v1188 = vld [vmem:[#allocation11 + $0x200] sm:$0xff]
        %v1189 = vld [vmem:[#allocation11 + $0x208] sm:$0xff]
        %v1190 = vld [vmem:[#allocation11 + $0x210] sm:$0xff]
        %v1191 = vld [vmem:[#allocation11 + $0x218] sm:$0xff]
        %v1192 = vld [vmem:[#allocation11 + $0x220] sm:$0xff]
        %v1193 = vld [vmem:[#allocation11 + $0x228] sm:$0xff]
        %v1194 = vld [vmem:[#allocation11 + $0x230] sm:$0xff]
        %v1195 = vld [vmem:[#allocation11 + $0x238] sm:$0xff]
        %v1196 = vld [vmem:[#allocation11 + $0x240] sm:$0xff]
        %v1197 = vld [vmem:[#allocation11 + $0x248] sm:$0xff]
        %v1198 = vld [vmem:[#allocation11 + $0x250] sm:$0xff]
        %v1199 = vld [vmem:[#allocation11 + $0x258] sm:$0xff]
        %v1200 = vld [vmem:[#allocation11 + $0x260] sm:$0xff]
        %v1201 = vld [vmem:[#allocation11 + $0x268] sm:$0xff]
        %v1202 = vld [vmem:[#allocation11 + $0x270] sm:$0xff]
        %v1203 = vld [vmem:[#allocation11 + $0x278] sm:$0xff]
        %v1204 = vld [vmem:[#allocation11 + $0x280] sm:$0xff]
        %v1205 = vld [vmem:[#allocation11 + $0x288] sm:$0xff]
        %v1206 = vld [vmem:[#allocation11 + $0x290] sm:$0xff]
        %v1207 = vld [vmem:[#allocation11 + $0x298] sm:$0xff]
        %v1208 = vld [vmem:[#allocation11 + $0x2a0] sm:$0xff]
        %v1209 = vld [vmem:[#allocation11 + $0x2a8] sm:$0xff]
        %v1210 = vld [vmem:[#allocation11 + $0x2b0] sm:$0xff]
        %v1211 = vld [vmem:[#allocation11 + $0x2b8] sm:$0xff]
        %v1212 = vld [vmem:[#allocation11 + $0x2c0] sm:$0xff]
        %v1213 = vld [vmem:[#allocation11 + $0x2c8] sm:$0xff]
        %v1214 = vld [vmem:[#allocation11 + $0x2d0] sm:$0xff]
        %v1215 = vld [vmem:[#allocation11 + $0x2d8] sm:$0xff]
        %v1216 = vld [vmem:[#allocation11 + $0x2e0] sm:$0xff]
        %v1217 = vld [vmem:[#allocation11 + $0x2e8] sm:$0xff]
        %v1218 = vld [vmem:[#allocation11 + $0x2f0] sm:$0xff]
        %v1219 = vld [vmem:[#allocation11 + $0x2f8] sm:$0xff]
        %v1220 = vld [vmem:[#allocation11 + $0x300] sm:$0xff]
        %v1221 = vld [vmem:[#allocation11 + $0x308] sm:$0xff]
        %v1222 = vld [vmem:[#allocation11 + $0x310] sm:$0xff]
        %v1223 = vld [vmem:[#allocation11 + $0x318] sm:$0xff]
        %v1224 = vld [vmem:[#allocation11 + $0x320] sm:$0xff]
        %v1225 = vld [vmem:[#allocation11 + $0x328] sm:$0xff]
        %v1226 = vld [vmem:[#allocation11 + $0x330] sm:$0xff]
        %v1227 = vld [vmem:[#allocation11 + $0x338] sm:$0xff]
        %v1228 = vld [vmem:[#allocation11 + $0x340] sm:$0xff]
        %v1229 = vld [vmem:[#allocation11 + $0x348] sm:$0xff]
        %v1230 = vld [vmem:[#allocation11 + $0x350] sm:$0xff]
        %v1231 = vld [vmem:[#allocation11 + $0x358] sm:$0xff]
        %v1232 = vld [vmem:[#allocation11 + $0x360] sm:$0xff]
        %v1233 = vld [vmem:[#allocation11 + $0x368] sm:$0xff]
        %v1234 = vld [vmem:[#allocation11 + $0x370] sm:$0xff]
        %v1235 = vld [vmem:[#allocation11 + $0x378] sm:$0xff]
        %v1236 = vld [vmem:[#allocation11 + $0x380] sm:$0xff]
        %v1237 = vld [vmem:[#allocation11 + $0x388] sm:$0xff]
        %v1238 = vld [vmem:[#allocation11 + $0x390] sm:$0xff]
        %v1239 = vld [vmem:[#allocation11 + $0x398] sm:$0xff]
        %v1240 = vld [vmem:[#allocation11 + $0x3a0] sm:$0xff]
        %v1241 = vld [vmem:[#allocation11 + $0x3a8] sm:$0xff]
        %v1242 = vld [vmem:[#allocation11 + $0x3b0] sm:$0xff]
        %v1243 = vld [vmem:[#allocation11 + $0x3b8] sm:$0xff]
        %v1244 = vld [vmem:[#allocation11 + $0x3c0] sm:$0xff]
        %v1245 = vld [vmem:[#allocation11 + $0x3c8] sm:$0xff]
        %v1246 = vld [vmem:[#allocation11 + $0x3d0] sm:$0xff]
        %v1247 = vld [vmem:[#allocation11 + $0x3d8] sm:$0xff]
        %v1248 = vld [vmem:[#allocation11 + $0x3e0] sm:$0xff]
        %v1249 = vld [vmem:[#allocation11 + $0x3e8] sm:$0xff]
        %v1250 = vld [vmem:[#allocation11 + $0x3f0] sm:$0xff]
        %v1251 = vld [vmem:[#allocation11 + $0x3f8] sm:$0xff]
        %v1252 = vld [vmem:[#allocation11 + $0x400] sm:$0xff]
        %v1253 = vld [vmem:[#allocation11 + $0x408] sm:$0xff]
        %v1254 = vld [vmem:[#allocation11 + $0x410] sm:$0xff]
        %v1255 = vld [vmem:[#allocation11 + $0x418] sm:$0xff]
        %v1256 = vld [vmem:[#allocation11 + $0x420] sm:$0xff]
        %v1257 = vld [vmem:[#allocation11 + $0x428] sm:$0xff]
        %v1258 = vld [vmem:[#allocation11 + $0x430] sm:$0xff]
        %v1259 = vld [vmem:[#allocation11 + $0x438] sm:$0xff]
        %v1260 = vld [vmem:[#allocation11 + $0x440] sm:$0xff]
        %v1261 = vld [vmem:[#allocation11 + $0x448] sm:$0xff]
        %v1262 = vld [vmem:[#allocation11 + $0x450] sm:$0xff]
        %v1263 = vld [vmem:[#allocation11 + $0x458] sm:$0xff]
        %v1264 = vld [vmem:[#allocation11 + $0x460] sm:$0xff]
        %v1265 = vld [vmem:[#allocation11 + $0x468] sm:$0xff]
        %v1266 = vld [vmem:[#allocation11 + $0x470] sm:$0xff]
        %v1267 = vld [vmem:[#allocation11 + $0x478] sm:$0xff]
        %v1268 = vld [vmem:[#allocation11 + $0x480] sm:$0xff]
        %v1269 = vld [vmem:[#allocation11 + $0x488] sm:$0xff]
        %v1270 = vld [vmem:[#allocation11 + $0x490] sm:$0xff]
        %v1271 = vld [vmem:[#allocation11 + $0x498] sm:$0xff]
        %v1272 = vld [vmem:[#allocation11 + $0x4a0] sm:$0xff]
        %v1273 = vld [vmem:[#allocation11 + $0x4a8] sm:$0xff]
        %v1274 = vld [vmem:[#allocation11 + $0x4b0] sm:$0xff]
        %v1275 = vld [vmem:[#allocation11 + $0x4b8] sm:$0xff]
        %v1276 = vld [vmem:[#allocation11 + $0x4c0] sm:$0xff]
        %v1277 = vld [vmem:[#allocation11 + $0x4c8] sm:$0xff]
        %v1278 = vld [vmem:[#allocation11 + $0x4d0] sm:$0xff]
        %v1279 = vld [vmem:[#allocation11 + $0x4d8] sm:$0xff]
        %v1280 = vld [vmem:[#allocation11 + $0x4e0] sm:$0xff]
        %v1281 = vld [vmem:[#allocation11 + $0x4e8] sm:$0xff]
        %v1282 = vld [vmem:[#allocation11 + $0x4f0] sm:$0xff]
        %v1283 = vld [vmem:[#allocation11 + $0x4f8] sm:$0xff]
        %v1284 = vld [vmem:[#allocation11 + $0x500] sm:$0xff]
        %v1285 = vld [vmem:[#allocation11 + $0x508] sm:$0xff]
        %v1286 = vld [vmem:[#allocation11 + $0x510] sm:$0xff]
        %v1287 = vld [vmem:[#allocation11 + $0x518] sm:$0xff]
        %v1288 = vld [vmem:[#allocation11 + $0x520] sm:$0xff]
        %v1289 = vld [vmem:[#allocation11 + $0x528] sm:$0xff]
        %v1290 = vld [vmem:[#allocation11 + $0x530] sm:$0xff]
        %v1291 = vld [vmem:[#allocation11 + $0x538] sm:$0xff]
        %v1292 = vld [vmem:[#allocation11 + $0x540] sm:$0xff]
        %v1293 = vld [vmem:[#allocation11 + $0x548] sm:$0xff]
        %v1294 = vld [vmem:[#allocation11 + $0x550] sm:$0xff]
        %v1295 = vld [vmem:[#allocation11 + $0x558] sm:$0xff]
        %v1296 = vld [vmem:[#allocation11 + $0x560] sm:$0xff]
        %v1297 = vld [vmem:[#allocation11 + $0x568] sm:$0xff]
        %v1298 = vld [vmem:[#allocation11 + $0x570] sm:$0xff]
        %v1299 = vld [vmem:[#allocation11 + $0x578] sm:$0xff]
        %v1300 = vld [vmem:[#allocation11 + $0x580] sm:$0xff]
        %v1301 = vld [vmem:[#allocation11 + $0x588] sm:$0xff]
        %v1302 = vld [vmem:[#allocation11 + $0x590] sm:$0xff]
        %v1303 = vld [vmem:[#allocation11 + $0x598] sm:$0xff]
        %v1304 = vld [vmem:[#allocation11 + $0x5a0] sm:$0xff]
        %v1305 = vld [vmem:[#allocation11 + $0x5a8] sm:$0xff]
        %v1306 = vld [vmem:[#allocation11 + $0x5b0] sm:$0xff]
        %v1307 = vld [vmem:[#allocation11 + $0x5b8] sm:$0xff]
        %v1308 = vld [vmem:[#allocation11 + $0x5c0] sm:$0xff]
        %v1309 = vld [vmem:[#allocation11 + $0x5c8] sm:$0xff]
        %v1310 = vld [vmem:[#allocation11 + $0x5d0] sm:$0xff]
        %v1311 = vld [vmem:[#allocation11 + $0x5d8] sm:$0xff]
        %v1312 = vld [vmem:[#allocation11 + $0x5e0] sm:$0xff]
        %v1313 = vld [vmem:[#allocation11 + $0x5e8] sm:$0xff]
        %v1314 = vld [vmem:[#allocation11 + $0x5f0] sm:$0xff]
        %v1315 = vld [vmem:[#allocation11 + $0x5f8] sm:$0xff]
        %v1316 = vld [vmem:[#allocation11 + $0x600] sm:$0xff]
        %v1317 = vld [vmem:[#allocation11 + $0x608] sm:$0xff]
        %v1318 = vld [vmem:[#allocation11 + $0x610] sm:$0xff]
        %v1319 = vld [vmem:[#allocation11 + $0x618] sm:$0xff]
        %v1320 = vld [vmem:[#allocation11 + $0x620] sm:$0xff]
        %v1321 = vld [vmem:[#allocation11 + $0x628] sm:$0xff]
        %v1322 = vld [vmem:[#allocation11 + $0x630] sm:$0xff]
        %v1323 = vld [vmem:[#allocation11 + $0x638] sm:$0xff]
        %v1324 = vld [vmem:[#allocation11 + $0x640] sm:$0xff]
        %v1325 = vld [vmem:[#allocation11 + $0x648] sm:$0xff]
        %v1326 = vld [vmem:[#allocation11 + $0x650] sm:$0xff]
        %v1327 = vld [vmem:[#allocation11 + $0x658] sm:$0xff]
        %v1328 = vld [vmem:[#allocation11 + $0x660] sm:$0xff]
        %v1329 = vld [vmem:[#allocation11 + $0x668] sm:$0xff]
        %v1330 = vld [vmem:[#allocation11 + $0x670] sm:$0xff]
        %v1331 = vld [vmem:[#allocation11 + $0x678] sm:$0xff]
        %v1332 = vld [vmem:[#allocation11 + $0x680] sm:$0xff]
        %v1333 = vld [vmem:[#allocation11 + $0x688] sm:$0xff]
        %v1334 = vld [vmem:[#allocation11 + $0x690] sm:$0xff]
        %v1335 = vld [vmem:[#allocation11 + $0x698] sm:$0xff]
        %v1336 = vld [vmem:[#allocation11 + $0x6a0] sm:$0xff]
        %v1337 = vld [vmem:[#allocation11 + $0x6a8] sm:$0xff]
        %v1338 = vld [vmem:[#allocation11 + $0x6b0] sm:$0xff]
        %v1339 = vld [vmem:[#allocation11 + $0x6b8] sm:$0xff]
        %v1340 = vld [vmem:[#allocation11 + $0x6c0] sm:$0xff]
        %v1341 = vld [vmem:[#allocation11 + $0x6c8] sm:$0xff]
        %v1342 = vld [vmem:[#allocation11 + $0x6d0] sm:$0xff]
        %v1343 = vld [vmem:[#allocation11 + $0x6d8] sm:$0xff]
        %v1344 = vld [vmem:[#allocation11 + $0x6e0] sm:$0xff]
        %v1345 = vld [vmem:[#allocation11 + $0x6e8] sm:$0xff]
        %v1346 = vld [vmem:[#allocation11 + $0x6f0] sm:$0xff]
        %v1347 = vld [vmem:[#allocation11 + $0x6f8] sm:$0xff]
        %v1348 = vld [vmem:[#allocation11 + $0x700] sm:$0xff]
        %v1349 = vld [vmem:[#allocation11 + $0x708] sm:$0xff]
        %v1350 = vld [vmem:[#allocation11 + $0x710] sm:$0xff]
        %v1351 = vld [vmem:[#allocation11 + $0x718] sm:$0xff]
        %v1352 = vld [vmem:[#allocation11 + $0x720] sm:$0xff]
        %v1353 = vld [vmem:[#allocation11 + $0x728] sm:$0xff]
        %v1354 = vld [vmem:[#allocation11 + $0x730] sm:$0xff]
        %v1355 = vld [vmem:[#allocation11 + $0x738] sm:$0xff]
        %v1356 = vld [vmem:[#allocation11 + $0x740] sm:$0xff]
        %v1357 = vld [vmem:[#allocation11 + $0x748] sm:$0xff]
        %v1358 = vld [vmem:[#allocation11 + $0x750] sm:$0xff]
        %v1359 = vld [vmem:[#allocation11 + $0x758] sm:$0xff]
        %v1360 = vld [vmem:[#allocation11 + $0x760] sm:$0xff]
        %v1361 = vld [vmem:[#allocation11 + $0x768] sm:$0xff]
        %v1362 = vld [vmem:[#allocation11 + $0x770] sm:$0xff]
        %v1363 = vld [vmem:[#allocation11 + $0x778] sm:$0xff]
        %v1364 = vld [vmem:[#allocation11 + $0x780] sm:$0xff]
        %v1365 = vld [vmem:[#allocation11 + $0x788] sm:$0xff]
        %v1366 = vld [vmem:[#allocation11 + $0x790] sm:$0xff]
        %v1367 = vld [vmem:[#allocation11 + $0x798] sm:$0xff]
        %v1368 = vld [vmem:[#allocation11 + $0x7a0] sm:$0xff]
        %v1369 = vld [vmem:[#allocation11 + $0x7a8] sm:$0xff]
        %v1370 = vld [vmem:[#allocation11 + $0x7b0] sm:$0xff]
        %v1371 = vld [vmem:[#allocation11 + $0x7b8] sm:$0xff]
        %v1372 = vld [vmem:[#allocation11 + $0x7c0] sm:$0xff]
        %v1373 = vld [vmem:[#allocation11 + $0x7c8] sm:$0xff]
        %v1374 = vld [vmem:[#allocation11 + $0x7d0] sm:$0xff]
        %v1375 = vld [vmem:[#allocation11 + $0x7d8] sm:$0xff]
        %v1376 = vld [vmem:[#allocation11 + $0x7e0] sm:$0xff]
        %v1377 = vld [vmem:[#allocation11 + $0x7e8] sm:$0xff]
        %v1378 = vld [vmem:[#allocation11 + $0x7f0] sm:$0xff]
        %v1379 = vld [vmem:[#allocation11 + $0x7f8] sm:$0xff]
        %v1380 = vld [vmem:[#allocation13] sm:$0xff]
        %v1382 = vlaneseq
        %v1383 = vshrl.u32 %v1382, 7
        %v1384 = vsub.s32 0, %v1383
        %v1385 = vrot.slane %v1380, %v1384
        %v1386 = vlaneseq
        %v1387 = vshrl.u32 %v1386, 7
        %v1388 = vsub.s32 1, %v1387
        %v1389 = vrot.slane %v1380, %v1388
        %v1390 = vlaneseq
        %v1391 = vshrl.u32 %v1390, 7
        %v1392 = vsub.s32 2, %v1391
        %v1393 = vrot.slane %v1380, %v1392
        %v1394 = vlaneseq
        %v1395 = vshrl.u32 %v1394, 7
        %v1396 = vsub.s32 3, %v1395
        %v1397 = vrot.slane %v1380, %v1396
        %v1398 = vlaneseq
        %v1399 = vshrl.u32 %v1398, 7
        %v1400 = vsub.s32 4, %v1399
        %v1401 = vrot.slane %v1380, %v1400
        %v1402 = vlaneseq
        %v1403 = vshrl.u32 %v1402, 7
        %v1404 = vsub.s32 5, %v1403
        %v1405 = vrot.slane %v1380, %v1404
        %v1406 = vlaneseq
        %v1407 = vshrl.u32 %v1406, 7
        %v1408 = vsub.s32 6, %v1407
        %v1409 = vrot.slane %v1380, %v1408
        %v1410 = vlaneseq
        %v1411 = vshrl.u32 %v1410, 7
        %v1412 = vsub.s32 7, %v1411
        %v1413 = vrot.slane %v1380, %v1412
        %v1678 = vunpack.c.l.b16 %v1124
        %v1679 = vunpack.c.h.b16 %v1124
        %v1680 = vunpack.c.l.b16 %v1125
        %v1681 = vunpack.c.h.b16 %v1125
        %v1682 = vunpack.c.l.b16 %v1126
        %v1683 = vunpack.c.h.b16 %v1126
        %v1684 = vunpack.c.l.b16 %v1127
        %v1685 = vunpack.c.h.b16 %v1127
        %v1686 = vunpack.c.l.b16 %v1128
        %v1687 = vunpack.c.h.b16 %v1128
        %v1688 = vunpack.c.l.b16 %v1129
        %v1689 = vunpack.c.h.b16 %v1129
        %v1690 = vunpack.c.l.b16 %v1130
        %v1691 = vunpack.c.h.b16 %v1130
        %v1692 = vunpack.c.l.b16 %v1131
        %v1693 = vunpack.c.h.b16 %v1131
        %v1694 = vunpack.c.l.b16 %v1132
        %v1695 = vunpack.c.h.b16 %v1132
        %v1696 = vunpack.c.l.b16 %v1133
        %v1697 = vunpack.c.h.b16 %v1133
        %v1698 = vunpack.c.l.b16 %v1134
        %v1699 = vunpack.c.h.b16 %v1134
        %v1700 = vunpack.c.l.b16 %v1135
        %v1701 = vunpack.c.h.b16 %v1135
        %v1702 = vunpack.c.l.b16 %v1136
        %v1703 = vunpack.c.h.b16 %v1136
        %v1704 = vunpack.c.l.b16 %v1137
        %v1705 = vunpack.c.h.b16 %v1137
        %v1706 = vunpack.c.l.b16 %v1138
        %v1707 = vunpack.c.h.b16 %v1138
        %v1708 = vunpack.c.l.b16 %v1139
        %v1709 = vunpack.c.h.b16 %v1139
        %v1710 = vunpack.c.l.b16 %v1140
        %v1711 = vunpack.c.h.b16 %v1140
        %v1712 = vunpack.c.l.b16 %v1141
        %v1713 = vunpack.c.h.b16 %v1141
        %v1714 = vunpack.c.l.b16 %v1142
        %v1715 = vunpack.c.h.b16 %v1142
        %v1716 = vunpack.c.l.b16 %v1143
        %v1717 = vunpack.c.h.b16 %v1143
        %v1718 = vunpack.c.l.b16 %v1144
        %v1719 = vunpack.c.h.b16 %v1144
        %v1720 = vunpack.c.l.b16 %v1145
        %v1721 = vunpack.c.h.b16 %v1145
        %v1722 = vunpack.c.l.b16 %v1146
        %v1723 = vunpack.c.h.b16 %v1146
        %v1724 = vunpack.c.l.b16 %v1147
        %v1725 = vunpack.c.h.b16 %v1147
        %v1726 = vunpack.c.l.b16 %v1148
        %v1727 = vunpack.c.h.b16 %v1148
        %v1728 = vunpack.c.l.b16 %v1149
        %v1729 = vunpack.c.h.b16 %v1149
        %v1730 = vunpack.c.l.b16 %v1150
        %v1731 = vunpack.c.h.b16 %v1150
        %v1732 = vunpack.c.l.b16 %v1151
        %v1733 = vunpack.c.h.b16 %v1151
        %v1734 = vunpack.c.l.b16 %v1152
        %v1735 = vunpack.c.h.b16 %v1152
        %v1736 = vunpack.c.l.b16 %v1153
        %v1737 = vunpack.c.h.b16 %v1153
        %v1738 = vunpack.c.l.b16 %v1154
        %v1739 = vunpack.c.h.b16 %v1154
        %v1740 = vunpack.c.l.b16 %v1155
        %v1741 = vunpack.c.h.b16 %v1155
        %v1742 = vunpack.c.l.b16 %v1156
        %v1743 = vunpack.c.h.b16 %v1156
        %v1744 = vunpack.c.l.b16 %v1157
        %v1745 = vunpack.c.h.b16 %v1157
        %v1746 = vunpack.c.l.b16 %v1158
        %v1747 = vunpack.c.h.b16 %v1158
        %v1748 = vunpack.c.l.b16 %v1159
        %v1749 = vunpack.c.h.b16 %v1159
        %v1750 = vunpack.c.l.b16 %v1160
        %v1751 = vunpack.c.h.b16 %v1160
        %v1752 = vunpack.c.l.b16 %v1161
        %v1753 = vunpack.c.h.b16 %v1161
        %v1754 = vunpack.c.l.b16 %v1162
        %v1755 = vunpack.c.h.b16 %v1162
        %v1756 = vunpack.c.l.b16 %v1163
        %v1757 = vunpack.c.h.b16 %v1163
        %v1758 = vunpack.c.l.b16 %v1164
        %v1759 = vunpack.c.h.b16 %v1164
        %v1760 = vunpack.c.l.b16 %v1165
        %v1761 = vunpack.c.h.b16 %v1165
        %v1762 = vunpack.c.l.b16 %v1166
        %v1763 = vunpack.c.h.b16 %v1166
        %v1764 = vunpack.c.l.b16 %v1167
        %v1765 = vunpack.c.h.b16 %v1167
        %v1766 = vunpack.c.l.b16 %v1168
        %v1767 = vunpack.c.h.b16 %v1168
        %v1768 = vunpack.c.l.b16 %v1169
        %v1769 = vunpack.c.h.b16 %v1169
        %v1770 = vunpack.c.l.b16 %v1170
        %v1771 = vunpack.c.h.b16 %v1170
        %v1772 = vunpack.c.l.b16 %v1171
        %v1773 = vunpack.c.h.b16 %v1171
        %v1774 = vunpack.c.l.b16 %v1172
        %v1775 = vunpack.c.h.b16 %v1172
        %v1776 = vunpack.c.l.b16 %v1173
        %v1777 = vunpack.c.h.b16 %v1173
        %v1778 = vunpack.c.l.b16 %v1174
        %v1779 = vunpack.c.h.b16 %v1174
        %v1780 = vunpack.c.l.b16 %v1175
        %v1781 = vunpack.c.h.b16 %v1175
        %v1782 = vunpack.c.l.b16 %v1176
        %v1783 = vunpack.c.h.b16 %v1176
        %v1784 = vunpack.c.l.b16 %v1177
        %v1785 = vunpack.c.h.b16 %v1177
        %v1786 = vunpack.c.l.b16 %v1178
        %v1787 = vunpack.c.h.b16 %v1178
        %v1788 = vunpack.c.l.b16 %v1179
        %v1789 = vunpack.c.h.b16 %v1179
        %v1790 = vunpack.c.l.b16 %v1180
        %v1791 = vunpack.c.h.b16 %v1180
        %v1792 = vunpack.c.l.b16 %v1181
        %v1793 = vunpack.c.h.b16 %v1181
        %v1794 = vunpack.c.l.b16 %v1182
        %v1795 = vunpack.c.h.b16 %v1182
        %v1796 = vunpack.c.l.b16 %v1183
        %v1797 = vunpack.c.h.b16 %v1183
        %v1798 = vunpack.c.l.b16 %v1184
        %v1799 = vunpack.c.h.b16 %v1184
        %v1800 = vunpack.c.l.b16 %v1185
        %v1801 = vunpack.c.h.b16 %v1185
        %v1802 = vunpack.c.l.b16 %v1186
        %v1803 = vunpack.c.h.b16 %v1186
        %v1804 = vunpack.c.l.b16 %v1187
        %v1805 = vunpack.c.h.b16 %v1187
        %v1806 = vunpack.c.l.b16 %v1188
        %v1807 = vunpack.c.h.b16 %v1188
        %v1808 = vunpack.c.l.b16 %v1189
        %v1809 = vunpack.c.h.b16 %v1189
        %v1810 = vunpack.c.l.b16 %v1190
        %v1811 = vunpack.c.h.b16 %v1190
        %v1812 = vunpack.c.l.b16 %v1191
        %v1813 = vunpack.c.h.b16 %v1191
        %v1814 = vunpack.c.l.b16 %v1192
        %v1815 = vunpack.c.h.b16 %v1192
        %v1816 = vunpack.c.l.b16 %v1193
        %v1817 = vunpack.c.h.b16 %v1193
        %v1818 = vunpack.c.l.b16 %v1194
        %v1819 = vunpack.c.h.b16 %v1194
        %v1820 = vunpack.c.l.b16 %v1195
        %v1821 = vunpack.c.h.b16 %v1195
        %v1822 = vunpack.c.l.b16 %v1196
        %v1823 = vunpack.c.h.b16 %v1196
        %v1824 = vunpack.c.l.b16 %v1197
        %v1825 = vunpack.c.h.b16 %v1197
        %v1826 = vunpack.c.l.b16 %v1198
        %v1827 = vunpack.c.h.b16 %v1198
        %v1828 = vunpack.c.l.b16 %v1199
        %v1829 = vunpack.c.h.b16 %v1199
        %v1830 = vunpack.c.l.b16 %v1200
        %v1831 = vunpack.c.h.b16 %v1200
        %v1832 = vunpack.c.l.b16 %v1201
        %v1833 = vunpack.c.h.b16 %v1201
        %v1834 = vunpack.c.l.b16 %v1202
        %v1835 = vunpack.c.h.b16 %v1202
        %v1836 = vunpack.c.l.b16 %v1203
        %v1837 = vunpack.c.h.b16 %v1203
        %v1838 = vunpack.c.l.b16 %v1204
        %v1839 = vunpack.c.h.b16 %v1204
        %v1840 = vunpack.c.l.b16 %v1205
        %v1841 = vunpack.c.h.b16 %v1205
        %v1842 = vunpack.c.l.b16 %v1206
        %v1843 = vunpack.c.h.b16 %v1206
        %v1844 = vunpack.c.l.b16 %v1207
        %v1845 = vunpack.c.h.b16 %v1207
        %v1846 = vunpack.c.l.b16 %v1208
        %v1847 = vunpack.c.h.b16 %v1208
        %v1848 = vunpack.c.l.b16 %v1209
        %v1849 = vunpack.c.h.b16 %v1209
        %v1850 = vunpack.c.l.b16 %v1210
        %v1851 = vunpack.c.h.b16 %v1210
        %v1852 = vunpack.c.l.b16 %v1211
        %v1853 = vunpack.c.h.b16 %v1211
        %v1854 = vunpack.c.l.b16 %v1212
        %v1855 = vunpack.c.h.b16 %v1212
        %v1856 = vunpack.c.l.b16 %v1213
        %v1857 = vunpack.c.h.b16 %v1213
        %v1858 = vunpack.c.l.b16 %v1214
        %v1859 = vunpack.c.h.b16 %v1214
        %v1860 = vunpack.c.l.b16 %v1215
        %v1861 = vunpack.c.h.b16 %v1215
        %v1862 = vunpack.c.l.b16 %v1216
        %v1863 = vunpack.c.h.b16 %v1216
        %v1864 = vunpack.c.l.b16 %v1217
        %v1865 = vunpack.c.h.b16 %v1217
        %v1866 = vunpack.c.l.b16 %v1218
        %v1867 = vunpack.c.h.b16 %v1218
        %v1868 = vunpack.c.l.b16 %v1219
        %v1869 = vunpack.c.h.b16 %v1219
        %v1870 = vunpack.c.l.b16 %v1220
        %v1871 = vunpack.c.h.b16 %v1220
        %v1872 = vunpack.c.l.b16 %v1221
        %v1873 = vunpack.c.h.b16 %v1221
        %v1874 = vunpack.c.l.b16 %v1222
        %v1875 = vunpack.c.h.b16 %v1222
        %v1876 = vunpack.c.l.b16 %v1223
        %v1877 = vunpack.c.h.b16 %v1223
        %v1878 = vunpack.c.l.b16 %v1224
        %v1879 = vunpack.c.h.b16 %v1224
        %v1880 = vunpack.c.l.b16 %v1225
        %v1881 = vunpack.c.h.b16 %v1225
        %v1882 = vunpack.c.l.b16 %v1226
        %v1883 = vunpack.c.h.b16 %v1226
        %v1884 = vunpack.c.l.b16 %v1227
        %v1885 = vunpack.c.h.b16 %v1227
        %v1886 = vunpack.c.l.b16 %v1228
        %v1887 = vunpack.c.h.b16 %v1228
        %v1888 = vunpack.c.l.b16 %v1229
        %v1889 = vunpack.c.h.b16 %v1229
        %v1890 = vunpack.c.l.b16 %v1230
        %v1891 = vunpack.c.h.b16 %v1230
        %v1892 = vunpack.c.l.b16 %v1231
        %v1893 = vunpack.c.h.b16 %v1231
        %v1894 = vunpack.c.l.b16 %v1232
        %v1895 = vunpack.c.h.b16 %v1232
        %v1896 = vunpack.c.l.b16 %v1233
        %v1897 = vunpack.c.h.b16 %v1233
        %v1898 = vunpack.c.l.b16 %v1234
        %v1899 = vunpack.c.h.b16 %v1234
        %v1900 = vunpack.c.l.b16 %v1235
        %v1901 = vunpack.c.h.b16 %v1235
        %v1902 = vunpack.c.l.b16 %v1236
        %v1903 = vunpack.c.h.b16 %v1236
        %v1904 = vunpack.c.l.b16 %v1237
        %v1905 = vunpack.c.h.b16 %v1237
        %v1906 = vunpack.c.l.b16 %v1238
        %v1907 = vunpack.c.h.b16 %v1238
        %v1908 = vunpack.c.l.b16 %v1239
        %v1909 = vunpack.c.h.b16 %v1239
        %v1910 = vunpack.c.l.b16 %v1240
        %v1911 = vunpack.c.h.b16 %v1240
        %v1912 = vunpack.c.l.b16 %v1241
        %v1913 = vunpack.c.h.b16 %v1241
        %v1914 = vunpack.c.l.b16 %v1242
        %v1915 = vunpack.c.h.b16 %v1242
        %v1916 = vunpack.c.l.b16 %v1243
        %v1917 = vunpack.c.h.b16 %v1243
        %v1918 = vunpack.c.l.b16 %v1244
        %v1919 = vunpack.c.h.b16 %v1244
        %v1920 = vunpack.c.l.b16 %v1245
        %v1921 = vunpack.c.h.b16 %v1245
        %v1922 = vunpack.c.l.b16 %v1246
        %v1923 = vunpack.c.h.b16 %v1246
        %v1924 = vunpack.c.l.b16 %v1247
        %v1925 = vunpack.c.h.b16 %v1247
        %v1926 = vunpack.c.l.b16 %v1248
        %v1927 = vunpack.c.h.b16 %v1248
        %v1928 = vunpack.c.l.b16 %v1249
        %v1929 = vunpack.c.h.b16 %v1249
        %v1930 = vunpack.c.l.b16 %v1250
        %v1931 = vunpack.c.h.b16 %v1250
        %v1932 = vunpack.c.l.b16 %v1251
        %v1933 = vunpack.c.h.b16 %v1251
        %v1934 = vunpack.c.l.b16 %v1252
        %v1935 = vunpack.c.h.b16 %v1252
        %v1936 = vunpack.c.l.b16 %v1253
        %v1937 = vunpack.c.h.b16 %v1253
        %v1938 = vunpack.c.l.b16 %v1254
        %v1939 = vunpack.c.h.b16 %v1254
        %v1940 = vunpack.c.l.b16 %v1255
        %v1941 = vunpack.c.h.b16 %v1255
        %v1942 = vunpack.c.l.b16 %v1256
        %v1943 = vunpack.c.h.b16 %v1256
        %v1944 = vunpack.c.l.b16 %v1257
        %v1945 = vunpack.c.h.b16 %v1257
        %v1946 = vunpack.c.l.b16 %v1258
        %v1947 = vunpack.c.h.b16 %v1258
        %v1948 = vunpack.c.l.b16 %v1259
        %v1949 = vunpack.c.h.b16 %v1259
        %v1950 = vunpack.c.l.b16 %v1260
        %v1951 = vunpack.c.h.b16 %v1260
        %v1952 = vunpack.c.l.b16 %v1261
        %v1953 = vunpack.c.h.b16 %v1261
        %v1954 = vunpack.c.l.b16 %v1262
        %v1955 = vunpack.c.h.b16 %v1262
        %v1956 = vunpack.c.l.b16 %v1263
        %v1957 = vunpack.c.h.b16 %v1263
        %v1958 = vunpack.c.l.b16 %v1264
        %v1959 = vunpack.c.h.b16 %v1264
        %v1960 = vunpack.c.l.b16 %v1265
        %v1961 = vunpack.c.h.b16 %v1265
        %v1962 = vunpack.c.l.b16 %v1266
        %v1963 = vunpack.c.h.b16 %v1266
        %v1964 = vunpack.c.l.b16 %v1267
        %v1965 = vunpack.c.h.b16 %v1267
        %v1966 = vunpack.c.l.b16 %v1268
        %v1967 = vunpack.c.h.b16 %v1268
        %v1968 = vunpack.c.l.b16 %v1269
        %v1969 = vunpack.c.h.b16 %v1269
        %v1970 = vunpack.c.l.b16 %v1270
        %v1971 = vunpack.c.h.b16 %v1270
        %v1972 = vunpack.c.l.b16 %v1271
        %v1973 = vunpack.c.h.b16 %v1271
        %v1974 = vunpack.c.l.b16 %v1272
        %v1975 = vunpack.c.h.b16 %v1272
        %v1976 = vunpack.c.l.b16 %v1273
        %v1977 = vunpack.c.h.b16 %v1273
        %v1978 = vunpack.c.l.b16 %v1274
        %v1979 = vunpack.c.h.b16 %v1274
        %v1980 = vunpack.c.l.b16 %v1275
        %v1981 = vunpack.c.h.b16 %v1275
        %v1982 = vunpack.c.l.b16 %v1276
        %v1983 = vunpack.c.h.b16 %v1276
        %v1984 = vunpack.c.l.b16 %v1277
        %v1985 = vunpack.c.h.b16 %v1277
        %v1986 = vunpack.c.l.b16 %v1278
        %v1987 = vunpack.c.h.b16 %v1278
        %v1988 = vunpack.c.l.b16 %v1279
        %v1989 = vunpack.c.h.b16 %v1279
        %v1990 = vunpack.c.l.b16 %v1280
        %v1991 = vunpack.c.h.b16 %v1280
        %v1992 = vunpack.c.l.b16 %v1281
        %v1993 = vunpack.c.h.b16 %v1281
        %v1994 = vunpack.c.l.b16 %v1282
        %v1995 = vunpack.c.h.b16 %v1282
        %v1996 = vunpack.c.l.b16 %v1283
        %v1997 = vunpack.c.h.b16 %v1283
        %v1998 = vunpack.c.l.b16 %v1284
        %v1999 = vunpack.c.h.b16 %v1284
        %v2000 = vunpack.c.l.b16 %v1285
        %v2001 = vunpack.c.h.b16 %v1285
        %v2002 = vunpack.c.l.b16 %v1286
        %v2003 = vunpack.c.h.b16 %v1286
        %v2004 = vunpack.c.l.b16 %v1287
        %v2005 = vunpack.c.h.b16 %v1287
        %v2006 = vunpack.c.l.b16 %v1288
        %v2007 = vunpack.c.h.b16 %v1288
        %v2008 = vunpack.c.l.b16 %v1289
        %v2009 = vunpack.c.h.b16 %v1289
        %v2010 = vunpack.c.l.b16 %v1290
        %v2011 = vunpack.c.h.b16 %v1290
        %v2012 = vunpack.c.l.b16 %v1291
        %v2013 = vunpack.c.h.b16 %v1291
        %v2014 = vunpack.c.l.b16 %v1292
        %v2015 = vunpack.c.h.b16 %v1292
        %v2016 = vunpack.c.l.b16 %v1293
        %v2017 = vunpack.c.h.b16 %v1293
        %v2018 = vunpack.c.l.b16 %v1294
        %v2019 = vunpack.c.h.b16 %v1294
        %v2020 = vunpack.c.l.b16 %v1295
        %v2021 = vunpack.c.h.b16 %v1295
        %v2022 = vunpack.c.l.b16 %v1296
        %v2023 = vunpack.c.h.b16 %v1296
        %v2024 = vunpack.c.l.b16 %v1297
        %v2025 = vunpack.c.h.b16 %v1297
        %v2026 = vunpack.c.l.b16 %v1298
        %v2027 = vunpack.c.h.b16 %v1298
        %v2028 = vunpack.c.l.b16 %v1299
        %v2029 = vunpack.c.h.b16 %v1299
        %v2030 = vunpack.c.l.b16 %v1300
        %v2031 = vunpack.c.h.b16 %v1300
        %v2032 = vunpack.c.l.b16 %v1301
        %v2033 = vunpack.c.h.b16 %v1301
        %v2034 = vunpack.c.l.b16 %v1302
        %v2035 = vunpack.c.h.b16 %v1302
        %v2036 = vunpack.c.l.b16 %v1303
        %v2037 = vunpack.c.h.b16 %v1303
        %v2038 = vunpack.c.l.b16 %v1304
        %v2039 = vunpack.c.h.b16 %v1304
        %v2040 = vunpack.c.l.b16 %v1305
        %v2041 = vunpack.c.h.b16 %v1305
        %v2042 = vunpack.c.l.b16 %v1306
        %v2043 = vunpack.c.h.b16 %v1306
        %v2044 = vunpack.c.l.b16 %v1307
        %v2045 = vunpack.c.h.b16 %v1307
        %v2046 = vunpack.c.l.b16 %v1308
        %v2047 = vunpack.c.h.b16 %v1308
        %v2048 = vunpack.c.l.b16 %v1309
        %v2049 = vunpack.c.h.b16 %v1309
        %v2050 = vunpack.c.l.b16 %v1310
        %v2051 = vunpack.c.h.b16 %v1310
        %v2052 = vunpack.c.l.b16 %v1311
        %v2053 = vunpack.c.h.b16 %v1311
        %v2054 = vunpack.c.l.b16 %v1312
        %v2055 = vunpack.c.h.b16 %v1312
        %v2056 = vunpack.c.l.b16 %v1313
        %v2057 = vunpack.c.h.b16 %v1313
        %v2058 = vunpack.c.l.b16 %v1314
        %v2059 = vunpack.c.h.b16 %v1314
        %v2060 = vunpack.c.l.b16 %v1315
        %v2061 = vunpack.c.h.b16 %v1315
        %v2062 = vunpack.c.l.b16 %v1316
        %v2063 = vunpack.c.h.b16 %v1316
        %v2064 = vunpack.c.l.b16 %v1317
        %v2065 = vunpack.c.h.b16 %v1317
        %v2066 = vunpack.c.l.b16 %v1318
        %v2067 = vunpack.c.h.b16 %v1318
        %v2068 = vunpack.c.l.b16 %v1319
        %v2069 = vunpack.c.h.b16 %v1319
        %v2070 = vunpack.c.l.b16 %v1320
        %v2071 = vunpack.c.h.b16 %v1320
        %v2072 = vunpack.c.l.b16 %v1321
        %v2073 = vunpack.c.h.b16 %v1321
        %v2074 = vunpack.c.l.b16 %v1322
        %v2075 = vunpack.c.h.b16 %v1322
        %v2076 = vunpack.c.l.b16 %v1323
        %v2077 = vunpack.c.h.b16 %v1323
        %v2078 = vunpack.c.l.b16 %v1324
        %v2079 = vunpack.c.h.b16 %v1324
        %v2080 = vunpack.c.l.b16 %v1325
        %v2081 = vunpack.c.h.b16 %v1325
        %v2082 = vunpack.c.l.b16 %v1326
        %v2083 = vunpack.c.h.b16 %v1326
        %v2084 = vunpack.c.l.b16 %v1327
        %v2085 = vunpack.c.h.b16 %v1327
        %v2086 = vunpack.c.l.b16 %v1328
        %v2087 = vunpack.c.h.b16 %v1328
        %v2088 = vunpack.c.l.b16 %v1329
        %v2089 = vunpack.c.h.b16 %v1329
        %v2090 = vunpack.c.l.b16 %v1330
        %v2091 = vunpack.c.h.b16 %v1330
        %v2092 = vunpack.c.l.b16 %v1331
        %v2093 = vunpack.c.h.b16 %v1331
        %v2094 = vunpack.c.l.b16 %v1332
        %v2095 = vunpack.c.h.b16 %v1332
        %v2096 = vunpack.c.l.b16 %v1333
        %v2097 = vunpack.c.h.b16 %v1333
        %v2098 = vunpack.c.l.b16 %v1334
        %v2099 = vunpack.c.h.b16 %v1334
        %v2100 = vunpack.c.l.b16 %v1335
        %v2101 = vunpack.c.h.b16 %v1335
        %v2102 = vunpack.c.l.b16 %v1336
        %v2103 = vunpack.c.h.b16 %v1336
        %v2104 = vunpack.c.l.b16 %v1337
        %v2105 = vunpack.c.h.b16 %v1337
        %v2106 = vunpack.c.l.b16 %v1338
        %v2107 = vunpack.c.h.b16 %v1338
        %v2108 = vunpack.c.l.b16 %v1339
        %v2109 = vunpack.c.h.b16 %v1339
        %v2110 = vunpack.c.l.b16 %v1340
        %v2111 = vunpack.c.h.b16 %v1340
        %v2112 = vunpack.c.l.b16 %v1341
        %v2113 = vunpack.c.h.b16 %v1341
        %v2114 = vunpack.c.l.b16 %v1342
        %v2115 = vunpack.c.h.b16 %v1342
        %v2116 = vunpack.c.l.b16 %v1343
        %v2117 = vunpack.c.h.b16 %v1343
        %v2118 = vunpack.c.l.b16 %v1344
        %v2119 = vunpack.c.h.b16 %v1344
        %v2120 = vunpack.c.l.b16 %v1345
        %v2121 = vunpack.c.h.b16 %v1345
        %v2122 = vunpack.c.l.b16 %v1346
        %v2123 = vunpack.c.h.b16 %v1346
        %v2124 = vunpack.c.l.b16 %v1347
        %v2125 = vunpack.c.h.b16 %v1347
        %v2126 = vunpack.c.l.b16 %v1348
        %v2127 = vunpack.c.h.b16 %v1348
        %v2128 = vunpack.c.l.b16 %v1349
        %v2129 = vunpack.c.h.b16 %v1349
        %v2130 = vunpack.c.l.b16 %v1350
        %v2131 = vunpack.c.h.b16 %v1350
        %v2132 = vunpack.c.l.b16 %v1351
        %v2133 = vunpack.c.h.b16 %v1351
        %v2134 = vunpack.c.l.b16 %v1352
        %v2135 = vunpack.c.h.b16 %v1352
        %v2136 = vunpack.c.l.b16 %v1353
        %v2137 = vunpack.c.h.b16 %v1353
        %v2138 = vunpack.c.l.b16 %v1354
        %v2139 = vunpack.c.h.b16 %v1354
        %v2140 = vunpack.c.l.b16 %v1355
        %v2141 = vunpack.c.h.b16 %v1355
        %v2142 = vunpack.c.l.b16 %v1356
        %v2143 = vunpack.c.h.b16 %v1356
        %v2144 = vunpack.c.l.b16 %v1357
        %v2145 = vunpack.c.h.b16 %v1357
        %v2146 = vunpack.c.l.b16 %v1358
        %v2147 = vunpack.c.h.b16 %v1358
        %v2148 = vunpack.c.l.b16 %v1359
        %v2149 = vunpack.c.h.b16 %v1359
        %v2150 = vunpack.c.l.b16 %v1360
        %v2151 = vunpack.c.h.b16 %v1360
        %v2152 = vunpack.c.l.b16 %v1361
        %v2153 = vunpack.c.h.b16 %v1361
        %v2154 = vunpack.c.l.b16 %v1362
        %v2155 = vunpack.c.h.b16 %v1362
        %v2156 = vunpack.c.l.b16 %v1363
        %v2157 = vunpack.c.h.b16 %v1363
        %v2158 = vunpack.c.l.b16 %v1364
        %v2159 = vunpack.c.h.b16 %v1364
        %v2160 = vunpack.c.l.b16 %v1365
        %v2161 = vunpack.c.h.b16 %v1365
        %v2162 = vunpack.c.l.b16 %v1366
        %v2163 = vunpack.c.h.b16 %v1366
        %v2164 = vunpack.c.l.b16 %v1367
        %v2165 = vunpack.c.h.b16 %v1367
        %v2166 = vunpack.c.l.b16 %v1368
        %v2167 = vunpack.c.h.b16 %v1368
        %v2168 = vunpack.c.l.b16 %v1369
        %v2169 = vunpack.c.h.b16 %v1369
        %v2170 = vunpack.c.l.b16 %v1370
        %v2171 = vunpack.c.h.b16 %v1370
        %v2172 = vunpack.c.l.b16 %v1371
        %v2173 = vunpack.c.h.b16 %v1371
        %v2174 = vunpack.c.l.b16 %v1372
        %v2175 = vunpack.c.h.b16 %v1372
        %v2176 = vunpack.c.l.b16 %v1373
        %v2177 = vunpack.c.h.b16 %v1373
        %v2178 = vunpack.c.l.b16 %v1374
        %v2179 = vunpack.c.h.b16 %v1374
        %v2180 = vunpack.c.l.b16 %v1375
        %v2181 = vunpack.c.h.b16 %v1375
        %v2182 = vunpack.c.l.b16 %v1376
        %v2183 = vunpack.c.h.b16 %v1376
        %v2184 = vunpack.c.l.b16 %v1377
        %v2185 = vunpack.c.h.b16 %v1377
        %v2186 = vunpack.c.l.b16 %v1378
        %v2187 = vunpack.c.h.b16 %v1378
        %v2188 = vunpack.c.l.b16 %v1379
        %v2189 = vunpack.c.h.b16 %v1379
        %v2190 = vpack.c.b16 %v1686, %v1678
        %v2191 = vpack.c.b16 %v1687, %v1679
        %v2192 = vpack.c.b16 %v1688, %v1680
        %v2193 = vpack.c.b16 %v1689, %v1681
        %v2194 = vpack.c.b16 %v1690, %v1682
        %v2195 = vpack.c.b16 %v1691, %v1683
        %v2196 = vpack.c.b16 %v1692, %v1684
        %v2197 = vpack.c.b16 %v1693, %v1685
        %v2198 = vpack.c.b16 %v1702, %v1694
        %v2199 = vpack.c.b16 %v1703, %v1695
        %v2200 = vpack.c.b16 %v1704, %v1696
        %v2201 = vpack.c.b16 %v1705, %v1697
        %v2202 = vpack.c.b16 %v1706, %v1698
        %v2203 = vpack.c.b16 %v1707, %v1699
        %v2204 = vpack.c.b16 %v1708, %v1700
        %v2205 = vpack.c.b16 %v1709, %v1701
        %v2206 = vpack.c.b16 %v1718, %v1710
        %v2207 = vpack.c.b16 %v1719, %v1711
        %v2208 = vpack.c.b16 %v1720, %v1712
        %v2209 = vpack.c.b16 %v1721, %v1713
        %v2210 = vpack.c.b16 %v1722, %v1714
        %v2211 = vpack.c.b16 %v1723, %v1715
        %v2212 = vpack.c.b16 %v1724, %v1716
        %v2213 = vpack.c.b16 %v1725, %v1717
        %v2214 = vpack.c.b16 %v1734, %v1726
        %v2215 = vpack.c.b16 %v1735, %v1727
        %v2216 = vpack.c.b16 %v1736, %v1728
        %v2217 = vpack.c.b16 %v1737, %v1729
        %v2218 = vpack.c.b16 %v1738, %v1730
        %v2219 = vpack.c.b16 %v1739, %v1731
        %v2220 = vpack.c.b16 %v1740, %v1732
        %v2221 = vpack.c.b16 %v1741, %v1733
        %v2222 = vpack.c.b16 %v1750, %v1742
        %v2223 = vpack.c.b16 %v1751, %v1743
        %v2224 = vpack.c.b16 %v1752, %v1744
        %v2225 = vpack.c.b16 %v1753, %v1745
        %v2226 = vpack.c.b16 %v1754, %v1746
        %v2227 = vpack.c.b16 %v1755, %v1747
        %v2228 = vpack.c.b16 %v1756, %v1748
        %v2229 = vpack.c.b16 %v1757, %v1749
        %v2230 = vpack.c.b16 %v1766, %v1758
        %v2231 = vpack.c.b16 %v1767, %v1759
        %v2232 = vpack.c.b16 %v1768, %v1760
        %v2233 = vpack.c.b16 %v1769, %v1761
        %v2234 = vpack.c.b16 %v1770, %v1762
        %v2235 = vpack.c.b16 %v1771, %v1763
        %v2236 = vpack.c.b16 %v1772, %v1764
        %v2237 = vpack.c.b16 %v1773, %v1765
        %v2238 = vpack.c.b16 %v1782, %v1774
        %v2239 = vpack.c.b16 %v1783, %v1775
        %v2240 = vpack.c.b16 %v1784, %v1776
        %v2241 = vpack.c.b16 %v1785, %v1777
        %v2242 = vpack.c.b16 %v1786, %v1778
        %v2243 = vpack.c.b16 %v1787, %v1779
        %v2244 = vpack.c.b16 %v1788, %v1780
        %v2245 = vpack.c.b16 %v1789, %v1781
        %v2246 = vpack.c.b16 %v1798, %v1790
        %v2247 = vpack.c.b16 %v1799, %v1791
        %v2248 = vpack.c.b16 %v1800, %v1792
        %v2249 = vpack.c.b16 %v1801, %v1793
        %v2250 = vpack.c.b16 %v1802, %v1794
        %v2251 = vpack.c.b16 %v1803, %v1795
        %v2252 = vpack.c.b16 %v1804, %v1796
        %v2253 = vpack.c.b16 %v1805, %v1797
        %v2254 = vpack.c.b16 %v1814, %v1806
        %v2255 = vpack.c.b16 %v1815, %v1807
        %v2256 = vpack.c.b16 %v1816, %v1808
        %v2257 = vpack.c.b16 %v1817, %v1809
        %v2258 = vpack.c.b16 %v1818, %v1810
        %v2259 = vpack.c.b16 %v1819, %v1811
        %v2260 = vpack.c.b16 %v1820, %v1812
        %v2261 = vpack.c.b16 %v1821, %v1813
        %v2262 = vpack.c.b16 %v1830, %v1822
        %v2263 = vpack.c.b16 %v1831, %v1823
        %v2264 = vpack.c.b16 %v1832, %v1824
        %v2265 = vpack.c.b16 %v1833, %v1825
        %v2266 = vpack.c.b16 %v1834, %v1826
        %v2267 = vpack.c.b16 %v1835, %v1827
        %v2268 = vpack.c.b16 %v1836, %v1828
        %v2269 = vpack.c.b16 %v1837, %v1829
        %v2270 = vpack.c.b16 %v1846, %v1838
        %v2271 = vpack.c.b16 %v1847, %v1839
        %v2272 = vpack.c.b16 %v1848, %v1840
        %v2273 = vpack.c.b16 %v1849, %v1841
        %v2274 = vpack.c.b16 %v1850, %v1842
        %v2275 = vpack.c.b16 %v1851, %v1843
        %v2276 = vpack.c.b16 %v1852, %v1844
        %v2277 = vpack.c.b16 %v1853, %v1845
        %v2278 = vpack.c.b16 %v1862, %v1854
        %v2279 = vpack.c.b16 %v1863, %v1855
        %v2280 = vpack.c.b16 %v1864, %v1856
        %v2281 = vpack.c.b16 %v1865, %v1857
        %v2282 = vpack.c.b16 %v1866, %v1858
        %v2283 = vpack.c.b16 %v1867, %v1859
        %v2284 = vpack.c.b16 %v1868, %v1860
        %v2285 = vpack.c.b16 %v1869, %v1861
        %v2286 = vpack.c.b16 %v1878, %v1870
        %v2287 = vpack.c.b16 %v1879, %v1871
        %v2288 = vpack.c.b16 %v1880, %v1872
        %v2289 = vpack.c.b16 %v1881, %v1873
        %v2290 = vpack.c.b16 %v1882, %v1874
        %v2291 = vpack.c.b16 %v1883, %v1875
        %v2292 = vpack.c.b16 %v1884, %v1876
        %v2293 = vpack.c.b16 %v1885, %v1877
        %v2294 = vpack.c.b16 %v1894, %v1886
        %v2295 = vpack.c.b16 %v1895, %v1887
        %v2296 = vpack.c.b16 %v1896, %v1888
        %v2297 = vpack.c.b16 %v1897, %v1889
        %v2298 = vpack.c.b16 %v1898, %v1890
        %v2299 = vpack.c.b16 %v1899, %v1891
        %v2300 = vpack.c.b16 %v1900, %v1892
        %v2301 = vpack.c.b16 %v1901, %v1893
        %v2302 = vpack.c.b16 %v1910, %v1902
        %v2303 = vpack.c.b16 %v1911, %v1903
        %v2304 = vpack.c.b16 %v1912, %v1904
        %v2305 = vpack.c.b16 %v1913, %v1905
        %v2306 = vpack.c.b16 %v1914, %v1906
        %v2307 = vpack.c.b16 %v1915, %v1907
        %v2308 = vpack.c.b16 %v1916, %v1908
        %v2309 = vpack.c.b16 %v1917, %v1909
        %v2310 = vpack.c.b16 %v1926, %v1918
        %v2311 = vpack.c.b16 %v1927, %v1919
        %v2312 = vpack.c.b16 %v1928, %v1920
        %v2313 = vpack.c.b16 %v1929, %v1921
        %v2314 = vpack.c.b16 %v1930, %v1922
        %v2315 = vpack.c.b16 %v1931, %v1923
        %v2316 = vpack.c.b16 %v1932, %v1924
        %v2317 = vpack.c.b16 %v1933, %v1925
        %v2318 = vpack.c.b16 %v1942, %v1934
        %v2319 = vpack.c.b16 %v1943, %v1935
        %v2320 = vpack.c.b16 %v1944, %v1936
        %v2321 = vpack.c.b16 %v1945, %v1937
        %v2322 = vpack.c.b16 %v1946, %v1938
        %v2323 = vpack.c.b16 %v1947, %v1939
        %v2324 = vpack.c.b16 %v1948, %v1940
        %v2325 = vpack.c.b16 %v1949, %v1941
        %v2326 = vpack.c.b16 %v1958, %v1950
        %v2327 = vpack.c.b16 %v1959, %v1951
        %v2328 = vpack.c.b16 %v1960, %v1952
        %v2329 = vpack.c.b16 %v1961, %v1953
        %v2330 = vpack.c.b16 %v1962, %v1954
        %v2331 = vpack.c.b16 %v1963, %v1955
        %v2332 = vpack.c.b16 %v1964, %v1956
        %v2333 = vpack.c.b16 %v1965, %v1957
        %v2334 = vpack.c.b16 %v1974, %v1966
        %v2335 = vpack.c.b16 %v1975, %v1967
        %v2336 = vpack.c.b16 %v1976, %v1968
        %v2337 = vpack.c.b16 %v1977, %v1969
        %v2338 = vpack.c.b16 %v1978, %v1970
        %v2339 = vpack.c.b16 %v1979, %v1971
        %v2340 = vpack.c.b16 %v1980, %v1972
        %v2341 = vpack.c.b16 %v1981, %v1973
        %v2342 = vpack.c.b16 %v1990, %v1982
        %v2343 = vpack.c.b16 %v1991, %v1983
        %v2344 = vpack.c.b16 %v1992, %v1984
        %v2345 = vpack.c.b16 %v1993, %v1985
        %v2346 = vpack.c.b16 %v1994, %v1986
        %v2347 = vpack.c.b16 %v1995, %v1987
        %v2348 = vpack.c.b16 %v1996, %v1988
        %v2349 = vpack.c.b16 %v1997, %v1989
        %v2350 = vpack.c.b16 %v2006, %v1998
        %v2351 = vpack.c.b16 %v2007, %v1999
        %v2352 = vpack.c.b16 %v2008, %v2000
        %v2353 = vpack.c.b16 %v2009, %v2001
        %v2354 = vpack.c.b16 %v2010, %v2002
        %v2355 = vpack.c.b16 %v2011, %v2003
        %v2356 = vpack.c.b16 %v2012, %v2004
        %v2357 = vpack.c.b16 %v2013, %v2005
        %v2358 = vpack.c.b16 %v2022, %v2014
        %v2359 = vpack.c.b16 %v2023, %v2015
        %v2360 = vpack.c.b16 %v2024, %v2016
        %v2361 = vpack.c.b16 %v2025, %v2017
        %v2362 = vpack.c.b16 %v2026, %v2018
        %v2363 = vpack.c.b16 %v2027, %v2019
        %v2364 = vpack.c.b16 %v2028, %v2020
        %v2365 = vpack.c.b16 %v2029, %v2021
        %v2366 = vpack.c.b16 %v2038, %v2030
        %v2367 = vpack.c.b16 %v2039, %v2031
        %v2368 = vpack.c.b16 %v2040, %v2032
        %v2369 = vpack.c.b16 %v2041, %v2033
        %v2370 = vpack.c.b16 %v2042, %v2034
        %v2371 = vpack.c.b16 %v2043, %v2035
        %v2372 = vpack.c.b16 %v2044, %v2036
        %v2373 = vpack.c.b16 %v2045, %v2037
        %v2374 = vpack.c.b16 %v2054, %v2046
        %v2375 = vpack.c.b16 %v2055, %v2047
        %v2376 = vpack.c.b16 %v2056, %v2048
        %v2377 = vpack.c.b16 %v2057, %v2049
        %v2378 = vpack.c.b16 %v2058, %v2050
        %v2379 = vpack.c.b16 %v2059, %v2051
        %v2380 = vpack.c.b16 %v2060, %v2052
        %v2381 = vpack.c.b16 %v2061, %v2053
        %v2382 = vpack.c.b16 %v2070, %v2062
        %v2383 = vpack.c.b16 %v2071, %v2063
        %v2384 = vpack.c.b16 %v2072, %v2064
        %v2385 = vpack.c.b16 %v2073, %v2065
        %v2386 = vpack.c.b16 %v2074, %v2066
        %v2387 = vpack.c.b16 %v2075, %v2067
        %v2388 = vpack.c.b16 %v2076, %v2068
        %v2389 = vpack.c.b16 %v2077, %v2069
        %v2390 = vpack.c.b16 %v2086, %v2078
        %v2391 = vpack.c.b16 %v2087, %v2079
        %v2392 = vpack.c.b16 %v2088, %v2080
        %v2393 = vpack.c.b16 %v2089, %v2081
        %v2394 = vpack.c.b16 %v2090, %v2082
        %v2395 = vpack.c.b16 %v2091, %v2083
        %v2396 = vpack.c.b16 %v2092, %v2084
        %v2397 = vpack.c.b16 %v2093, %v2085
        %v2398 = vpack.c.b16 %v2102, %v2094
        %v2399 = vpack.c.b16 %v2103, %v2095
        %v2400 = vpack.c.b16 %v2104, %v2096
        %v2401 = vpack.c.b16 %v2105, %v2097
        %v2402 = vpack.c.b16 %v2106, %v2098
        %v2403 = vpack.c.b16 %v2107, %v2099
        %v2404 = vpack.c.b16 %v2108, %v2100
        %v2405 = vpack.c.b16 %v2109, %v2101
        %v2406 = vpack.c.b16 %v2118, %v2110
        %v2407 = vpack.c.b16 %v2119, %v2111
        %v2408 = vpack.c.b16 %v2120, %v2112
        %v2409 = vpack.c.b16 %v2121, %v2113
        %v2410 = vpack.c.b16 %v2122, %v2114
        %v2411 = vpack.c.b16 %v2123, %v2115
        %v2412 = vpack.c.b16 %v2124, %v2116
        %v2413 = vpack.c.b16 %v2125, %v2117
        %v2414 = vpack.c.b16 %v2134, %v2126
        %v2415 = vpack.c.b16 %v2135, %v2127
        %v2416 = vpack.c.b16 %v2136, %v2128
        %v2417 = vpack.c.b16 %v2137, %v2129
        %v2418 = vpack.c.b16 %v2138, %v2130
        %v2419 = vpack.c.b16 %v2139, %v2131
        %v2420 = vpack.c.b16 %v2140, %v2132
        %v2421 = vpack.c.b16 %v2141, %v2133
        %v2422 = vpack.c.b16 %v2150, %v2142
        %v2423 = vpack.c.b16 %v2151, %v2143
        %v2424 = vpack.c.b16 %v2152, %v2144
        %v2425 = vpack.c.b16 %v2153, %v2145
        %v2426 = vpack.c.b16 %v2154, %v2146
        %v2427 = vpack.c.b16 %v2155, %v2147
        %v2428 = vpack.c.b16 %v2156, %v2148
        %v2429 = vpack.c.b16 %v2157, %v2149
        %v2430 = vpack.c.b16 %v2166, %v2158
        %v2431 = vpack.c.b16 %v2167, %v2159
        %v2432 = vpack.c.b16 %v2168, %v2160
        %v2433 = vpack.c.b16 %v2169, %v2161
        %v2434 = vpack.c.b16 %v2170, %v2162
        %v2435 = vpack.c.b16 %v2171, %v2163
        %v2436 = vpack.c.b16 %v2172, %v2164
        %v2437 = vpack.c.b16 %v2173, %v2165
        %v2438 = vpack.c.b16 %v2182, %v2174
        %v2439 = vpack.c.b16 %v2183, %v2175
        %v2440 = vpack.c.b16 %v2184, %v2176
        %v2441 = vpack.c.b16 %v2185, %v2177
        %v2442 = vpack.c.b16 %v2186, %v2178
        %v2443 = vpack.c.b16 %v2187, %v2179
        %v2444 = vpack.c.b16 %v2188, %v2180
        %v2445 = vpack.c.b16 %v2189, %v2181
        %2702 = vmatprep.subr.bf16.mxu0 %v2191
        %2703 = vmatpush1.bf16.msra.mxu0 %v2190
        %2704 = vmatprep.subr.bf16.mxu0 %v2199
        %2705 = vmatpush1.bf16.msra.mxu0 %v2198
        %2706 = vmatprep.subr.bf16.mxu0 %v2207
        %2707 = vmatpush1.bf16.msra.mxu0 %v2206
        %2708 = vmatprep.subr.bf16.mxu0 %v2215
        %2709 = vmatpush1.bf16.msra.mxu0 %v2214
        %2710 = vmatprep.subr.bf16.mxu0 %v2223
        %2711 = vmatpush1.bf16.msra.mxu0 %v2222
        %2712 = vmatprep.subr.bf16.mxu0 %v2231
        %2713 = vmatpush1.bf16.msra.mxu0 %v2230
        %2714 = vmatprep.subr.bf16.mxu0 %v2239
        %2715 = vmatpush1.bf16.msra.mxu0 %v2238
        %2716 = vmatprep.subr.bf16.mxu0 %v2247
        %2717 = vmatpush1.bf16.msra.mxu0 %v2246
        %2718 = vmatprep.subr.bf16.mxu0 %v2255
        %2719 = vmatpush1.bf16.msra.mxu0 %v2254
        %2720 = vmatprep.subr.bf16.mxu0 %v2263
        %2721 = vmatpush1.bf16.msra.mxu0 %v2262
        %2722 = vmatprep.subr.bf16.mxu0 %v2271
        %2723 = vmatpush1.bf16.msra.mxu0 %v2270
        %2724 = vmatprep.subr.bf16.mxu0 %v2279
        %2725 = vmatpush1.bf16.msra.mxu0 %v2278
        %2726 = vmatprep.subr.bf16.mxu0 %v2287
        %2727 = vmatpush1.bf16.msra.mxu0 %v2286
        %2728 = vmatprep.subr.bf16.mxu0 %v2295
        %2729 = vmatpush1.bf16.msra.mxu0 %v2294
        %2730 = vmatprep.subr.bf16.mxu0 %v2303
        %2731 = vmatpush1.bf16.msra.mxu0 %v2302
        %2732 = vmatprep.subr.bf16.mxu0 %v2311
        %2733 = vmatpush1.bf16.msra.mxu0 %v2310
        %2734 = vmatprep.mubr.bf16.mxu0 %v1121
        %2735 = vmatmul.mubr.bf16.gmra.mrb[0].mxu0 %v1120
        %v2736 = vpop.f32.mrb[0].mxu0
        %v2737 = vadd.f32 %v1385, %v2736
        %v2738 = vpop.f32.mrb[0].mxu0
        %v2739 = vadd.f32 %v1389, %v2738
        %v2740 = vpop.f32.mrb[0].mxu0
        %v2741 = vpop.f32.mrb[0].mxu0
        %2742 = vdwg.mxu0
        %2743 = vmatprep.subr.bf16.mxu0 %v2319
        %2744 = vmatpush1.bf16.msra.mxu0 %v2318
        %2745 = vmatprep.subr.bf16.mxu0 %v2327
        %2746 = vmatpush1.bf16.msra.mxu0 %v2326
        %2747 = vmatprep.subr.bf16.mxu0 %v2335
        %2748 = vmatpush1.bf16.msra.mxu0 %v2334
        %2749 = vmatprep.subr.bf16.mxu0 %v2343
        %2750 = vmatpush1.bf16.msra.mxu0 %v2342
        %2751 = vmatprep.subr.bf16.mxu0 %v2351
        %2752 = vmatpush1.bf16.msra.mxu0 %v2350
        %2753 = vmatprep.subr.bf16.mxu0 %v2359
        %2754 = vmatpush1.bf16.msra.mxu0 %v2358
        %2755 = vmatprep.subr.bf16.mxu0 %v2367
        %2756 = vmatpush1.bf16.msra.mxu0 %v2366
        %2757 = vmatprep.subr.bf16.mxu0 %v2375
        %2758 = vmatpush1.bf16.msra.mxu0 %v2374
        %2759 = vmatprep.subr.bf16.mxu0 %v2383
        %2760 = vmatpush1.bf16.msra.mxu0 %v2382
        %2761 = vmatprep.subr.bf16.mxu0 %v2391
        %2762 = vmatpush1.bf16.msra.mxu0 %v2390
        %2763 = vmatprep.subr.bf16.mxu0 %v2399
        %2764 = vmatpush1.bf16.msra.mxu0 %v2398
        %2765 = vmatprep.subr.bf16.mxu0 %v2407
        %2766 = vmatpush1.bf16.msra.mxu0 %v2406
        %2767 = vmatprep.subr.bf16.mxu0 %v2415
        %2768 = vmatpush1.bf16.msra.mxu0 %v2414
        %2769 = vmatprep.subr.bf16.mxu0 %v2423
        %2770 = vmatpush1.bf16.msra.mxu0 %v2422
        %2771 = vmatprep.subr.bf16.mxu0 %v2431
        %2772 = vmatpush1.bf16.msra.mxu0 %v2430
        %2773 = vmatprep.subr.bf16.mxu0 %v2439
        %2774 = vmatpush1.bf16.msra.mxu0 %v2438
        %2775 = vmatprep.mubr.bf16.mxu0 %v1123
        %2776 = vmatmul.mubr.bf16.gmra.mrb[0].mxu0 %v1122
        %v2777 = vpop.f32.mrb[0].mxu0
        %v2778 = vadd.f32 %v2737, %v2777
        %v2779 = vpop.f32.mrb[0].mxu0
        %v2780 = vadd.f32 %v2739, %v2779
        %v2781 = vpop.f32.mrb[0].mxu0
        %v2782 = vpop.f32.mrb[0].mxu0
        %2783 = vdwg.mxu0
        %2784 = vmatprep.subr.bf16.mxu0 %v2193
        %2785 = vmatpush1.bf16.msra.mxu0 %v2192
        %2786 = vmatprep.subr.bf16.mxu0 %v2201
        %2787 = vmatpush1.bf16.msra.mxu0 %v2200
        %2788 = vmatprep.subr.bf16.mxu0 %v2209
        %2789 = vmatpush1.bf16.msra.mxu0 %v2208
        %2790 = vmatprep.subr.bf16.mxu0 %v2217
        %2791 = vmatpush1.bf16.msra.mxu0 %v2216
        %2792 = vmatprep.subr.bf16.mxu0 %v2225
        %2793 = vmatpush1.bf16.msra.mxu0 %v2224
        %2794 = vmatprep.subr.bf16.mxu0 %v2233
        %2795 = vmatpush1.bf16.msra.mxu0 %v2232
        %2796 = vmatprep.subr.bf16.mxu0 %v2241
        %2797 = vmatpush1.bf16.msra.mxu0 %v2240
        %2798 = vmatprep.subr.bf16.mxu0 %v2249
        %2799 = vmatpush1.bf16.msra.mxu0 %v2248
        %2800 = vmatprep.subr.bf16.mxu0 %v2257
        %2801 = vmatpush1.bf16.msra.mxu0 %v2256
        %2802 = vmatprep.subr.bf16.mxu0 %v2265
        %2803 = vmatpush1.bf16.msra.mxu0 %v2264
        %2804 = vmatprep.subr.bf16.mxu0 %v2273
        %2805 = vmatpush1.bf16.msra.mxu0 %v2272
        %2806 = vmatprep.subr.bf16.mxu0 %v2281
        %2807 = vmatpush1.bf16.msra.mxu0 %v2280
        %2808 = vmatprep.subr.bf16.mxu0 %v2289
        %2809 = vmatpush1.bf16.msra.mxu0 %v2288
        %2810 = vmatprep.subr.bf16.mxu0 %v2297
        %2811 = vmatpush1.bf16.msra.mxu0 %v2296
        %2812 = vmatprep.subr.bf16.mxu0 %v2305
        %2813 = vmatpush1.bf16.msra.mxu0 %v2304
        %2814 = vmatprep.subr.bf16.mxu0 %v2313
        %2815 = vmatpush1.bf16.msra.mxu0 %v2312
        %2816 = vmatprep.mubr.bf16.mxu0 %v1121
        %2817 = vmatmul.mubr.bf16.gmra.mrb[0].mxu0 %v1120
        %v2818 = vpop.f32.mrb[0].mxu0
        %v2819 = vadd.f32 %v1393, %v2818
        %v2820 = vpop.f32.mrb[0].mxu0
        %v2821 = vadd.f32 %v1397, %v2820
        %v2822 = vpop.f32.mrb[0].mxu0
        %v2823 = vpop.f32.mrb[0].mxu0
        %2824 = vdwg.mxu0
        %2825 = vmatprep.subr.bf16.mxu0 %v2321
        %2826 = vmatpush1.bf16.msra.mxu0 %v2320
        %2827 = vmatprep.subr.bf16.mxu0 %v2329
        %2828 = vmatpush1.bf16.msra.mxu0 %v2328
        %2829 = vmatprep.subr.bf16.mxu0 %v2337
        %2830 = vmatpush1.bf16.msra.mxu0 %v2336
        %2831 = vmatprep.subr.bf16.mxu0 %v2345
        %2832 = vmatpush1.bf16.msra.mxu0 %v2344
        %2833 = vmatprep.subr.bf16.mxu0 %v2353
        %2834 = vmatpush1.bf16.msra.mxu0 %v2352
        %2835 = vmatprep.subr.bf16.mxu0 %v2361
        %2836 = vmatpush1.bf16.msra.mxu0 %v2360
        %2837 = vmatprep.subr.bf16.mxu0 %v2369
        %2838 = vmatpush1.bf16.msra.mxu0 %v2368
        %2839 = vmatprep.subr.bf16.mxu0 %v2377
        %2840 = vmatpush1.bf16.msra.mxu0 %v2376
        %2841 = vmatprep.subr.bf16.mxu0 %v2385
        %2842 = vmatpush1.bf16.msra.mxu0 %v2384
        %2843 = vmatprep.subr.bf16.mxu0 %v2393
        %2844 = vmatpush1.bf16.msra.mxu0 %v2392
        %2845 = vmatprep.subr.bf16.mxu0 %v2401
        %2846 = vmatpush1.bf16.msra.mxu0 %v2400
        %2847 = vmatprep.subr.bf16.mxu0 %v2409
        %2848 = vmatpush1.bf16.msra.mxu0 %v2408
        %2849 = vmatprep.subr.bf16.mxu0 %v2417
        %2850 = vmatpush1.bf16.msra.mxu0 %v2416
        %2851 = vmatprep.subr.bf16.mxu0 %v2425
        %2852 = vmatpush1.bf16.msra.mxu0 %v2424
        %2853 = vmatprep.subr.bf16.mxu0 %v2433
        %2854 = vmatpush1.bf16.msra.mxu0 %v2432
        %2855 = vmatprep.subr.bf16.mxu0 %v2441
        %2856 = vmatpush1.bf16.msra.mxu0 %v2440
        %2857 = vmatprep.mubr.bf16.mxu0 %v1123
        %2858 = vmatmul.mubr.bf16.gmra.mrb[0].mxu0 %v1122
        %v2859 = vpop.f32.mrb[0].mxu0
        %v2860 = vadd.f32 %v2819, %v2859
        %v2861 = vpop.f32.mrb[0].mxu0
        %v2862 = vadd.f32 %v2821, %v2861
        %v2863 = vpop.f32.mrb[0].mxu0
        %v2864 = vpop.f32.mrb[0].mxu0
        %2865 = vdwg.mxu0
        %2866 = vmatprep.subr.bf16.mxu0 %v2195
        %2867 = vmatpush1.bf16.msra.mxu0 %v2194
        %2868 = vmatprep.subr.bf16.mxu0 %v2203
        %2869 = vmatpush1.bf16.msra.mxu0 %v2202
        %2870 = vmatprep.subr.bf16.mxu0 %v2211
        %2871 = vmatpush1.bf16.msra.mxu0 %v2210
        %2872 = vmatprep.subr.bf16.mxu0 %v2219
        %2873 = vmatpush1.bf16.msra.mxu0 %v2218
        %2874 = vmatprep.subr.bf16.mxu0 %v2227
        %2875 = vmatpush1.bf16.msra.mxu0 %v2226
        %2876 = vmatprep.subr.bf16.mxu0 %v2235
        %2877 = vmatpush1.bf16.msra.mxu0 %v2234
        %2878 = vmatprep.subr.bf16.mxu0 %v2243
        %2879 = vmatpush1.bf16.msra.mxu0 %v2242
        %2880 = vmatprep.subr.bf16.mxu0 %v2251
        %2881 = vmatpush1.bf16.msra.mxu0 %v2250
        %2882 = vmatprep.subr.bf16.mxu0 %v2259
        %2883 = vmatpush1.bf16.msra.mxu0 %v2258
        %2884 = vmatprep.subr.bf16.mxu0 %v2267
        %2885 = vmatpush1.bf16.msra.mxu0 %v2266
        %2886 = vmatprep.subr.bf16.mxu0 %v2275
        %2887 = vmatpush1.bf16.msra.mxu0 %v2274
        %2888 = vmatprep.subr.bf16.mxu0 %v2283
        %2889 = vmatpush1.bf16.msra.mxu0 %v2282
        %2890 = vmatprep.subr.bf16.mxu0 %v2291
        %2891 = vmatpush1.bf16.msra.mxu0 %v2290
        %2892 = vmatprep.subr.bf16.mxu0 %v2299
        %2893 = vmatpush1.bf16.msra.mxu0 %v2298
        %2894 = vmatprep.subr.bf16.mxu0 %v2307
        %2895 = vmatpush1.bf16.msra.mxu0 %v2306
        %2896 = vmatprep.subr.bf16.mxu0 %v2315
        %2897 = vmatpush1.bf16.msra.mxu0 %v2314
        %2898 = vmatprep.mubr.bf16.mxu0 %v1121
        %2899 = vmatmul.mubr.bf16.gmra.mrb[0].mxu0 %v1120
        %v2900 = vpop.f32.mrb[0].mxu0
        %v2901 = vadd.f32 %v1401, %v2900
        %v2902 = vpop.f32.mrb[0].mxu0
        %v2903 = vadd.f32 %v1405, %v2902
        %v2904 = vpop.f32.mrb[0].mxu0
        %v2905 = vpop.f32.mrb[0].mxu0
        %2906 = vdwg.mxu0
        %2907 = vmatprep.subr.bf16.mxu0 %v2323
        %2908 = vmatpush1.bf16.msra.mxu0 %v2322
        %2909 = vmatprep.subr.bf16.mxu0 %v2331
        %2910 = vmatpush1.bf16.msra.mxu0 %v2330
        %2911 = vmatprep.subr.bf16.mxu0 %v2339
        %2912 = vmatpush1.bf16.msra.mxu0 %v2338
        %2913 = vmatprep.subr.bf16.mxu0 %v2347
        %2914 = vmatpush1.bf16.msra.mxu0 %v2346
        %2915 = vmatprep.subr.bf16.mxu0 %v2355
        %2916 = vmatpush1.bf16.msra.mxu0 %v2354
        %2917 = vmatprep.subr.bf16.mxu0 %v2363
        %2918 = vmatpush1.bf16.msra.mxu0 %v2362
        %2919 = vmatprep.subr.bf16.mxu0 %v2371
        %2920 = vmatpush1.bf16.msra.mxu0 %v2370
        %2921 = vmatprep.subr.bf16.mxu0 %v2379
        %2922 = vmatpush1.bf16.msra.mxu0 %v2378
        %2923 = vmatprep.subr.bf16.mxu0 %v2387
        %2924 = vmatpush1.bf16.msra.mxu0 %v2386
        %2925 = vmatprep.subr.bf16.mxu0 %v2395
        %2926 = vmatpush1.bf16.msra.mxu0 %v2394
        %2927 = vmatprep.subr.bf16.mxu0 %v2403
        %2928 = vmatpush1.bf16.msra.mxu0 %v2402
        %2929 = vmatprep.subr.bf16.mxu0 %v2411
        %2930 = vmatpush1.bf16.msra.mxu0 %v2410
        %2931 = vmatprep.subr.bf16.mxu0 %v2419
        %2932 = vmatpush1.bf16.msra.mxu0 %v2418
        %2933 = vmatprep.subr.bf16.mxu0 %v2427
        %2934 = vmatpush1.bf16.msra.mxu0 %v2426
        %2935 = vmatprep.subr.bf16.mxu0 %v2435
        %2936 = vmatpush1.bf16.msra.mxu0 %v2434
        %2937 = vmatprep.subr.bf16.mxu0 %v2443
        %2938 = vmatpush1.bf16.msra.mxu0 %v2442
        %2939 = vmatprep.mubr.bf16.mxu0 %v1123
        %2940 = vmatmul.mubr.bf16.gmra.mrb[0].mxu0 %v1122
        %v2941 = vpop.f32.mrb[0].mxu0
        %v2942 = vadd.f32 %v2901, %v2941
        %v2943 = vpop.f32.mrb[0].mxu0
        %v2944 = vadd.f32 %v2903, %v2943
        %v2945 = vpop.f32.mrb[0].mxu0
        %v2946 = vpop.f32.mrb[0].mxu0
        %2947 = vdwg.mxu0
        %2948 = vmatprep.subr.bf16.mxu0 %v2197
        %2949 = vmatpush1.bf16.msra.mxu0 %v2196
        %2950 = vmatprep.subr.bf16.mxu0 %v2205
        %2951 = vmatpush1.bf16.msra.mxu0 %v2204
        %2952 = vmatprep.subr.bf16.mxu0 %v2213
        %2953 = vmatpush1.bf16.msra.mxu0 %v2212
        %2954 = vmatprep.subr.bf16.mxu0 %v2221
        %2955 = vmatpush1.bf16.msra.mxu0 %v2220
        %2956 = vmatprep.subr.bf16.mxu0 %v2229
        %2957 = vmatpush1.bf16.msra.mxu0 %v2228
        %2958 = vmatprep.subr.bf16.mxu0 %v2237
        %2959 = vmatpush1.bf16.msra.mxu0 %v2236
        %2960 = vmatprep.subr.bf16.mxu0 %v2245
        %2961 = vmatpush1.bf16.msra.mxu0 %v2244
        %2962 = vmatprep.subr.bf16.mxu0 %v2253
        %2963 = vmatpush1.bf16.msra.mxu0 %v2252
        %2964 = vmatprep.subr.bf16.mxu0 %v2261
        %2965 = vmatpush1.bf16.msra.mxu0 %v2260
        %2966 = vmatprep.subr.bf16.mxu0 %v2269
        %2967 = vmatpush1.bf16.msra.mxu0 %v2268
        %2968 = vmatprep.subr.bf16.mxu0 %v2277
        %2969 = vmatpush1.bf16.msra.mxu0 %v2276
        %2970 = vmatprep.subr.bf16.mxu0 %v2285
        %2971 = vmatpush1.bf16.msra.mxu0 %v2284
        %2972 = vmatprep.subr.bf16.mxu0 %v2293
        %2973 = vmatpush1.bf16.msra.mxu0 %v2292
        %2974 = vmatprep.subr.bf16.mxu0 %v2301
        %2975 = vmatpush1.bf16.msra.mxu0 %v2300
        %2976 = vmatprep.subr.bf16.mxu0 %v2309
        %2977 = vmatpush1.bf16.msra.mxu0 %v2308
        %2978 = vmatprep.subr.bf16.mxu0 %v2317
        %2979 = vmatpush1.bf16.msra.mxu0 %v2316
        %2980 = vmatprep.mubr.bf16.mxu0 %v1121
        %2981 = vmatmul.mubr.bf16.gmra.mrb[0].mxu0 %v1120
        %v2982 = vpop.f32.mrb[0].mxu0
        %v2983 = vadd.f32 %v1409, %v2982
        %v2984 = vpop.f32.mrb[0].mxu0
        %v2985 = vadd.f32 %v1413, %v2984
        %v2986 = vpop.f32.mrb[0].mxu0
        %v2987 = vpop.f32.mrb[0].mxu0
        %2988 = vdwg.mxu0
        %2989 = vmatprep.subr.bf16.mxu0 %v2325
        %2990 = vmatpush1.bf16.msra.mxu0 %v2324
        %2991 = vmatprep.subr.bf16.mxu0 %v2333
        %2992 = vmatpush1.bf16.msra.mxu0 %v2332
        %2993 = vmatprep.subr.bf16.mxu0 %v2341
        %2994 = vmatpush1.bf16.msra.mxu0 %v2340
        %2995 = vmatprep.subr.bf16.mxu0 %v2349
        %2996 = vmatpush1.bf16.msra.mxu0 %v2348
        %2997 = vmatprep.subr.bf16.mxu0 %v2357
        %2998 = vmatpush1.bf16.msra.mxu0 %v2356
        %2999 = vmatprep.subr.bf16.mxu0 %v2365
        %3000 = vmatpush1.bf16.msra.mxu0 %v2364
        %3001 = vmatprep.subr.bf16.mxu0 %v2373
        %3002 = vmatpush1.bf16.msra.mxu0 %v2372
        %3003 = vmatprep.subr.bf16.mxu0 %v2381
        %3004 = vmatpush1.bf16.msra.mxu0 %v2380
        %3005 = vmatprep.subr.bf16.mxu0 %v2389
        %3006 = vmatpush1.bf16.msra.mxu0 %v2388
        %3007 = vmatprep.subr.bf16.mxu0 %v2397
        %3008 = vmatpush1.bf16.msra.mxu0 %v2396
        %3009 = vmatprep.subr.bf16.mxu0 %v2405
        %3010 = vmatpush1.bf16.msra.mxu0 %v2404
        %3011 = vmatprep.subr.bf16.mxu0 %v2413
        %3012 = vmatpush1.bf16.msra.mxu0 %v2412
        %3013 = vmatprep.subr.bf16.mxu0 %v2421
        %3014 = vmatpush1.bf16.msra.mxu0 %v2420
        %3015 = vmatprep.subr.bf16.mxu0 %v2429
        %3016 = vmatpush1.bf16.msra.mxu0 %v2428
        %3017 = vmatprep.subr.bf16.mxu0 %v2437
        %3018 = vmatpush1.bf16.msra.mxu0 %v2436
        %3019 = vmatprep.subr.bf16.mxu0 %v2445
        %3020 = vmatpush1.bf16.msra.mxu0 %v2444
        %3021 = vmatprep.mubr.bf16.mxu0 %v1123
        %3022 = vmatmul.mubr.bf16.gmra.mrb[0].mxu0 %v1122
        %v3023 = vpop.f32.mrb[0].mxu0
        %v3024 = vadd.f32 %v2983, %v3023
        %v3025 = vpop.f32.mrb[0].mxu0
        %v3026 = vadd.f32 %v2985, %v3025
        %v3027 = vpop.f32.mrb[0].mxu0
        %v3028 = vpop.f32.mrb[0].mxu0
        %3029 = vdwg.mxu0
        %v3030 = vmax.f32 %v2778, 0.0
        %v3031 = vmax.f32 %v2780, 0.0
        %v3032 = vmax.f32 %v2860, 0.0
        %v3033 = vmax.f32 %v2862, 0.0
        %v3034 = vmax.f32 %v2942, 0.0
        %v3035 = vmax.f32 %v2944, 0.0
        %v3036 = vmax.f32 %v3024, 0.0
        %v3037 = vmax.f32 %v3026, 0.0
        %v3038 = vpack.c.bf16 %v3030, %v3030
        %v3039 = vpack.c.bf16 %v3031, %v3031
        %v3040 = vpack.c.bf16 %v3032, %v3032
        %v3041 = vpack.c.bf16 %v3033, %v3033
        %v3042 = vpack.c.bf16 %v3034, %v3034
        %v3043 = vpack.c.bf16 %v3035, %v3035
        %v3044 = vpack.c.bf16 %v3036, %v3036
        %v3045 = vpack.c.bf16 %v3037, %v3037
        %v3046 = vld [vmem:[#allocation14] sm:$0xff]
        %v3047 = vld [vmem:[#allocation14 + $0x8] sm:$0xff]
        %v3048 = vld [vmem:[#allocation14 + $0x10] sm:$0xff]
        %v3049 = vld [vmem:[#allocation14 + $0x18] sm:$0xff]
        %v3050 = vld [vmem:[#allocation14 + $0x20] sm:$0xff]
        %v3051 = vld [vmem:[#allocation14 + $0x28] sm:$0xff]
        %v3052 = vld [vmem:[#allocation14 + $0x30] sm:$0xff]
        %v3053 = vld [vmem:[#allocation14 + $0x38] sm:$0xff]
        %v3054 = vld [vmem:[#allocation14 + $0x40] sm:$0xff]
        %v3055 = vld [vmem:[#allocation14 + $0x48] sm:$0xff]
        %v3056 = vld [vmem:[#allocation14 + $0x50] sm:$0xff]
        %v3057 = vld [vmem:[#allocation14 + $0x58] sm:$0xff]
        %v3058 = vld [vmem:[#allocation14 + $0x60] sm:$0xff]
        %v3059 = vld [vmem:[#allocation14 + $0x68] sm:$0xff]
        %v3060 = vld [vmem:[#allocation14 + $0x70] sm:$0xff]
        %v3061 = vld [vmem:[#allocation14 + $0x78] sm:$0xff]
        %v3062 = vld [vmem:[#allocation14 + $0x80] sm:$0xff]
        %v3063 = vld [vmem:[#allocation14 + $0x88] sm:$0xff]
        %v3064 = vld [vmem:[#allocation14 + $0x90] sm:$0xff]
        %v3065 = vld [vmem:[#allocation14 + $0x98] sm:$0xff]
        %v3066 = vld [vmem:[#allocation14 + $0xa0] sm:$0xff]
        %v3067 = vld [vmem:[#allocation14 + $0xa8] sm:$0xff]
        %v3068 = vld [vmem:[#allocation14 + $0xb0] sm:$0xff]
        %v3069 = vld [vmem:[#allocation14 + $0xb8] sm:$0xff]
        %v3070 = vld [vmem:[#allocation14 + $0xc0] sm:$0xff]
        %v3071 = vld [vmem:[#allocation14 + $0xc8] sm:$0xff]
        %v3072 = vld [vmem:[#allocation14 + $0xd0] sm:$0xff]
        %v3073 = vld [vmem:[#allocation14 + $0xd8] sm:$0xff]
        %v3074 = vld [vmem:[#allocation14 + $0xe0] sm:$0xff]
        %v3075 = vld [vmem:[#allocation14 + $0xe8] sm:$0xff]
        %v3076 = vld [vmem:[#allocation14 + $0xf0] sm:$0xff]
        %v3077 = vld [vmem:[#allocation14 + $0xf8] sm:$0xff]
        %v3078 = vld [vmem:[#allocation14 + $0x100] sm:$0xff]
        %v3079 = vld [vmem:[#allocation14 + $0x108] sm:$0xff]
        %v3080 = vld [vmem:[#allocation14 + $0x110] sm:$0xff]
        %v3081 = vld [vmem:[#allocation14 + $0x118] sm:$0xff]
        %v3082 = vld [vmem:[#allocation14 + $0x120] sm:$0xff]
        %v3083 = vld [vmem:[#allocation14 + $0x128] sm:$0xff]
        %v3084 = vld [vmem:[#allocation14 + $0x130] sm:$0xff]
        %v3085 = vld [vmem:[#allocation14 + $0x138] sm:$0xff]
        %v3086 = vld [vmem:[#allocation14 + $0x140] sm:$0xff]
        %v3087 = vld [vmem:[#allocation14 + $0x148] sm:$0xff]
        %v3088 = vld [vmem:[#allocation14 + $0x150] sm:$0xff]
        %v3089 = vld [vmem:[#allocation14 + $0x158] sm:$0xff]
        %v3090 = vld [vmem:[#allocation14 + $0x160] sm:$0xff]
        %v3091 = vld [vmem:[#allocation14 + $0x168] sm:$0xff]
        %v3092 = vld [vmem:[#allocation14 + $0x170] sm:$0xff]
        %v3093 = vld [vmem:[#allocation14 + $0x178] sm:$0xff]
        %v3094 = vld [vmem:[#allocation14 + $0x180] sm:$0xff]
        %v3095 = vld [vmem:[#allocation14 + $0x188] sm:$0xff]
        %v3096 = vld [vmem:[#allocation14 + $0x190] sm:$0xff]
        %v3097 = vld [vmem:[#allocation14 + $0x198] sm:$0xff]
        %v3098 = vld [vmem:[#allocation14 + $0x1a0] sm:$0xff]
        %v3099 = vld [vmem:[#allocation14 + $0x1a8] sm:$0xff]
        %v3100 = vld [vmem:[#allocation14 + $0x1b0] sm:$0xff]
        %v3101 = vld [vmem:[#allocation14 + $0x1b8] sm:$0xff]
        %v3102 = vld [vmem:[#allocation14 + $0x1c0] sm:$0xff]
        %v3103 = vld [vmem:[#allocation14 + $0x1c8] sm:$0xff]
        %v3104 = vld [vmem:[#allocation14 + $0x1d0] sm:$0xff]
        %v3105 = vld [vmem:[#allocation14 + $0x1d8] sm:$0xff]
        %v3106 = vld [vmem:[#allocation14 + $0x1e0] sm:$0xff]
        %v3107 = vld [vmem:[#allocation14 + $0x1e8] sm:$0xff]
        %v3108 = vld [vmem:[#allocation14 + $0x1f0] sm:$0xff]
        %v3109 = vld [vmem:[#allocation14 + $0x1f8] sm:$0xff]
        %v3110 = vld [vmem:[#allocation14 + $0x200] sm:$0xff]
        %v3111 = vld [vmem:[#allocation14 + $0x208] sm:$0xff]
        %v3112 = vld [vmem:[#allocation14 + $0x210] sm:$0xff]
        %v3113 = vld [vmem:[#allocation14 + $0x218] sm:$0xff]
        %v3114 = vld [vmem:[#allocation14 + $0x220] sm:$0xff]
        %v3115 = vld [vmem:[#allocation14 + $0x228] sm:$0xff]
        %v3116 = vld [vmem:[#allocation14 + $0x230] sm:$0xff]
        %v3117 = vld [vmem:[#allocation14 + $0x238] sm:$0xff]
        %v3118 = vld [vmem:[#allocation14 + $0x240] sm:$0xff]
        %v3119 = vld [vmem:[#allocation14 + $0x248] sm:$0xff]
        %v3120 = vld [vmem:[#allocation14 + $0x250] sm:$0xff]
        %v3121 = vld [vmem:[#allocation14 + $0x258] sm:$0xff]
        %v3122 = vld [vmem:[#allocation14 + $0x260] sm:$0xff]
        %v3123 = vld [vmem:[#allocation14 + $0x268] sm:$0xff]
        %v3124 = vld [vmem:[#allocation14 + $0x270] sm:$0xff]
        %v3125 = vld [vmem:[#allocation14 + $0x278] sm:$0xff]
        %v3126 = vld [vmem:[#allocation14 + $0x280] sm:$0xff]
        %v3127 = vld [vmem:[#allocation14 + $0x288] sm:$0xff]
        %v3128 = vld [vmem:[#allocation14 + $0x290] sm:$0xff]
        %v3129 = vld [vmem:[#allocation14 + $0x298] sm:$0xff]
        %v3130 = vld [vmem:[#allocation14 + $0x2a0] sm:$0xff]
        %v3131 = vld [vmem:[#allocation14 + $0x2a8] sm:$0xff]
        %v3132 = vld [vmem:[#allocation14 + $0x2b0] sm:$0xff]
        %v3133 = vld [vmem:[#allocation14 + $0x2b8] sm:$0xff]
        %v3134 = vld [vmem:[#allocation14 + $0x2c0] sm:$0xff]
        %v3135 = vld [vmem:[#allocation14 + $0x2c8] sm:$0xff]
        %v3136 = vld [vmem:[#allocation14 + $0x2d0] sm:$0xff]
        %v3137 = vld [vmem:[#allocation14 + $0x2d8] sm:$0xff]
        %v3138 = vld [vmem:[#allocation14 + $0x2e0] sm:$0xff]
        %v3139 = vld [vmem:[#allocation14 + $0x2e8] sm:$0xff]
        %v3140 = vld [vmem:[#allocation14 + $0x2f0] sm:$0xff]
        %v3141 = vld [vmem:[#allocation14 + $0x2f8] sm:$0xff]
        %v3142 = vld [vmem:[#allocation14 + $0x300] sm:$0xff]
        %v3143 = vld [vmem:[#allocation14 + $0x308] sm:$0xff]
        %v3144 = vld [vmem:[#allocation14 + $0x310] sm:$0xff]
        %v3145 = vld [vmem:[#allocation14 + $0x318] sm:$0xff]
        %v3146 = vld [vmem:[#allocation14 + $0x320] sm:$0xff]
        %v3147 = vld [vmem:[#allocation14 + $0x328] sm:$0xff]
        %v3148 = vld [vmem:[#allocation14 + $0x330] sm:$0xff]
        %v3149 = vld [vmem:[#allocation14 + $0x338] sm:$0xff]
        %v3150 = vld [vmem:[#allocation14 + $0x340] sm:$0xff]
        %v3151 = vld [vmem:[#allocation14 + $0x348] sm:$0xff]
        %v3152 = vld [vmem:[#allocation14 + $0x350] sm:$0xff]
        %v3153 = vld [vmem:[#allocation14 + $0x358] sm:$0xff]
        %v3154 = vld [vmem:[#allocation14 + $0x360] sm:$0xff]
        %v3155 = vld [vmem:[#allocation14 + $0x368] sm:$0xff]
        %v3156 = vld [vmem:[#allocation14 + $0x370] sm:$0xff]
        %v3157 = vld [vmem:[#allocation14 + $0x378] sm:$0xff]
        %v3158 = vld [vmem:[#allocation14 + $0x380] sm:$0xff]
        %v3159 = vld [vmem:[#allocation14 + $0x388] sm:$0xff]
        %v3160 = vld [vmem:[#allocation14 + $0x390] sm:$0xff]
        %v3161 = vld [vmem:[#allocation14 + $0x398] sm:$0xff]
        %v3162 = vld [vmem:[#allocation14 + $0x3a0] sm:$0xff]
        %v3163 = vld [vmem:[#allocation14 + $0x3a8] sm:$0xff]
        %v3164 = vld [vmem:[#allocation14 + $0x3b0] sm:$0xff]
        %v3165 = vld [vmem:[#allocation14 + $0x3b8] sm:$0xff]
        %v3166 = vld [vmem:[#allocation14 + $0x3c0] sm:$0xff]
        %v3167 = vld [vmem:[#allocation14 + $0x3c8] sm:$0xff]
        %v3168 = vld [vmem:[#allocation14 + $0x3d0] sm:$0xff]
        %v3169 = vld [vmem:[#allocation14 + $0x3d8] sm:$0xff]
        %v3170 = vld [vmem:[#allocation14 + $0x3e0] sm:$0xff]
        %v3171 = vld [vmem:[#allocation14 + $0x3e8] sm:$0xff]
        %v3172 = vld [vmem:[#allocation14 + $0x3f0] sm:$0xff]
        %v3173 = vld [vmem:[#allocation14 + $0x3f8] sm:$0xff]
        %v3174 = vld [vmem:[#allocation14 + $0x400] sm:$0xff]
        %v3175 = vld [vmem:[#allocation14 + $0x408] sm:$0xff]
        %v3176 = vld [vmem:[#allocation14 + $0x410] sm:$0xff]
        %v3177 = vld [vmem:[#allocation14 + $0x418] sm:$0xff]
        %v3178 = vld [vmem:[#allocation14 + $0x420] sm:$0xff]
        %v3179 = vld [vmem:[#allocation14 + $0x428] sm:$0xff]
        %v3180 = vld [vmem:[#allocation14 + $0x430] sm:$0xff]
        %v3181 = vld [vmem:[#allocation14 + $0x438] sm:$0xff]
        %v3182 = vld [vmem:[#allocation14 + $0x440] sm:$0xff]
        %v3183 = vld [vmem:[#allocation14 + $0x448] sm:$0xff]
        %v3184 = vld [vmem:[#allocation14 + $0x450] sm:$0xff]
        %v3185 = vld [vmem:[#allocation14 + $0x458] sm:$0xff]
        %v3186 = vld [vmem:[#allocation14 + $0x460] sm:$0xff]
        %v3187 = vld [vmem:[#allocation14 + $0x468] sm:$0xff]
        %v3188 = vld [vmem:[#allocation14 + $0x470] sm:$0xff]
        %v3189 = vld [vmem:[#allocation14 + $0x478] sm:$0xff]
        %v3190 = vld [vmem:[#allocation14 + $0x480] sm:$0xff]
        %v3191 = vld [vmem:[#allocation14 + $0x488] sm:$0xff]
        %v3192 = vld [vmem:[#allocation14 + $0x490] sm:$0xff]
        %v3193 = vld [vmem:[#allocation14 + $0x498] sm:$0xff]
        %v3194 = vld [vmem:[#allocation14 + $0x4a0] sm:$0xff]
        %v3195 = vld [vmem:[#allocation14 + $0x4a8] sm:$0xff]
        %v3196 = vld [vmem:[#allocation14 + $0x4b0] sm:$0xff]
        %v3197 = vld [vmem:[#allocation14 + $0x4b8] sm:$0xff]
        %v3198 = vld [vmem:[#allocation14 + $0x4c0] sm:$0xff]
        %v3199 = vld [vmem:[#allocation14 + $0x4c8] sm:$0xff]
        %v3200 = vld [vmem:[#allocation14 + $0x4d0] sm:$0xff]
        %v3201 = vld [vmem:[#allocation14 + $0x4d8] sm:$0xff]
        %v3202 = vld [vmem:[#allocation14 + $0x4e0] sm:$0xff]
        %v3203 = vld [vmem:[#allocation14 + $0x4e8] sm:$0xff]
        %v3204 = vld [vmem:[#allocation14 + $0x4f0] sm:$0xff]
        %v3205 = vld [vmem:[#allocation14 + $0x4f8] sm:$0xff]
        %v3206 = vld [vmem:[#allocation14 + $0x500] sm:$0xff]
        %v3207 = vld [vmem:[#allocation14 + $0x508] sm:$0xff]
        %v3208 = vld [vmem:[#allocation14 + $0x510] sm:$0xff]
        %v3209 = vld [vmem:[#allocation14 + $0x518] sm:$0xff]
        %v3210 = vld [vmem:[#allocation14 + $0x520] sm:$0xff]
        %v3211 = vld [vmem:[#allocation14 + $0x528] sm:$0xff]
        %v3212 = vld [vmem:[#allocation14 + $0x530] sm:$0xff]
        %v3213 = vld [vmem:[#allocation14 + $0x538] sm:$0xff]
        %v3214 = vld [vmem:[#allocation14 + $0x540] sm:$0xff]
        %v3215 = vld [vmem:[#allocation14 + $0x548] sm:$0xff]
        %v3216 = vld [vmem:[#allocation14 + $0x550] sm:$0xff]
        %v3217 = vld [vmem:[#allocation14 + $0x558] sm:$0xff]
        %v3218 = vld [vmem:[#allocation14 + $0x560] sm:$0xff]
        %v3219 = vld [vmem:[#allocation14 + $0x568] sm:$0xff]
        %v3220 = vld [vmem:[#allocation14 + $0x570] sm:$0xff]
        %v3221 = vld [vmem:[#allocation14 + $0x578] sm:$0xff]
        %v3222 = vld [vmem:[#allocation14 + $0x580] sm:$0xff]
        %v3223 = vld [vmem:[#allocation14 + $0x588] sm:$0xff]
        %v3224 = vld [vmem:[#allocation14 + $0x590] sm:$0xff]
        %v3225 = vld [vmem:[#allocation14 + $0x598] sm:$0xff]
        %v3226 = vld [vmem:[#allocation14 + $0x5a0] sm:$0xff]
        %v3227 = vld [vmem:[#allocation14 + $0x5a8] sm:$0xff]
        %v3228 = vld [vmem:[#allocation14 + $0x5b0] sm:$0xff]
        %v3229 = vld [vmem:[#allocation14 + $0x5b8] sm:$0xff]
        %v3230 = vld [vmem:[#allocation14 + $0x5c0] sm:$0xff]
        %v3231 = vld [vmem:[#allocation14 + $0x5c8] sm:$0xff]
        %v3232 = vld [vmem:[#allocation14 + $0x5d0] sm:$0xff]
        %v3233 = vld [vmem:[#allocation14 + $0x5d8] sm:$0xff]
        %v3234 = vld [vmem:[#allocation14 + $0x5e0] sm:$0xff]
        %v3235 = vld [vmem:[#allocation14 + $0x5e8] sm:$0xff]
        %v3236 = vld [vmem:[#allocation14 + $0x5f0] sm:$0xff]
        %v3237 = vld [vmem:[#allocation14 + $0x5f8] sm:$0xff]
        %v3238 = vld [vmem:[#allocation14 + $0x600] sm:$0xff]
        %v3239 = vld [vmem:[#allocation14 + $0x608] sm:$0xff]
        %v3240 = vld [vmem:[#allocation14 + $0x610] sm:$0xff]
        %v3241 = vld [vmem:[#allocation14 + $0x618] sm:$0xff]
        %v3242 = vld [vmem:[#allocation14 + $0x620] sm:$0xff]
        %v3243 = vld [vmem:[#allocation14 + $0x628] sm:$0xff]
        %v3244 = vld [vmem:[#allocation14 + $0x630] sm:$0xff]
        %v3245 = vld [vmem:[#allocation14 + $0x638] sm:$0xff]
        %v3246 = vld [vmem:[#allocation14 + $0x640] sm:$0xff]
        %v3247 = vld [vmem:[#allocation14 + $0x648] sm:$0xff]
        %v3248 = vld [vmem:[#allocation14 + $0x650] sm:$0xff]
        %v3249 = vld [vmem:[#allocation14 + $0x658] sm:$0xff]
        %v3250 = vld [vmem:[#allocation14 + $0x660] sm:$0xff]
        %v3251 = vld [vmem:[#allocation14 + $0x668] sm:$0xff]
        %v3252 = vld [vmem:[#allocation14 + $0x670] sm:$0xff]
        %v3253 = vld [vmem:[#allocation14 + $0x678] sm:$0xff]
        %v3254 = vld [vmem:[#allocation14 + $0x680] sm:$0xff]
        %v3255 = vld [vmem:[#allocation14 + $0x688] sm:$0xff]
        %v3256 = vld [vmem:[#allocation14 + $0x690] sm:$0xff]
        %v3257 = vld [vmem:[#allocation14 + $0x698] sm:$0xff]
        %v3258 = vld [vmem:[#allocation14 + $0x6a0] sm:$0xff]
        %v3259 = vld [vmem:[#allocation14 + $0x6a8] sm:$0xff]
        %v3260 = vld [vmem:[#allocation14 + $0x6b0] sm:$0xff]
        %v3261 = vld [vmem:[#allocation14 + $0x6b8] sm:$0xff]
        %v3262 = vld [vmem:[#allocation14 + $0x6c0] sm:$0xff]
        %v3263 = vld [vmem:[#allocation14 + $0x6c8] sm:$0xff]
        %v3264 = vld [vmem:[#allocation14 + $0x6d0] sm:$0xff]
        %v3265 = vld [vmem:[#allocation14 + $0x6d8] sm:$0xff]
        %v3266 = vld [vmem:[#allocation14 + $0x6e0] sm:$0xff]
        %v3267 = vld [vmem:[#allocation14 + $0x6e8] sm:$0xff]
        %v3268 = vld [vmem:[#allocation14 + $0x6f0] sm:$0xff]
        %v3269 = vld [vmem:[#allocation14 + $0x6f8] sm:$0xff]
        %v3270 = vld [vmem:[#allocation14 + $0x700] sm:$0xff]
        %v3271 = vld [vmem:[#allocation14 + $0x708] sm:$0xff]
        %v3272 = vld [vmem:[#allocation14 + $0x710] sm:$0xff]
        %v3273 = vld [vmem:[#allocation14 + $0x718] sm:$0xff]
        %v3274 = vld [vmem:[#allocation14 + $0x720] sm:$0xff]
        %v3275 = vld [vmem:[#allocation14 + $0x728] sm:$0xff]
        %v3276 = vld [vmem:[#allocation14 + $0x730] sm:$0xff]
        %v3277 = vld [vmem:[#allocation14 + $0x738] sm:$0xff]
        %v3278 = vld [vmem:[#allocation14 + $0x740] sm:$0xff]
        %v3279 = vld [vmem:[#allocation14 + $0x748] sm:$0xff]
        %v3280 = vld [vmem:[#allocation14 + $0x750] sm:$0xff]
        %v3281 = vld [vmem:[#allocation14 + $0x758] sm:$0xff]
        %v3282 = vld [vmem:[#allocation14 + $0x760] sm:$0xff]
        %v3283 = vld [vmem:[#allocation14 + $0x768] sm:$0xff]
        %v3284 = vld [vmem:[#allocation14 + $0x770] sm:$0xff]
        %v3285 = vld [vmem:[#allocation14 + $0x778] sm:$0xff]
        %v3286 = vld [vmem:[#allocation14 + $0x780] sm:$0xff]
        %v3287 = vld [vmem:[#allocation14 + $0x788] sm:$0xff]
        %v3288 = vld [vmem:[#allocation14 + $0x790] sm:$0xff]
        %v3289 = vld [vmem:[#allocation14 + $0x798] sm:$0xff]
        %v3290 = vld [vmem:[#allocation14 + $0x7a0] sm:$0xff]
        %v3291 = vld [vmem:[#allocation14 + $0x7a8] sm:$0xff]
        %v3292 = vld [vmem:[#allocation14 + $0x7b0] sm:$0xff]
        %v3293 = vld [vmem:[#allocation14 + $0x7b8] sm:$0xff]
        %v3294 = vld [vmem:[#allocation14 + $0x7c0] sm:$0xff]
        %v3295 = vld [vmem:[#allocation14 + $0x7c8] sm:$0xff]
        %v3296 = vld [vmem:[#allocation14 + $0x7d0] sm:$0xff]
        %v3297 = vld [vmem:[#allocation14 + $0x7d8] sm:$0xff]
        %v3298 = vld [vmem:[#allocation14 + $0x7e0] sm:$0xff]
        %v3299 = vld [vmem:[#allocation14 + $0x7e8] sm:$0xff]
        %v3300 = vld [vmem:[#allocation14 + $0x7f0] sm:$0xff]
        %v3301 = vld [vmem:[#allocation14 + $0x7f8] sm:$0xff]
        %v3302 = vld [vmem:[#allocation14 + $0x800] sm:$0xff]
        %v3303 = vld [vmem:[#allocation14 + $0x808] sm:$0xff]
        %v3304 = vld [vmem:[#allocation14 + $0x810] sm:$0xff]
        %v3305 = vld [vmem:[#allocation14 + $0x818] sm:$0xff]
        %v3306 = vld [vmem:[#allocation14 + $0x820] sm:$0xff]
        %v3307 = vld [vmem:[#allocation14 + $0x828] sm:$0xff]
        %v3308 = vld [vmem:[#allocation14 + $0x830] sm:$0xff]
        %v3309 = vld [vmem:[#allocation14 + $0x838] sm:$0xff]
        %v3310 = vld [vmem:[#allocation14 + $0x840] sm:$0xff]
        %v3311 = vld [vmem:[#allocation14 + $0x848] sm:$0xff]
        %v3312 = vld [vmem:[#allocation14 + $0x850] sm:$0xff]
        %v3313 = vld [vmem:[#allocation14 + $0x858] sm:$0xff]
        %v3314 = vld [vmem:[#allocation14 + $0x860] sm:$0xff]
        %v3315 = vld [vmem:[#allocation14 + $0x868] sm:$0xff]
        %v3316 = vld [vmem:[#allocation14 + $0x870] sm:$0xff]
        %v3317 = vld [vmem:[#allocation14 + $0x878] sm:$0xff]
        %v3318 = vld [vmem:[#allocation14 + $0x880] sm:$0xff]
        %v3319 = vld [vmem:[#allocation14 + $0x888] sm:$0xff]
        %v3320 = vld [vmem:[#allocation14 + $0x890] sm:$0xff]
        %v3321 = vld [vmem:[#allocation14 + $0x898] sm:$0xff]
        %v3322 = vld [vmem:[#allocation14 + $0x8a0] sm:$0xff]
        %v3323 = vld [vmem:[#allocation14 + $0x8a8] sm:$0xff]
        %v3324 = vld [vmem:[#allocation14 + $0x8b0] sm:$0xff]
        %v3325 = vld [vmem:[#allocation14 + $0x8b8] sm:$0xff]
        %v3326 = vld [vmem:[#allocation14 + $0x8c0] sm:$0xff]
        %v3327 = vld [vmem:[#allocation14 + $0x8c8] sm:$0xff]
        %v3328 = vld [vmem:[#allocation14 + $0x8d0] sm:$0xff]
        %v3329 = vld [vmem:[#allocation14 + $0x8d8] sm:$0xff]
        %v3330 = vld [vmem:[#allocation14 + $0x8e0] sm:$0xff]
        %v3331 = vld [vmem:[#allocation14 + $0x8e8] sm:$0xff]
        %v3332 = vld [vmem:[#allocation14 + $0x8f0] sm:$0xff]
        %v3333 = vld [vmem:[#allocation14 + $0x8f8] sm:$0xff]
        %v3334 = vld [vmem:[#allocation14 + $0x900] sm:$0xff]
        %v3335 = vld [vmem:[#allocation14 + $0x908] sm:$0xff]
        %v3336 = vld [vmem:[#allocation14 + $0x910] sm:$0xff]
        %v3337 = vld [vmem:[#allocation14 + $0x918] sm:$0xff]
        %v3338 = vld [vmem:[#allocation14 + $0x920] sm:$0xff]
        %v3339 = vld [vmem:[#allocation14 + $0x928] sm:$0xff]
        %v3340 = vld [vmem:[#allocation14 + $0x930] sm:$0xff]
        %v3341 = vld [vmem:[#allocation14 + $0x938] sm:$0xff]
        %v3342 = vld [vmem:[#allocation14 + $0x940] sm:$0xff]
        %v3343 = vld [vmem:[#allocation14 + $0x948] sm:$0xff]
        %v3344 = vld [vmem:[#allocation14 + $0x950] sm:$0xff]
        %v3345 = vld [vmem:[#allocation14 + $0x958] sm:$0xff]
        %v3346 = vld [vmem:[#allocation14 + $0x960] sm:$0xff]
        %v3347 = vld [vmem:[#allocation14 + $0x968] sm:$0xff]
        %v3348 = vld [vmem:[#allocation14 + $0x970] sm:$0xff]
        %v3349 = vld [vmem:[#allocation14 + $0x978] sm:$0xff]
        %v3350 = vld [vmem:[#allocation14 + $0x980] sm:$0xff]
        %v3351 = vld [vmem:[#allocation14 + $0x988] sm:$0xff]
        %v3352 = vld [vmem:[#allocation14 + $0x990] sm:$0xff]
        %v3353 = vld [vmem:[#allocation14 + $0x998] sm:$0xff]
        %v3354 = vld [vmem:[#allocation14 + $0x9a0] sm:$0xff]
        %v3355 = vld [vmem:[#allocation14 + $0x9a8] sm:$0xff]
        %v3356 = vld [vmem:[#allocation14 + $0x9b0] sm:$0xff]
        %v3357 = vld [vmem:[#allocation14 + $0x9b8] sm:$0xff]
        %v3358 = vld [vmem:[#allocation14 + $0x9c0] sm:$0xff]
        %v3359 = vld [vmem:[#allocation14 + $0x9c8] sm:$0xff]
        %v3360 = vld [vmem:[#allocation14 + $0x9d0] sm:$0xff]
        %v3361 = vld [vmem:[#allocation14 + $0x9d8] sm:$0xff]
        %v3362 = vld [vmem:[#allocation14 + $0x9e0] sm:$0xff]
        %v3363 = vld [vmem:[#allocation14 + $0x9e8] sm:$0xff]
        %v3364 = vld [vmem:[#allocation14 + $0x9f0] sm:$0xff]
        %v3365 = vld [vmem:[#allocation14 + $0x9f8] sm:$0xff]
        %v3366 = vld [vmem:[#allocation14 + $0xa00] sm:$0xff]
        %v3367 = vld [vmem:[#allocation14 + $0xa08] sm:$0xff]
        %v3368 = vld [vmem:[#allocation14 + $0xa10] sm:$0xff]
        %v3369 = vld [vmem:[#allocation14 + $0xa18] sm:$0xff]
        %v3370 = vld [vmem:[#allocation14 + $0xa20] sm:$0xff]
        %v3371 = vld [vmem:[#allocation14 + $0xa28] sm:$0xff]
        %v3372 = vld [vmem:[#allocation14 + $0xa30] sm:$0xff]
        %v3373 = vld [vmem:[#allocation14 + $0xa38] sm:$0xff]
        %v3374 = vld [vmem:[#allocation14 + $0xa40] sm:$0xff]
        %v3375 = vld [vmem:[#allocation14 + $0xa48] sm:$0xff]
        %v3376 = vld [vmem:[#allocation14 + $0xa50] sm:$0xff]
        %v3377 = vld [vmem:[#allocation14 + $0xa58] sm:$0xff]
        %v3378 = vld [vmem:[#allocation14 + $0xa60] sm:$0xff]
        %v3379 = vld [vmem:[#allocation14 + $0xa68] sm:$0xff]
        %v3380 = vld [vmem:[#allocation14 + $0xa70] sm:$0xff]
        %v3381 = vld [vmem:[#allocation14 + $0xa78] sm:$0xff]
        %v3382 = vld [vmem:[#allocation14 + $0xa80] sm:$0xff]
        %v3383 = vld [vmem:[#allocation14 + $0xa88] sm:$0xff]
        %v3384 = vld [vmem:[#allocation14 + $0xa90] sm:$0xff]
        %v3385 = vld [vmem:[#allocation14 + $0xa98] sm:$0xff]
        %v3386 = vld [vmem:[#allocation14 + $0xaa0] sm:$0xff]
        %v3387 = vld [vmem:[#allocation14 + $0xaa8] sm:$0xff]
        %v3388 = vld [vmem:[#allocation14 + $0xab0] sm:$0xff]
        %v3389 = vld [vmem:[#allocation14 + $0xab8] sm:$0xff]
        %v3390 = vld [vmem:[#allocation14 + $0xac0] sm:$0xff]
        %v3391 = vld [vmem:[#allocation14 + $0xac8] sm:$0xff]
        %v3392 = vld [vmem:[#allocation14 + $0xad0] sm:$0xff]
        %v3393 = vld [vmem:[#allocation14 + $0xad8] sm:$0xff]
        %v3394 = vld [vmem:[#allocation14 + $0xae0] sm:$0xff]
        %v3395 = vld [vmem:[#allocation14 + $0xae8] sm:$0xff]
        %v3396 = vld [vmem:[#allocation14 + $0xaf0] sm:$0xff]
        %v3397 = vld [vmem:[#allocation14 + $0xaf8] sm:$0xff]
        %v3398 = vld [vmem:[#allocation14 + $0xb00] sm:$0xff]
        %v3399 = vld [vmem:[#allocation14 + $0xb08] sm:$0xff]
        %v3400 = vld [vmem:[#allocation14 + $0xb10] sm:$0xff]
        %v3401 = vld [vmem:[#allocation14 + $0xb18] sm:$0xff]
        %v3402 = vld [vmem:[#allocation14 + $0xb20] sm:$0xff]
        %v3403 = vld [vmem:[#allocation14 + $0xb28] sm:$0xff]
        %v3404 = vld [vmem:[#allocation14 + $0xb30] sm:$0xff]
        %v3405 = vld [vmem:[#allocation14 + $0xb38] sm:$0xff]
        %v3406 = vld [vmem:[#allocation14 + $0xb40] sm:$0xff]
        %v3407 = vld [vmem:[#allocation14 + $0xb48] sm:$0xff]
        %v3408 = vld [vmem:[#allocation14 + $0xb50] sm:$0xff]
        %v3409 = vld [vmem:[#allocation14 + $0xb58] sm:$0xff]
        %v3410 = vld [vmem:[#allocation14 + $0xb60] sm:$0xff]
        %v3411 = vld [vmem:[#allocation14 + $0xb68] sm:$0xff]
        %v3412 = vld [vmem:[#allocation14 + $0xb70] sm:$0xff]
        %v3413 = vld [vmem:[#allocation14 + $0xb78] sm:$0xff]
        %v3414 = vld [vmem:[#allocation14 + $0xb80] sm:$0xff]
        %v3415 = vld [vmem:[#allocation14 + $0xb88] sm:$0xff]
        %v3416 = vld [vmem:[#allocation14 + $0xb90] sm:$0xff]
        %v3417 = vld [vmem:[#allocation14 + $0xb98] sm:$0xff]
        %v3418 = vld [vmem:[#allocation14 + $0xba0] sm:$0xff]
        %v3419 = vld [vmem:[#allocation14 + $0xba8] sm:$0xff]
        %v3420 = vld [vmem:[#allocation14 + $0xbb0] sm:$0xff]
        %v3421 = vld [vmem:[#allocation14 + $0xbb8] sm:$0xff]
        %v3422 = vld [vmem:[#allocation14 + $0xbc0] sm:$0xff]
        %v3423 = vld [vmem:[#allocation14 + $0xbc8] sm:$0xff]
        %v3424 = vld [vmem:[#allocation14 + $0xbd0] sm:$0xff]
        %v3425 = vld [vmem:[#allocation14 + $0xbd8] sm:$0xff]
        %v3426 = vld [vmem:[#allocation14 + $0xbe0] sm:$0xff]
        %v3427 = vld [vmem:[#allocation14 + $0xbe8] sm:$0xff]
        %v3428 = vld [vmem:[#allocation14 + $0xbf0] sm:$0xff]
        %v3429 = vld [vmem:[#allocation14 + $0xbf8] sm:$0xff]
        %v3430 = vld [vmem:[#allocation14 + $0xc00] sm:$0xff]
        %v3431 = vld [vmem:[#allocation14 + $0xc08] sm:$0xff]
        %v3432 = vld [vmem:[#allocation14 + $0xc10] sm:$0xff]
        %v3433 = vld [vmem:[#allocation14 + $0xc18] sm:$0xff]
        %v3434 = vld [vmem:[#allocation14 + $0xc20] sm:$0xff]
        %v3435 = vld [vmem:[#allocation14 + $0xc28] sm:$0xff]
        %v3436 = vld [vmem:[#allocation14 + $0xc30] sm:$0xff]
        %v3437 = vld [vmem:[#allocation14 + $0xc38] sm:$0xff]
        %v3438 = vld [vmem:[#allocation14 + $0xc40] sm:$0xff]
        %v3439 = vld [vmem:[#allocation14 + $0xc48] sm:$0xff]
        %v3440 = vld [vmem:[#allocation14 + $0xc50] sm:$0xff]
        %v3441 = vld [vmem:[#allocation14 + $0xc58] sm:$0xff]
        %v3442 = vld [vmem:[#allocation14 + $0xc60] sm:$0xff]
        %v3443 = vld [vmem:[#allocation14 + $0xc68] sm:$0xff]
        %v3444 = vld [vmem:[#allocation14 + $0xc70] sm:$0xff]
        %v3445 = vld [vmem:[#allocation14 + $0xc78] sm:$0xff]
        %v3446 = vld [vmem:[#allocation14 + $0xc80] sm:$0xff]
        %v3447 = vld [vmem:[#allocation14 + $0xc88] sm:$0xff]
        %v3448 = vld [vmem:[#allocation14 + $0xc90] sm:$0xff]
        %v3449 = vld [vmem:[#allocation14 + $0xc98] sm:$0xff]
        %v3450 = vld [vmem:[#allocation14 + $0xca0] sm:$0xff]
        %v3451 = vld [vmem:[#allocation14 + $0xca8] sm:$0xff]
        %v3452 = vld [vmem:[#allocation14 + $0xcb0] sm:$0xff]
        %v3453 = vld [vmem:[#allocation14 + $0xcb8] sm:$0xff]
        %v3454 = vld [vmem:[#allocation14 + $0xcc0] sm:$0xff]
        %v3455 = vld [vmem:[#allocation14 + $0xcc8] sm:$0xff]
        %v3456 = vld [vmem:[#allocation14 + $0xcd0] sm:$0xff]
        %v3457 = vld [vmem:[#allocation14 + $0xcd8] sm:$0xff]
        %v3458 = vld [vmem:[#allocation14 + $0xce0] sm:$0xff]
        %v3459 = vld [vmem:[#allocation14 + $0xce8] sm:$0xff]
        %v3460 = vld [vmem:[#allocation14 + $0xcf0] sm:$0xff]
        %v3461 = vld [vmem:[#allocation14 + $0xcf8] sm:$0xff]
        %v3462 = vld [vmem:[#allocation14 + $0xd00] sm:$0xff]
        %v3463 = vld [vmem:[#allocation14 + $0xd08] sm:$0xff]
        %v3464 = vld [vmem:[#allocation14 + $0xd10] sm:$0xff]
        %v3465 = vld [vmem:[#allocation14 + $0xd18] sm:$0xff]
        %v3466 = vld [vmem:[#allocation14 + $0xd20] sm:$0xff]
        %v3467 = vld [vmem:[#allocation14 + $0xd28] sm:$0xff]
        %v3468 = vld [vmem:[#allocation14 + $0xd30] sm:$0xff]
        %v3469 = vld [vmem:[#allocation14 + $0xd38] sm:$0xff]
        %v3470 = vld [vmem:[#allocation14 + $0xd40] sm:$0xff]
        %v3471 = vld [vmem:[#allocation14 + $0xd48] sm:$0xff]
        %v3472 = vld [vmem:[#allocation14 + $0xd50] sm:$0xff]
        %v3473 = vld [vmem:[#allocation14 + $0xd58] sm:$0xff]
        %v3474 = vld [vmem:[#allocation14 + $0xd60] sm:$0xff]
        %v3475 = vld [vmem:[#allocation14 + $0xd68] sm:$0xff]
        %v3476 = vld [vmem:[#allocation14 + $0xd70] sm:$0xff]
        %v3477 = vld [vmem:[#allocation14 + $0xd78] sm:$0xff]
        %v3478 = vld [vmem:[#allocation14 + $0xd80] sm:$0xff]
        %v3479 = vld [vmem:[#allocation14 + $0xd88] sm:$0xff]
        %v3480 = vld [vmem:[#allocation14 + $0xd90] sm:$0xff]
        %v3481 = vld [vmem:[#allocation14 + $0xd98] sm:$0xff]
        %v3482 = vld [vmem:[#allocation14 + $0xda0] sm:$0xff]
        %v3483 = vld [vmem:[#allocation14 + $0xda8] sm:$0xff]
        %v3484 = vld [vmem:[#allocation14 + $0xdb0] sm:$0xff]
        %v3485 = vld [vmem:[#allocation14 + $0xdb8] sm:$0xff]
        %v3486 = vld [vmem:[#allocation14 + $0xdc0] sm:$0xff]
        %v3487 = vld [vmem:[#allocation14 + $0xdc8] sm:$0xff]
        %v3488 = vld [vmem:[#allocation14 + $0xdd0] sm:$0xff]
        %v3489 = vld [vmem:[#allocation14 + $0xdd8] sm:$0xff]
        %v3490 = vld [vmem:[#allocation14 + $0xde0] sm:$0xff]
        %v3491 = vld [vmem:[#allocation14 + $0xde8] sm:$0xff]
        %v3492 = vld [vmem:[#allocation14 + $0xdf0] sm:$0xff]
        %v3493 = vld [vmem:[#allocation14 + $0xdf8] sm:$0xff]
        %v3494 = vld [vmem:[#allocation14 + $0xe00] sm:$0xff]
        %v3495 = vld [vmem:[#allocation14 + $0xe08] sm:$0xff]
        %v3496 = vld [vmem:[#allocation14 + $0xe10] sm:$0xff]
        %v3497 = vld [vmem:[#allocation14 + $0xe18] sm:$0xff]
        %v3498 = vld [vmem:[#allocation14 + $0xe20] sm:$0xff]
        %v3499 = vld [vmem:[#allocation14 + $0xe28] sm:$0xff]
        %v3500 = vld [vmem:[#allocation14 + $0xe30] sm:$0xff]
        %v3501 = vld [vmem:[#allocation14 + $0xe38] sm:$0xff]
        %v3502 = vld [vmem:[#allocation14 + $0xe40] sm:$0xff]
        %v3503 = vld [vmem:[#allocation14 + $0xe48] sm:$0xff]
        %v3504 = vld [vmem:[#allocation14 + $0xe50] sm:$0xff]
        %v3505 = vld [vmem:[#allocation14 + $0xe58] sm:$0xff]
        %v3506 = vld [vmem:[#allocation14 + $0xe60] sm:$0xff]
        %v3507 = vld [vmem:[#allocation14 + $0xe68] sm:$0xff]
        %v3508 = vld [vmem:[#allocation14 + $0xe70] sm:$0xff]
        %v3509 = vld [vmem:[#allocation14 + $0xe78] sm:$0xff]
        %v3510 = vld [vmem:[#allocation14 + $0xe80] sm:$0xff]
        %v3511 = vld [vmem:[#allocation14 + $0xe88] sm:$0xff]
        %v3512 = vld [vmem:[#allocation14 + $0xe90] sm:$0xff]
        %v3513 = vld [vmem:[#allocation14 + $0xe98] sm:$0xff]
        %v3514 = vld [vmem:[#allocation14 + $0xea0] sm:$0xff]
        %v3515 = vld [vmem:[#allocation14 + $0xea8] sm:$0xff]
        %v3516 = vld [vmem:[#allocation14 + $0xeb0] sm:$0xff]
        %v3517 = vld [vmem:[#allocation14 + $0xeb8] sm:$0xff]
        %v3518 = vld [vmem:[#allocation14 + $0xec0] sm:$0xff]
        %v3519 = vld [vmem:[#allocation14 + $0xec8] sm:$0xff]
        %v3520 = vld [vmem:[#allocation14 + $0xed0] sm:$0xff]
        %v3521 = vld [vmem:[#allocation14 + $0xed8] sm:$0xff]
        %v3522 = vld [vmem:[#allocation14 + $0xee0] sm:$0xff]
        %v3523 = vld [vmem:[#allocation14 + $0xee8] sm:$0xff]
        %v3524 = vld [vmem:[#allocation14 + $0xef0] sm:$0xff]
        %v3525 = vld [vmem:[#allocation14 + $0xef8] sm:$0xff]
        %v3526 = vld [vmem:[#allocation14 + $0xf00] sm:$0xff]
        %v3527 = vld [vmem:[#allocation14 + $0xf08] sm:$0xff]
        %v3528 = vld [vmem:[#allocation14 + $0xf10] sm:$0xff]
        %v3529 = vld [vmem:[#allocation14 + $0xf18] sm:$0xff]
        %v3530 = vld [vmem:[#allocation14 + $0xf20] sm:$0xff]
        %v3531 = vld [vmem:[#allocation14 + $0xf28] sm:$0xff]
        %v3532 = vld [vmem:[#allocation14 + $0xf30] sm:$0xff]
        %v3533 = vld [vmem:[#allocation14 + $0xf38] sm:$0xff]
        %v3534 = vld [vmem:[#allocation14 + $0xf40] sm:$0xff]
        %v3535 = vld [vmem:[#allocation14 + $0xf48] sm:$0xff]
        %v3536 = vld [vmem:[#allocation14 + $0xf50] sm:$0xff]
        %v3537 = vld [vmem:[#allocation14 + $0xf58] sm:$0xff]
        %v3538 = vld [vmem:[#allocation14 + $0xf60] sm:$0xff]
        %v3539 = vld [vmem:[#allocation14 + $0xf68] sm:$0xff]
        %v3540 = vld [vmem:[#allocation14 + $0xf70] sm:$0xff]
        %v3541 = vld [vmem:[#allocation14 + $0xf78] sm:$0xff]
        %v3542 = vld [vmem:[#allocation14 + $0xf80] sm:$0xff]
        %v3543 = vld [vmem:[#allocation14 + $0xf88] sm:$0xff]
        %v3544 = vld [vmem:[#allocation14 + $0xf90] sm:$0xff]
        %v3545 = vld [vmem:[#allocation14 + $0xf98] sm:$0xff]
        %v3546 = vld [vmem:[#allocation14 + $0xfa0] sm:$0xff]
        %v3547 = vld [vmem:[#allocation14 + $0xfa8] sm:$0xff]
        %v3548 = vld [vmem:[#allocation14 + $0xfb0] sm:$0xff]
        %v3549 = vld [vmem:[#allocation14 + $0xfb8] sm:$0xff]
        %v3550 = vld [vmem:[#allocation14 + $0xfc0] sm:$0xff]
        %v3551 = vld [vmem:[#allocation14 + $0xfc8] sm:$0xff]
        %v3552 = vld [vmem:[#allocation14 + $0xfd0] sm:$0xff]
        %v3553 = vld [vmem:[#allocation14 + $0xfd8] sm:$0xff]
        %v3554 = vld [vmem:[#allocation14 + $0xfe0] sm:$0xff]
        %v3555 = vld [vmem:[#allocation14 + $0xfe8] sm:$0xff]
        %v3556 = vld [vmem:[#allocation14 + $0xff0] sm:$0xff]
        %v3557 = vld [vmem:[#allocation14 + $0xff8] sm:$0xff]
        %v3558 = vld [vmem:[#allocation16] sm:$0xff]
        %v3560 = vlaneseq
        %v3561 = vshrl.u32 %v3560, 7
        %v3562 = vsub.s32 0, %v3561
        %v3563 = vrot.slane %v3558, %v3562
        %v3564 = vlaneseq
        %v3565 = vshrl.u32 %v3564, 7
        %v3566 = vsub.s32 1, %v3565
        %v3567 = vrot.slane %v3558, %v3566
        %v3568 = vlaneseq
        %v3569 = vshrl.u32 %v3568, 7
        %v3570 = vsub.s32 2, %v3569
        %v3571 = vrot.slane %v3558, %v3570
        %v3572 = vlaneseq
        %v3573 = vshrl.u32 %v3572, 7
        %v3574 = vsub.s32 3, %v3573
        %v3575 = vrot.slane %v3558, %v3574
        %v3576 = vlaneseq
        %v3577 = vshrl.u32 %v3576, 7
        %v3578 = vsub.s32 4, %v3577
        %v3579 = vrot.slane %v3558, %v3578
        %v3580 = vlaneseq
        %v3581 = vshrl.u32 %v3580, 7
        %v3582 = vsub.s32 5, %v3581
        %v3583 = vrot.slane %v3558, %v3582
        %v3584 = vlaneseq
        %v3585 = vshrl.u32 %v3584, 7
        %v3586 = vsub.s32 6, %v3585
        %v3587 = vrot.slane %v3558, %v3586
        %v3588 = vlaneseq
        %v3589 = vshrl.u32 %v3588, 7
        %v3590 = vsub.s32 7, %v3589
        %v3591 = vrot.slane %v3558, %v3590
        %v4112 = vunpack.c.l.b16 %v3046
        %v4113 = vunpack.c.h.b16 %v3046
        %v4114 = vunpack.c.l.b16 %v3047
        %v4115 = vunpack.c.h.b16 %v3047
        %v4116 = vunpack.c.l.b16 %v3048
        %v4117 = vunpack.c.h.b16 %v3048
        %v4118 = vunpack.c.l.b16 %v3049
        %v4119 = vunpack.c.h.b16 %v3049
        %v4120 = vunpack.c.l.b16 %v3050
        %v4121 = vunpack.c.h.b16 %v3050
        %v4122 = vunpack.c.l.b16 %v3051
        %v4123 = vunpack.c.h.b16 %v3051
        %v4124 = vunpack.c.l.b16 %v3052
        %v4125 = vunpack.c.h.b16 %v3052
        %v4126 = vunpack.c.l.b16 %v3053
        %v4127 = vunpack.c.h.b16 %v3053
        %v4128 = vunpack.c.l.b16 %v3054
        %v4129 = vunpack.c.h.b16 %v3054
        %v4130 = vunpack.c.l.b16 %v3055
        %v4131 = vunpack.c.h.b16 %v3055
        %v4132 = vunpack.c.l.b16 %v3056
        %v4133 = vunpack.c.h.b16 %v3056
        %v4134 = vunpack.c.l.b16 %v3057
        %v4135 = vunpack.c.h.b16 %v3057
        %v4136 = vunpack.c.l.b16 %v3058
        %v4137 = vunpack.c.h.b16 %v3058
        %v4138 = vunpack.c.l.b16 %v3059
        %v4139 = vunpack.c.h.b16 %v3059
        %v4140 = vunpack.c.l.b16 %v3060
        %v4141 = vunpack.c.h.b16 %v3060
        %v4142 = vunpack.c.l.b16 %v3061
        %v4143 = vunpack.c.h.b16 %v3061
        %v4144 = vunpack.c.l.b16 %v3062
        %v4145 = vunpack.c.h.b16 %v3062
        %v4146 = vunpack.c.l.b16 %v3063
        %v4147 = vunpack.c.h.b16 %v3063
        %v4148 = vunpack.c.l.b16 %v3064
        %v4149 = vunpack.c.h.b16 %v3064
        %v4150 = vunpack.c.l.b16 %v3065
        %v4151 = vunpack.c.h.b16 %v3065
        %v4152 = vunpack.c.l.b16 %v3066
        %v4153 = vunpack.c.h.b16 %v3066
        %v4154 = vunpack.c.l.b16 %v3067
        %v4155 = vunpack.c.h.b16 %v3067
        %v4156 = vunpack.c.l.b16 %v3068
        %v4157 = vunpack.c.h.b16 %v3068
        %v4158 = vunpack.c.l.b16 %v3069
        %v4159 = vunpack.c.h.b16 %v3069
        %v4160 = vunpack.c.l.b16 %v3070
        %v4161 = vunpack.c.h.b16 %v3070
        %v4162 = vunpack.c.l.b16 %v3071
        %v4163 = vunpack.c.h.b16 %v3071
        %v4164 = vunpack.c.l.b16 %v3072
        %v4165 = vunpack.c.h.b16 %v3072
        %v4166 = vunpack.c.l.b16 %v3073
        %v4167 = vunpack.c.h.b16 %v3073
        %v4168 = vunpack.c.l.b16 %v3074
        %v4169 = vunpack.c.h.b16 %v3074
        %v4170 = vunpack.c.l.b16 %v3075
        %v4171 = vunpack.c.h.b16 %v3075
        %v4172 = vunpack.c.l.b16 %v3076
        %v4173 = vunpack.c.h.b16 %v3076
        %v4174 = vunpack.c.l.b16 %v3077
        %v4175 = vunpack.c.h.b16 %v3077
        %v4176 = vunpack.c.l.b16 %v3078
        %v4177 = vunpack.c.h.b16 %v3078
        %v4178 = vunpack.c.l.b16 %v3079
        %v4179 = vunpack.c.h.b16 %v3079
        %v4180 = vunpack.c.l.b16 %v3080
        %v4181 = vunpack.c.h.b16 %v3080
        %v4182 = vunpack.c.l.b16 %v3081
        %v4183 = vunpack.c.h.b16 %v3081
        %v4184 = vunpack.c.l.b16 %v3082
        %v4185 = vunpack.c.h.b16 %v3082
        %v4186 = vunpack.c.l.b16 %v3083
        %v4187 = vunpack.c.h.b16 %v3083
        %v4188 = vunpack.c.l.b16 %v3084
        %v4189 = vunpack.c.h.b16 %v3084
        %v4190 = vunpack.c.l.b16 %v3085
        %v4191 = vunpack.c.h.b16 %v3085
        %v4192 = vunpack.c.l.b16 %v3086
        %v4193 = vunpack.c.h.b16 %v3086
        %v4194 = vunpack.c.l.b16 %v3087
        %v4195 = vunpack.c.h.b16 %v3087
        %v4196 = vunpack.c.l.b16 %v3088
        %v4197 = vunpack.c.h.b16 %v3088
        %v4198 = vunpack.c.l.b16 %v3089
        %v4199 = vunpack.c.h.b16 %v3089
        %v4200 = vunpack.c.l.b16 %v3090
        %v4201 = vunpack.c.h.b16 %v3090
        %v4202 = vunpack.c.l.b16 %v3091
        %v4203 = vunpack.c.h.b16 %v3091
        %v4204 = vunpack.c.l.b16 %v3092
        %v4205 = vunpack.c.h.b16 %v3092
        %v4206 = vunpack.c.l.b16 %v3093
        %v4207 = vunpack.c.h.b16 %v3093
        %v4208 = vunpack.c.l.b16 %v3094
        %v4209 = vunpack.c.h.b16 %v3094
        %v4210 = vunpack.c.l.b16 %v3095
        %v4211 = vunpack.c.h.b16 %v3095
        %v4212 = vunpack.c.l.b16 %v3096
        %v4213 = vunpack.c.h.b16 %v3096
        %v4214 = vunpack.c.l.b16 %v3097
        %v4215 = vunpack.c.h.b16 %v3097
        %v4216 = vunpack.c.l.b16 %v3098
        %v4217 = vunpack.c.h.b16 %v3098
        %v4218 = vunpack.c.l.b16 %v3099
        %v4219 = vunpack.c.h.b16 %v3099
        %v4220 = vunpack.c.l.b16 %v3100
        %v4221 = vunpack.c.h.b16 %v3100
        %v4222 = vunpack.c.l.b16 %v3101
        %v4223 = vunpack.c.h.b16 %v3101
        %v4224 = vunpack.c.l.b16 %v3102
        %v4225 = vunpack.c.h.b16 %v3102
        %v4226 = vunpack.c.l.b16 %v3103
        %v4227 = vunpack.c.h.b16 %v3103
        %v4228 = vunpack.c.l.b16 %v3104
        %v4229 = vunpack.c.h.b16 %v3104
        %v4230 = vunpack.c.l.b16 %v3105
        %v4231 = vunpack.c.h.b16 %v3105
        %v4232 = vunpack.c.l.b16 %v3106
        %v4233 = vunpack.c.h.b16 %v3106
        %v4234 = vunpack.c.l.b16 %v3107
        %v4235 = vunpack.c.h.b16 %v3107
        %v4236 = vunpack.c.l.b16 %v3108
        %v4237 = vunpack.c.h.b16 %v3108
        %v4238 = vunpack.c.l.b16 %v3109
        %v4239 = vunpack.c.h.b16 %v3109
        %v4240 = vunpack.c.l.b16 %v3110
        %v4241 = vunpack.c.h.b16 %v3110
        %v4242 = vunpack.c.l.b16 %v3111
        %v4243 = vunpack.c.h.b16 %v3111
        %v4244 = vunpack.c.l.b16 %v3112
        %v4245 = vunpack.c.h.b16 %v3112
        %v4246 = vunpack.c.l.b16 %v3113
        %v4247 = vunpack.c.h.b16 %v3113
        %v4248 = vunpack.c.l.b16 %v3114
        %v4249 = vunpack.c.h.b16 %v3114
        %v4250 = vunpack.c.l.b16 %v3115
        %v4251 = vunpack.c.h.b16 %v3115
        %v4252 = vunpack.c.l.b16 %v3116
        %v4253 = vunpack.c.h.b16 %v3116
        %v4254 = vunpack.c.l.b16 %v3117
        %v4255 = vunpack.c.h.b16 %v3117
        %v4256 = vunpack.c.l.b16 %v3118
        %v4257 = vunpack.c.h.b16 %v3118
        %v4258 = vunpack.c.l.b16 %v3119
        %v4259 = vunpack.c.h.b16 %v3119
        %v4260 = vunpack.c.l.b16 %v3120
        %v4261 = vunpack.c.h.b16 %v3120
        %v4262 = vunpack.c.l.b16 %v3121
        %v4263 = vunpack.c.h.b16 %v3121
        %v4264 = vunpack.c.l.b16 %v3122
        %v4265 = vunpack.c.h.b16 %v3122
        %v4266 = vunpack.c.l.b16 %v3123
        %v4267 = vunpack.c.h.b16 %v3123
        %v4268 = vunpack.c.l.b16 %v3124
        %v4269 = vunpack.c.h.b16 %v3124
        %v4270 = vunpack.c.l.b16 %v3125
        %v4271 = vunpack.c.h.b16 %v3125
        %v4272 = vunpack.c.l.b16 %v3126
        %v4273 = vunpack.c.h.b16 %v3126
        %v4274 = vunpack.c.l.b16 %v3127
        %v4275 = vunpack.c.h.b16 %v3127
        %v4276 = vunpack.c.l.b16 %v3128
        %v4277 = vunpack.c.h.b16 %v3128
        %v4278 = vunpack.c.l.b16 %v3129
        %v4279 = vunpack.c.h.b16 %v3129
        %v4280 = vunpack.c.l.b16 %v3130
        %v4281 = vunpack.c.h.b16 %v3130
        %v4282 = vunpack.c.l.b16 %v3131
        %v4283 = vunpack.c.h.b16 %v3131
        %v4284 = vunpack.c.l.b16 %v3132
        %v4285 = vunpack.c.h.b16 %v3132
        %v4286 = vunpack.c.l.b16 %v3133
        %v4287 = vunpack.c.h.b16 %v3133
        %v4288 = vunpack.c.l.b16 %v3134
        %v4289 = vunpack.c.h.b16 %v3134
        %v4290 = vunpack.c.l.b16 %v3135
        %v4291 = vunpack.c.h.b16 %v3135
        %v4292 = vunpack.c.l.b16 %v3136
        %v4293 = vunpack.c.h.b16 %v3136
        %v4294 = vunpack.c.l.b16 %v3137
        %v4295 = vunpack.c.h.b16 %v3137
        %v4296 = vunpack.c.l.b16 %v3138
        %v4297 = vunpack.c.h.b16 %v3138
        %v4298 = vunpack.c.l.b16 %v3139
        %v4299 = vunpack.c.h.b16 %v3139
        %v4300 = vunpack.c.l.b16 %v3140
        %v4301 = vunpack.c.h.b16 %v3140
        %v4302 = vunpack.c.l.b16 %v3141
        %v4303 = vunpack.c.h.b16 %v3141
        %v4304 = vunpack.c.l.b16 %v3142
        %v4305 = vunpack.c.h.b16 %v3142
        %v4306 = vunpack.c.l.b16 %v3143
        %v4307 = vunpack.c.h.b16 %v3143
        %v4308 = vunpack.c.l.b16 %v3144
        %v4309 = vunpack.c.h.b16 %v3144
        %v4310 = vunpack.c.l.b16 %v3145
        %v4311 = vunpack.c.h.b16 %v3145
        %v4312 = vunpack.c.l.b16 %v3146
        %v4313 = vunpack.c.h.b16 %v3146
        %v4314 = vunpack.c.l.b16 %v3147
        %v4315 = vunpack.c.h.b16 %v3147
        %v4316 = vunpack.c.l.b16 %v3148
        %v4317 = vunpack.c.h.b16 %v3148
        %v4318 = vunpack.c.l.b16 %v3149
        %v4319 = vunpack.c.h.b16 %v3149
        %v4320 = vunpack.c.l.b16 %v3150
        %v4321 = vunpack.c.h.b16 %v3150
        %v4322 = vunpack.c.l.b16 %v3151
        %v4323 = vunpack.c.h.b16 %v3151
        %v4324 = vunpack.c.l.b16 %v3152
        %v4325 = vunpack.c.h.b16 %v3152
        %v4326 = vunpack.c.l.b16 %v3153
        %v4327 = vunpack.c.h.b16 %v3153
        %v4328 = vunpack.c.l.b16 %v3154
        %v4329 = vunpack.c.h.b16 %v3154
        %v4330 = vunpack.c.l.b16 %v3155
        %v4331 = vunpack.c.h.b16 %v3155
        %v4332 = vunpack.c.l.b16 %v3156
        %v4333 = vunpack.c.h.b16 %v3156
        %v4334 = vunpack.c.l.b16 %v3157
        %v4335 = vunpack.c.h.b16 %v3157
        %v4336 = vunpack.c.l.b16 %v3158
        %v4337 = vunpack.c.h.b16 %v3158
        %v4338 = vunpack.c.l.b16 %v3159
        %v4339 = vunpack.c.h.b16 %v3159
        %v4340 = vunpack.c.l.b16 %v3160
        %v4341 = vunpack.c.h.b16 %v3160
        %v4342 = vunpack.c.l.b16 %v3161
        %v4343 = vunpack.c.h.b16 %v3161
        %v4344 = vunpack.c.l.b16 %v3162
        %v4345 = vunpack.c.h.b16 %v3162
        %v4346 = vunpack.c.l.b16 %v3163
        %v4347 = vunpack.c.h.b16 %v3163
        %v4348 = vunpack.c.l.b16 %v3164
        %v4349 = vunpack.c.h.b16 %v3164
        %v4350 = vunpack.c.l.b16 %v3165
        %v4351 = vunpack.c.h.b16 %v3165
        %v4352 = vunpack.c.l.b16 %v3166
        %v4353 = vunpack.c.h.b16 %v3166
        %v4354 = vunpack.c.l.b16 %v3167
        %v4355 = vunpack.c.h.b16 %v3167
        %v4356 = vunpack.c.l.b16 %v3168
        %v4357 = vunpack.c.h.b16 %v3168
        %v4358 = vunpack.c.l.b16 %v3169
        %v4359 = vunpack.c.h.b16 %v3169
        %v4360 = vunpack.c.l.b16 %v3170
        %v4361 = vunpack.c.h.b16 %v3170
        %v4362 = vunpack.c.l.b16 %v3171
        %v4363 = vunpack.c.h.b16 %v3171
        %v4364 = vunpack.c.l.b16 %v3172
        %v4365 = vunpack.c.h.b16 %v3172
        %v4366 = vunpack.c.l.b16 %v3173
        %v4367 = vunpack.c.h.b16 %v3173
        %v4368 = vunpack.c.l.b16 %v3174
        %v4369 = vunpack.c.h.b16 %v3174
        %v4370 = vunpack.c.l.b16 %v3175
        %v4371 = vunpack.c.h.b16 %v3175
        %v4372 = vunpack.c.l.b16 %v3176
        %v4373 = vunpack.c.h.b16 %v3176
        %v4374 = vunpack.c.l.b16 %v3177
        %v4375 = vunpack.c.h.b16 %v3177
        %v4376 = vunpack.c.l.b16 %v3178
        %v4377 = vunpack.c.h.b16 %v3178
        %v4378 = vunpack.c.l.b16 %v3179
        %v4379 = vunpack.c.h.b16 %v3179
        %v4380 = vunpack.c.l.b16 %v3180
        %v4381 = vunpack.c.h.b16 %v3180
        %v4382 = vunpack.c.l.b16 %v3181
        %v4383 = vunpack.c.h.b16 %v3181
        %v4384 = vunpack.c.l.b16 %v3182
        %v4385 = vunpack.c.h.b16 %v3182
        %v4386 = vunpack.c.l.b16 %v3183
        %v4387 = vunpack.c.h.b16 %v3183
        %v4388 = vunpack.c.l.b16 %v3184
        %v4389 = vunpack.c.h.b16 %v3184
        %v4390 = vunpack.c.l.b16 %v3185
        %v4391 = vunpack.c.h.b16 %v3185
        %v4392 = vunpack.c.l.b16 %v3186
        %v4393 = vunpack.c.h.b16 %v3186
        %v4394 = vunpack.c.l.b16 %v3187
        %v4395 = vunpack.c.h.b16 %v3187
        %v4396 = vunpack.c.l.b16 %v3188
        %v4397 = vunpack.c.h.b16 %v3188
        %v4398 = vunpack.c.l.b16 %v3189
        %v4399 = vunpack.c.h.b16 %v3189
        %v4400 = vunpack.c.l.b16 %v3190
        %v4401 = vunpack.c.h.b16 %v3190
        %v4402 = vunpack.c.l.b16 %v3191
        %v4403 = vunpack.c.h.b16 %v3191
        %v4404 = vunpack.c.l.b16 %v3192
        %v4405 = vunpack.c.h.b16 %v3192
        %v4406 = vunpack.c.l.b16 %v3193
        %v4407 = vunpack.c.h.b16 %v3193
        %v4408 = vunpack.c.l.b16 %v3194
        %v4409 = vunpack.c.h.b16 %v3194
        %v4410 = vunpack.c.l.b16 %v3195
        %v4411 = vunpack.c.h.b16 %v3195
        %v4412 = vunpack.c.l.b16 %v3196
        %v4413 = vunpack.c.h.b16 %v3196
        %v4414 = vunpack.c.l.b16 %v3197
        %v4415 = vunpack.c.h.b16 %v3197
        %v4416 = vunpack.c.l.b16 %v3198
        %v4417 = vunpack.c.h.b16 %v3198
        %v4418 = vunpack.c.l.b16 %v3199
        %v4419 = vunpack.c.h.b16 %v3199
        %v4420 = vunpack.c.l.b16 %v3200
        %v4421 = vunpack.c.h.b16 %v3200
        %v4422 = vunpack.c.l.b16 %v3201
        %v4423 = vunpack.c.h.b16 %v3201
        %v4424 = vunpack.c.l.b16 %v3202
        %v4425 = vunpack.c.h.b16 %v3202
        %v4426 = vunpack.c.l.b16 %v3203
        %v4427 = vunpack.c.h.b16 %v3203
        %v4428 = vunpack.c.l.b16 %v3204
        %v4429 = vunpack.c.h.b16 %v3204
        %v4430 = vunpack.c.l.b16 %v3205
        %v4431 = vunpack.c.h.b16 %v3205
        %v4432 = vunpack.c.l.b16 %v3206
        %v4433 = vunpack.c.h.b16 %v3206
        %v4434 = vunpack.c.l.b16 %v3207
        %v4435 = vunpack.c.h.b16 %v3207
        %v4436 = vunpack.c.l.b16 %v3208
        %v4437 = vunpack.c.h.b16 %v3208
        %v4438 = vunpack.c.l.b16 %v3209
        %v4439 = vunpack.c.h.b16 %v3209
        %v4440 = vunpack.c.l.b16 %v3210
        %v4441 = vunpack.c.h.b16 %v3210
        %v4442 = vunpack.c.l.b16 %v3211
        %v4443 = vunpack.c.h.b16 %v3211
        %v4444 = vunpack.c.l.b16 %v3212
        %v4445 = vunpack.c.h.b16 %v3212
        %v4446 = vunpack.c.l.b16 %v3213
        %v4447 = vunpack.c.h.b16 %v3213
        %v4448 = vunpack.c.l.b16 %v3214
        %v4449 = vunpack.c.h.b16 %v3214
        %v4450 = vunpack.c.l.b16 %v3215
        %v4451 = vunpack.c.h.b16 %v3215
        %v4452 = vunpack.c.l.b16 %v3216
        %v4453 = vunpack.c.h.b16 %v3216
        %v4454 = vunpack.c.l.b16 %v3217
        %v4455 = vunpack.c.h.b16 %v3217
        %v4456 = vunpack.c.l.b16 %v3218
        %v4457 = vunpack.c.h.b16 %v3218
        %v4458 = vunpack.c.l.b16 %v3219
        %v4459 = vunpack.c.h.b16 %v3219
        %v4460 = vunpack.c.l.b16 %v3220
        %v4461 = vunpack.c.h.b16 %v3220
        %v4462 = vunpack.c.l.b16 %v3221
        %v4463 = vunpack.c.h.b16 %v3221
        %v4464 = vunpack.c.l.b16 %v3222
        %v4465 = vunpack.c.h.b16 %v3222
        %v4466 = vunpack.c.l.b16 %v3223
        %v4467 = vunpack.c.h.b16 %v3223
        %v4468 = vunpack.c.l.b16 %v3224
        %v4469 = vunpack.c.h.b16 %v3224
        %v4470 = vunpack.c.l.b16 %v3225
        %v4471 = vunpack.c.h.b16 %v3225
        %v4472 = vunpack.c.l.b16 %v3226
        %v4473 = vunpack.c.h.b16 %v3226
        %v4474 = vunpack.c.l.b16 %v3227
        %v4475 = vunpack.c.h.b16 %v3227
        %v4476 = vunpack.c.l.b16 %v3228
        %v4477 = vunpack.c.h.b16 %v3228
        %v4478 = vunpack.c.l.b16 %v3229
        %v4479 = vunpack.c.h.b16 %v3229
        %v4480 = vunpack.c.l.b16 %v3230
        %v4481 = vunpack.c.h.b16 %v3230
        %v4482 = vunpack.c.l.b16 %v3231
        %v4483 = vunpack.c.h.b16 %v3231
        %v4484 = vunpack.c.l.b16 %v3232
        %v4485 = vunpack.c.h.b16 %v3232
        %v4486 = vunpack.c.l.b16 %v3233
        %v4487 = vunpack.c.h.b16 %v3233
        %v4488 = vunpack.c.l.b16 %v3234
        %v4489 = vunpack.c.h.b16 %v3234
        %v4490 = vunpack.c.l.b16 %v3235
        %v4491 = vunpack.c.h.b16 %v3235
        %v4492 = vunpack.c.l.b16 %v3236
        %v4493 = vunpack.c.h.b16 %v3236
        %v4494 = vunpack.c.l.b16 %v3237
        %v4495 = vunpack.c.h.b16 %v3237
        %v4496 = vunpack.c.l.b16 %v3238
        %v4497 = vunpack.c.h.b16 %v3238
        %v4498 = vunpack.c.l.b16 %v3239
        %v4499 = vunpack.c.h.b16 %v3239
        %v4500 = vunpack.c.l.b16 %v3240
        %v4501 = vunpack.c.h.b16 %v3240
        %v4502 = vunpack.c.l.b16 %v3241
        %v4503 = vunpack.c.h.b16 %v3241
        %v4504 = vunpack.c.l.b16 %v3242
        %v4505 = vunpack.c.h.b16 %v3242
        %v4506 = vunpack.c.l.b16 %v3243
        %v4507 = vunpack.c.h.b16 %v3243
        %v4508 = vunpack.c.l.b16 %v3244
        %v4509 = vunpack.c.h.b16 %v3244
        %v4510 = vunpack.c.l.b16 %v3245
        %v4511 = vunpack.c.h.b16 %v3245
        %v4512 = vunpack.c.l.b16 %v3246
        %v4513 = vunpack.c.h.b16 %v3246
        %v4514 = vunpack.c.l.b16 %v3247
        %v4515 = vunpack.c.h.b16 %v3247
        %v4516 = vunpack.c.l.b16 %v3248
        %v4517 = vunpack.c.h.b16 %v3248
        %v4518 = vunpack.c.l.b16 %v3249
        %v4519 = vunpack.c.h.b16 %v3249
        %v4520 = vunpack.c.l.b16 %v3250
        %v4521 = vunpack.c.h.b16 %v3250
        %v4522 = vunpack.c.l.b16 %v3251
        %v4523 = vunpack.c.h.b16 %v3251
        %v4524 = vunpack.c.l.b16 %v3252
        %v4525 = vunpack.c.h.b16 %v3252
        %v4526 = vunpack.c.l.b16 %v3253
        %v4527 = vunpack.c.h.b16 %v3253
        %v4528 = vunpack.c.l.b16 %v3254
        %v4529 = vunpack.c.h.b16 %v3254
        %v4530 = vunpack.c.l.b16 %v3255
        %v4531 = vunpack.c.h.b16 %v3255
        %v4532 = vunpack.c.l.b16 %v3256
        %v4533 = vunpack.c.h.b16 %v3256
        %v4534 = vunpack.c.l.b16 %v3257
        %v4535 = vunpack.c.h.b16 %v3257
        %v4536 = vunpack.c.l.b16 %v3258
        %v4537 = vunpack.c.h.b16 %v3258
        %v4538 = vunpack.c.l.b16 %v3259
        %v4539 = vunpack.c.h.b16 %v3259
        %v4540 = vunpack.c.l.b16 %v3260
        %v4541 = vunpack.c.h.b16 %v3260
        %v4542 = vunpack.c.l.b16 %v3261
        %v4543 = vunpack.c.h.b16 %v3261
        %v4544 = vunpack.c.l.b16 %v3262
        %v4545 = vunpack.c.h.b16 %v3262
        %v4546 = vunpack.c.l.b16 %v3263
        %v4547 = vunpack.c.h.b16 %v3263
        %v4548 = vunpack.c.l.b16 %v3264
        %v4549 = vunpack.c.h.b16 %v3264
        %v4550 = vunpack.c.l.b16 %v3265
        %v4551 = vunpack.c.h.b16 %v3265
        %v4552 = vunpack.c.l.b16 %v3266
        %v4553 = vunpack.c.h.b16 %v3266
        %v4554 = vunpack.c.l.b16 %v3267
        %v4555 = vunpack.c.h.b16 %v3267
        %v4556 = vunpack.c.l.b16 %v3268
        %v4557 = vunpack.c.h.b16 %v3268
        %v4558 = vunpack.c.l.b16 %v3269
        %v4559 = vunpack.c.h.b16 %v3269
        %v4560 = vunpack.c.l.b16 %v3270
        %v4561 = vunpack.c.h.b16 %v3270
        %v4562 = vunpack.c.l.b16 %v3271
        %v4563 = vunpack.c.h.b16 %v3271
        %v4564 = vunpack.c.l.b16 %v3272
        %v4565 = vunpack.c.h.b16 %v3272
        %v4566 = vunpack.c.l.b16 %v3273
        %v4567 = vunpack.c.h.b16 %v3273
        %v4568 = vunpack.c.l.b16 %v3274
        %v4569 = vunpack.c.h.b16 %v3274
        %v4570 = vunpack.c.l.b16 %v3275
        %v4571 = vunpack.c.h.b16 %v3275
        %v4572 = vunpack.c.l.b16 %v3276
        %v4573 = vunpack.c.h.b16 %v3276
        %v4574 = vunpack.c.l.b16 %v3277
        %v4575 = vunpack.c.h.b16 %v3277
        %v4576 = vunpack.c.l.b16 %v3278
        %v4577 = vunpack.c.h.b16 %v3278
        %v4578 = vunpack.c.l.b16 %v3279
        %v4579 = vunpack.c.h.b16 %v3279
        %v4580 = vunpack.c.l.b16 %v3280
        %v4581 = vunpack.c.h.b16 %v3280
        %v4582 = vunpack.c.l.b16 %v3281
        %v4583 = vunpack.c.h.b16 %v3281
        %v4584 = vunpack.c.l.b16 %v3282
        %v4585 = vunpack.c.h.b16 %v3282
        %v4586 = vunpack.c.l.b16 %v3283
        %v4587 = vunpack.c.h.b16 %v3283
        %v4588 = vunpack.c.l.b16 %v3284
        %v4589 = vunpack.c.h.b16 %v3284
        %v4590 = vunpack.c.l.b16 %v3285
        %v4591 = vunpack.c.h.b16 %v3285
        %v4592 = vunpack.c.l.b16 %v3286
        %v4593 = vunpack.c.h.b16 %v3286
        %v4594 = vunpack.c.l.b16 %v3287
        %v4595 = vunpack.c.h.b16 %v3287
        %v4596 = vunpack.c.l.b16 %v3288
        %v4597 = vunpack.c.h.b16 %v3288
        %v4598 = vunpack.c.l.b16 %v3289
        %v4599 = vunpack.c.h.b16 %v3289
        %v4600 = vunpack.c.l.b16 %v3290
        %v4601 = vunpack.c.h.b16 %v3290
        %v4602 = vunpack.c.l.b16 %v3291
        %v4603 = vunpack.c.h.b16 %v3291
        %v4604 = vunpack.c.l.b16 %v3292
        %v4605 = vunpack.c.h.b16 %v3292
        %v4606 = vunpack.c.l.b16 %v3293
        %v4607 = vunpack.c.h.b16 %v3293
        %v4608 = vunpack.c.l.b16 %v3294
        %v4609 = vunpack.c.h.b16 %v3294
        %v4610 = vunpack.c.l.b16 %v3295
        %v4611 = vunpack.c.h.b16 %v3295
        %v4612 = vunpack.c.l.b16 %v3296
        %v4613 = vunpack.c.h.b16 %v3296
        %v4614 = vunpack.c.l.b16 %v3297
        %v4615 = vunpack.c.h.b16 %v3297
        %v4616 = vunpack.c.l.b16 %v3298
        %v4617 = vunpack.c.h.b16 %v3298
        %v4618 = vunpack.c.l.b16 %v3299
        %v4619 = vunpack.c.h.b16 %v3299
        %v4620 = vunpack.c.l.b16 %v3300
        %v4621 = vunpack.c.h.b16 %v3300
        %v4622 = vunpack.c.l.b16 %v3301
        %v4623 = vunpack.c.h.b16 %v3301
        %v4624 = vunpack.c.l.b16 %v3302
        %v4625 = vunpack.c.h.b16 %v3302
        %v4626 = vunpack.c.l.b16 %v3303
        %v4627 = vunpack.c.h.b16 %v3303
        %v4628 = vunpack.c.l.b16 %v3304
        %v4629 = vunpack.c.h.b16 %v3304
        %v4630 = vunpack.c.l.b16 %v3305
        %v4631 = vunpack.c.h.b16 %v3305
        %v4632 = vunpack.c.l.b16 %v3306
        %v4633 = vunpack.c.h.b16 %v3306
        %v4634 = vunpack.c.l.b16 %v3307
        %v4635 = vunpack.c.h.b16 %v3307
        %v4636 = vunpack.c.l.b16 %v3308
        %v4637 = vunpack.c.h.b16 %v3308
        %v4638 = vunpack.c.l.b16 %v3309
        %v4639 = vunpack.c.h.b16 %v3309
        %v4640 = vunpack.c.l.b16 %v3310
        %v4641 = vunpack.c.h.b16 %v3310
        %v4642 = vunpack.c.l.b16 %v3311
        %v4643 = vunpack.c.h.b16 %v3311
        %v4644 = vunpack.c.l.b16 %v3312
        %v4645 = vunpack.c.h.b16 %v3312
        %v4646 = vunpack.c.l.b16 %v3313
        %v4647 = vunpack.c.h.b16 %v3313
        %v4648 = vunpack.c.l.b16 %v3314
        %v4649 = vunpack.c.h.b16 %v3314
        %v4650 = vunpack.c.l.b16 %v3315
        %v4651 = vunpack.c.h.b16 %v3315
        %v4652 = vunpack.c.l.b16 %v3316
        %v4653 = vunpack.c.h.b16 %v3316
        %v4654 = vunpack.c.l.b16 %v3317
        %v4655 = vunpack.c.h.b16 %v3317
        %v4656 = vunpack.c.l.b16 %v3318
        %v4657 = vunpack.c.h.b16 %v3318
        %v4658 = vunpack.c.l.b16 %v3319
        %v4659 = vunpack.c.h.b16 %v3319
        %v4660 = vunpack.c.l.b16 %v3320
        %v4661 = vunpack.c.h.b16 %v3320
        %v4662 = vunpack.c.l.b16 %v3321
        %v4663 = vunpack.c.h.b16 %v3321
        %v4664 = vunpack.c.l.b16 %v3322
        %v4665 = vunpack.c.h.b16 %v3322
        %v4666 = vunpack.c.l.b16 %v3323
        %v4667 = vunpack.c.h.b16 %v3323
        %v4668 = vunpack.c.l.b16 %v3324
        %v4669 = vunpack.c.h.b16 %v3324
        %v4670 = vunpack.c.l.b16 %v3325
        %v4671 = vunpack.c.h.b16 %v3325
        %v4672 = vunpack.c.l.b16 %v3326
        %v4673 = vunpack.c.h.b16 %v3326
        %v4674 = vunpack.c.l.b16 %v3327
        %v4675 = vunpack.c.h.b16 %v3327
        %v4676 = vunpack.c.l.b16 %v3328
        %v4677 = vunpack.c.h.b16 %v3328
        %v4678 = vunpack.c.l.b16 %v3329
        %v4679 = vunpack.c.h.b16 %v3329
        %v4680 = vunpack.c.l.b16 %v3330
        %v4681 = vunpack.c.h.b16 %v3330
        %v4682 = vunpack.c.l.b16 %v3331
        %v4683 = vunpack.c.h.b16 %v3331
        %v4684 = vunpack.c.l.b16 %v3332
        %v4685 = vunpack.c.h.b16 %v3332
        %v4686 = vunpack.c.l.b16 %v3333
        %v4687 = vunpack.c.h.b16 %v3333
        %v4688 = vunpack.c.l.b16 %v3334
        %v4689 = vunpack.c.h.b16 %v3334
        %v4690 = vunpack.c.l.b16 %v3335
        %v4691 = vunpack.c.h.b16 %v3335
        %v4692 = vunpack.c.l.b16 %v3336
        %v4693 = vunpack.c.h.b16 %v3336
        %v4694 = vunpack.c.l.b16 %v3337
        %v4695 = vunpack.c.h.b16 %v3337
        %v4696 = vunpack.c.l.b16 %v3338
        %v4697 = vunpack.c.h.b16 %v3338
        %v4698 = vunpack.c.l.b16 %v3339
        %v4699 = vunpack.c.h.b16 %v3339
        %v4700 = vunpack.c.l.b16 %v3340
        %v4701 = vunpack.c.h.b16 %v3340
        %v4702 = vunpack.c.l.b16 %v3341
        %v4703 = vunpack.c.h.b16 %v3341
        %v4704 = vunpack.c.l.b16 %v3342
        %v4705 = vunpack.c.h.b16 %v3342
        %v4706 = vunpack.c.l.b16 %v3343
        %v4707 = vunpack.c.h.b16 %v3343
        %v4708 = vunpack.c.l.b16 %v3344
        %v4709 = vunpack.c.h.b16 %v3344
        %v4710 = vunpack.c.l.b16 %v3345
        %v4711 = vunpack.c.h.b16 %v3345
        %v4712 = vunpack.c.l.b16 %v3346
        %v4713 = vunpack.c.h.b16 %v3346
        %v4714 = vunpack.c.l.b16 %v3347
        %v4715 = vunpack.c.h.b16 %v3347
        %v4716 = vunpack.c.l.b16 %v3348
        %v4717 = vunpack.c.h.b16 %v3348
        %v4718 = vunpack.c.l.b16 %v3349
        %v4719 = vunpack.c.h.b16 %v3349
        %v4720 = vunpack.c.l.b16 %v3350
        %v4721 = vunpack.c.h.b16 %v3350
        %v4722 = vunpack.c.l.b16 %v3351
        %v4723 = vunpack.c.h.b16 %v3351
        %v4724 = vunpack.c.l.b16 %v3352
        %v4725 = vunpack.c.h.b16 %v3352
        %v4726 = vunpack.c.l.b16 %v3353
        %v4727 = vunpack.c.h.b16 %v3353
        %v4728 = vunpack.c.l.b16 %v3354
        %v4729 = vunpack.c.h.b16 %v3354
        %v4730 = vunpack.c.l.b16 %v3355
        %v4731 = vunpack.c.h.b16 %v3355
        %v4732 = vunpack.c.l.b16 %v3356
        %v4733 = vunpack.c.h.b16 %v3356
        %v4734 = vunpack.c.l.b16 %v3357
        %v4735 = vunpack.c.h.b16 %v3357
        %v4736 = vunpack.c.l.b16 %v3358
        %v4737 = vunpack.c.h.b16 %v3358
        %v4738 = vunpack.c.l.b16 %v3359
        %v4739 = vunpack.c.h.b16 %v3359
        %v4740 = vunpack.c.l.b16 %v3360
        %v4741 = vunpack.c.h.b16 %v3360
        %v4742 = vunpack.c.l.b16 %v3361
        %v4743 = vunpack.c.h.b16 %v3361
        %v4744 = vunpack.c.l.b16 %v3362
        %v4745 = vunpack.c.h.b16 %v3362
        %v4746 = vunpack.c.l.b16 %v3363
        %v4747 = vunpack.c.h.b16 %v3363
        %v4748 = vunpack.c.l.b16 %v3364
        %v4749 = vunpack.c.h.b16 %v3364
        %v4750 = vunpack.c.l.b16 %v3365
        %v4751 = vunpack.c.h.b16 %v3365
        %v4752 = vunpack.c.l.b16 %v3366
        %v4753 = vunpack.c.h.b16 %v3366
        %v4754 = vunpack.c.l.b16 %v3367
        %v4755 = vunpack.c.h.b16 %v3367
        %v4756 = vunpack.c.l.b16 %v3368
        %v4757 = vunpack.c.h.b16 %v3368
        %v4758 = vunpack.c.l.b16 %v3369
        %v4759 = vunpack.c.h.b16 %v3369
        %v4760 = vunpack.c.l.b16 %v3370
        %v4761 = vunpack.c.h.b16 %v3370
        %v4762 = vunpack.c.l.b16 %v3371
        %v4763 = vunpack.c.h.b16 %v3371
        %v4764 = vunpack.c.l.b16 %v3372
        %v4765 = vunpack.c.h.b16 %v3372
        %v4766 = vunpack.c.l.b16 %v3373
        %v4767 = vunpack.c.h.b16 %v3373
        %v4768 = vunpack.c.l.b16 %v3374
        %v4769 = vunpack.c.h.b16 %v3374
        %v4770 = vunpack.c.l.b16 %v3375
        %v4771 = vunpack.c.h.b16 %v3375
        %v4772 = vunpack.c.l.b16 %v3376
        %v4773 = vunpack.c.h.b16 %v3376
        %v4774 = vunpack.c.l.b16 %v3377
        %v4775 = vunpack.c.h.b16 %v3377
        %v4776 = vunpack.c.l.b16 %v3378
        %v4777 = vunpack.c.h.b16 %v3378
        %v4778 = vunpack.c.l.b16 %v3379
        %v4779 = vunpack.c.h.b16 %v3379
        %v4780 = vunpack.c.l.b16 %v3380
        %v4781 = vunpack.c.h.b16 %v3380
        %v4782 = vunpack.c.l.b16 %v3381
        %v4783 = vunpack.c.h.b16 %v3381
        %v4784 = vunpack.c.l.b16 %v3382
        %v4785 = vunpack.c.h.b16 %v3382
        %v4786 = vunpack.c.l.b16 %v3383
        %v4787 = vunpack.c.h.b16 %v3383
        %v4788 = vunpack.c.l.b16 %v3384
        %v4789 = vunpack.c.h.b16 %v3384
        %v4790 = vunpack.c.l.b16 %v3385
        %v4791 = vunpack.c.h.b16 %v3385
        %v4792 = vunpack.c.l.b16 %v3386
        %v4793 = vunpack.c.h.b16 %v3386
        %v4794 = vunpack.c.l.b16 %v3387
        %v4795 = vunpack.c.h.b16 %v3387
        %v4796 = vunpack.c.l.b16 %v3388
        %v4797 = vunpack.c.h.b16 %v3388
        %v4798 = vunpack.c.l.b16 %v3389
        %v4799 = vunpack.c.h.b16 %v3389
        %v4800 = vunpack.c.l.b16 %v3390
        %v4801 = vunpack.c.h.b16 %v3390
        %v4802 = vunpack.c.l.b16 %v3391
        %v4803 = vunpack.c.h.b16 %v3391
        %v4804 = vunpack.c.l.b16 %v3392
        %v4805 = vunpack.c.h.b16 %v3392
        %v4806 = vunpack.c.l.b16 %v3393
        %v4807 = vunpack.c.h.b16 %v3393
        %v4808 = vunpack.c.l.b16 %v3394
        %v4809 = vunpack.c.h.b16 %v3394
        %v4810 = vunpack.c.l.b16 %v3395
        %v4811 = vunpack.c.h.b16 %v3395
        %v4812 = vunpack.c.l.b16 %v3396
        %v4813 = vunpack.c.h.b16 %v3396
        %v4814 = vunpack.c.l.b16 %v3397
        %v4815 = vunpack.c.h.b16 %v3397
        %v4816 = vunpack.c.l.b16 %v3398
        %v4817 = vunpack.c.h.b16 %v3398
        %v4818 = vunpack.c.l.b16 %v3399
        %v4819 = vunpack.c.h.b16 %v3399
        %v4820 = vunpack.c.l.b16 %v3400
        %v4821 = vunpack.c.h.b16 %v3400
        %v4822 = vunpack.c.l.b16 %v3401
        %v4823 = vunpack.c.h.b16 %v3401
        %v4824 = vunpack.c.l.b16 %v3402
        %v4825 = vunpack.c.h.b16 %v3402
        %v4826 = vunpack.c.l.b16 %v3403
        %v4827 = vunpack.c.h.b16 %v3403
        %v4828 = vunpack.c.l.b16 %v3404
        %v4829 = vunpack.c.h.b16 %v3404
        %v4830 = vunpack.c.l.b16 %v3405
        %v4831 = vunpack.c.h.b16 %v3405
        %v4832 = vunpack.c.l.b16 %v3406
        %v4833 = vunpack.c.h.b16 %v3406
        %v4834 = vunpack.c.l.b16 %v3407
        %v4835 = vunpack.c.h.b16 %v3407
        %v4836 = vunpack.c.l.b16 %v3408
        %v4837 = vunpack.c.h.b16 %v3408
        %v4838 = vunpack.c.l.b16 %v3409
        %v4839 = vunpack.c.h.b16 %v3409
        %v4840 = vunpack.c.l.b16 %v3410
        %v4841 = vunpack.c.h.b16 %v3410
        %v4842 = vunpack.c.l.b16 %v3411
        %v4843 = vunpack.c.h.b16 %v3411
        %v4844 = vunpack.c.l.b16 %v3412
        %v4845 = vunpack.c.h.b16 %v3412
        %v4846 = vunpack.c.l.b16 %v3413
        %v4847 = vunpack.c.h.b16 %v3413
        %v4848 = vunpack.c.l.b16 %v3414
        %v4849 = vunpack.c.h.b16 %v3414
        %v4850 = vunpack.c.l.b16 %v3415
        %v4851 = vunpack.c.h.b16 %v3415
        %v4852 = vunpack.c.l.b16 %v3416
        %v4853 = vunpack.c.h.b16 %v3416
        %v4854 = vunpack.c.l.b16 %v3417
        %v4855 = vunpack.c.h.b16 %v3417
        %v4856 = vunpack.c.l.b16 %v3418
        %v4857 = vunpack.c.h.b16 %v3418
        %v4858 = vunpack.c.l.b16 %v3419
        %v4859 = vunpack.c.h.b16 %v3419
        %v4860 = vunpack.c.l.b16 %v3420
        %v4861 = vunpack.c.h.b16 %v3420
        %v4862 = vunpack.c.l.b16 %v3421
        %v4863 = vunpack.c.h.b16 %v3421
        %v4864 = vunpack.c.l.b16 %v3422
        %v4865 = vunpack.c.h.b16 %v3422
        %v4866 = vunpack.c.l.b16 %v3423
        %v4867 = vunpack.c.h.b16 %v3423
        %v4868 = vunpack.c.l.b16 %v3424
        %v4869 = vunpack.c.h.b16 %v3424
        %v4870 = vunpack.c.l.b16 %v3425
        %v4871 = vunpack.c.h.b16 %v3425
        %v4872 = vunpack.c.l.b16 %v3426
        %v4873 = vunpack.c.h.b16 %v3426
        %v4874 = vunpack.c.l.b16 %v3427
        %v4875 = vunpack.c.h.b16 %v3427
        %v4876 = vunpack.c.l.b16 %v3428
        %v4877 = vunpack.c.h.b16 %v3428
        %v4878 = vunpack.c.l.b16 %v3429
        %v4879 = vunpack.c.h.b16 %v3429
        %v4880 = vunpack.c.l.b16 %v3430
        %v4881 = vunpack.c.h.b16 %v3430
        %v4882 = vunpack.c.l.b16 %v3431
        %v4883 = vunpack.c.h.b16 %v3431
        %v4884 = vunpack.c.l.b16 %v3432
        %v4885 = vunpack.c.h.b16 %v3432
        %v4886 = vunpack.c.l.b16 %v3433
        %v4887 = vunpack.c.h.b16 %v3433
        %v4888 = vunpack.c.l.b16 %v3434
        %v4889 = vunpack.c.h.b16 %v3434
        %v4890 = vunpack.c.l.b16 %v3435
        %v4891 = vunpack.c.h.b16 %v3435
        %v4892 = vunpack.c.l.b16 %v3436
        %v4893 = vunpack.c.h.b16 %v3436
        %v4894 = vunpack.c.l.b16 %v3437
        %v4895 = vunpack.c.h.b16 %v3437
        %v4896 = vunpack.c.l.b16 %v3438
        %v4897 = vunpack.c.h.b16 %v3438
        %v4898 = vunpack.c.l.b16 %v3439
        %v4899 = vunpack.c.h.b16 %v3439
        %v4900 = vunpack.c.l.b16 %v3440
        %v4901 = vunpack.c.h.b16 %v3440
        %v4902 = vunpack.c.l.b16 %v3441
        %v4903 = vunpack.c.h.b16 %v3441
        %v4904 = vunpack.c.l.b16 %v3442
        %v4905 = vunpack.c.h.b16 %v3442
        %v4906 = vunpack.c.l.b16 %v3443
        %v4907 = vunpack.c.h.b16 %v3443
        %v4908 = vunpack.c.l.b16 %v3444
        %v4909 = vunpack.c.h.b16 %v3444
        %v4910 = vunpack.c.l.b16 %v3445
        %v4911 = vunpack.c.h.b16 %v3445
        %v4912 = vunpack.c.l.b16 %v3446
        %v4913 = vunpack.c.h.b16 %v3446
        %v4914 = vunpack.c.l.b16 %v3447
        %v4915 = vunpack.c.h.b16 %v3447
        %v4916 = vunpack.c.l.b16 %v3448
        %v4917 = vunpack.c.h.b16 %v3448
        %v4918 = vunpack.c.l.b16 %v3449
        %v4919 = vunpack.c.h.b16 %v3449
        %v4920 = vunpack.c.l.b16 %v3450
        %v4921 = vunpack.c.h.b16 %v3450
        %v4922 = vunpack.c.l.b16 %v3451
        %v4923 = vunpack.c.h.b16 %v3451
        %v4924 = vunpack.c.l.b16 %v3452
        %v4925 = vunpack.c.h.b16 %v3452
        %v4926 = vunpack.c.l.b16 %v3453
        %v4927 = vunpack.c.h.b16 %v3453
        %v4928 = vunpack.c.l.b16 %v3454
        %v4929 = vunpack.c.h.b16 %v3454
        %v4930 = vunpack.c.l.b16 %v3455
        %v4931 = vunpack.c.h.b16 %v3455
        %v4932 = vunpack.c.l.b16 %v3456
        %v4933 = vunpack.c.h.b16 %v3456
        %v4934 = vunpack.c.l.b16 %v3457
        %v4935 = vunpack.c.h.b16 %v3457
        %v4936 = vunpack.c.l.b16 %v3458
        %v4937 = vunpack.c.h.b16 %v3458
        %v4938 = vunpack.c.l.b16 %v3459
        %v4939 = vunpack.c.h.b16 %v3459
        %v4940 = vunpack.c.l.b16 %v3460
        %v4941 = vunpack.c.h.b16 %v3460
        %v4942 = vunpack.c.l.b16 %v3461
        %v4943 = vunpack.c.h.b16 %v3461
        %v4944 = vunpack.c.l.b16 %v3462
        %v4945 = vunpack.c.h.b16 %v3462
        %v4946 = vunpack.c.l.b16 %v3463
        %v4947 = vunpack.c.h.b16 %v3463
        %v4948 = vunpack.c.l.b16 %v3464
        %v4949 = vunpack.c.h.b16 %v3464
        %v4950 = vunpack.c.l.b16 %v3465
        %v4951 = vunpack.c.h.b16 %v3465
        %v4952 = vunpack.c.l.b16 %v3466
        %v4953 = vunpack.c.h.b16 %v3466
        %v4954 = vunpack.c.l.b16 %v3467
        %v4955 = vunpack.c.h.b16 %v3467
        %v4956 = vunpack.c.l.b16 %v3468
        %v4957 = vunpack.c.h.b16 %v3468
        %v4958 = vunpack.c.l.b16 %v3469
        %v4959 = vunpack.c.h.b16 %v3469
        %v4960 = vunpack.c.l.b16 %v3470
        %v4961 = vunpack.c.h.b16 %v3470
        %v4962 = vunpack.c.l.b16 %v3471
        %v4963 = vunpack.c.h.b16 %v3471
        %v4964 = vunpack.c.l.b16 %v3472
        %v4965 = vunpack.c.h.b16 %v3472
        %v4966 = vunpack.c.l.b16 %v3473
        %v4967 = vunpack.c.h.b16 %v3473
        %v4968 = vunpack.c.l.b16 %v3474
        %v4969 = vunpack.c.h.b16 %v3474
        %v4970 = vunpack.c.l.b16 %v3475
        %v4971 = vunpack.c.h.b16 %v3475
        %v4972 = vunpack.c.l.b16 %v3476
        %v4973 = vunpack.c.h.b16 %v3476
        %v4974 = vunpack.c.l.b16 %v3477
        %v4975 = vunpack.c.h.b16 %v3477
        %v4976 = vunpack.c.l.b16 %v3478
        %v4977 = vunpack.c.h.b16 %v3478
        %v4978 = vunpack.c.l.b16 %v3479
        %v4979 = vunpack.c.h.b16 %v3479
        %v4980 = vunpack.c.l.b16 %v3480
        %v4981 = vunpack.c.h.b16 %v3480
        %v4982 = vunpack.c.l.b16 %v3481
        %v4983 = vunpack.c.h.b16 %v3481
        %v4984 = vunpack.c.l.b16 %v3482
        %v4985 = vunpack.c.h.b16 %v3482
        %v4986 = vunpack.c.l.b16 %v3483
        %v4987 = vunpack.c.h.b16 %v3483
        %v4988 = vunpack.c.l.b16 %v3484
        %v4989 = vunpack.c.h.b16 %v3484
        %v4990 = vunpack.c.l.b16 %v3485
        %v4991 = vunpack.c.h.b16 %v3485
        %v4992 = vunpack.c.l.b16 %v3486
        %v4993 = vunpack.c.h.b16 %v3486
        %v4994 = vunpack.c.l.b16 %v3487
        %v4995 = vunpack.c.h.b16 %v3487
        %v4996 = vunpack.c.l.b16 %v3488
        %v4997 = vunpack.c.h.b16 %v3488
        %v4998 = vunpack.c.l.b16 %v3489
        %v4999 = vunpack.c.h.b16 %v3489
        %v5000 = vunpack.c.l.b16 %v3490
        %v5001 = vunpack.c.h.b16 %v3490
        %v5002 = vunpack.c.l.b16 %v3491
        %v5003 = vunpack.c.h.b16 %v3491
        %v5004 = vunpack.c.l.b16 %v3492
        %v5005 = vunpack.c.h.b16 %v3492
        %v5006 = vunpack.c.l.b16 %v3493
        %v5007 = vunpack.c.h.b16 %v3493
        %v5008 = vunpack.c.l.b16 %v3494
        %v5009 = vunpack.c.h.b16 %v3494
        %v5010 = vunpack.c.l.b16 %v3495
        %v5011 = vunpack.c.h.b16 %v3495
        %v5012 = vunpack.c.l.b16 %v3496
        %v5013 = vunpack.c.h.b16 %v3496
        %v5014 = vunpack.c.l.b16 %v3497
        %v5015 = vunpack.c.h.b16 %v3497
        %v5016 = vunpack.c.l.b16 %v3498
        %v5017 = vunpack.c.h.b16 %v3498
        %v5018 = vunpack.c.l.b16 %v3499
        %v5019 = vunpack.c.h.b16 %v3499
        %v5020 = vunpack.c.l.b16 %v3500
        %v5021 = vunpack.c.h.b16 %v3500
        %v5022 = vunpack.c.l.b16 %v3501
        %v5023 = vunpack.c.h.b16 %v3501
        %v5024 = vunpack.c.l.b16 %v3502
        %v5025 = vunpack.c.h.b16 %v3502
        %v5026 = vunpack.c.l.b16 %v3503
        %v5027 = vunpack.c.h.b16 %v3503
        %v5028 = vunpack.c.l.b16 %v3504
        %v5029 = vunpack.c.h.b16 %v3504
        %v5030 = vunpack.c.l.b16 %v3505
        %v5031 = vunpack.c.h.b16 %v3505
        %v5032 = vunpack.c.l.b16 %v3506
        %v5033 = vunpack.c.h.b16 %v3506
        %v5034 = vunpack.c.l.b16 %v3507
        %v5035 = vunpack.c.h.b16 %v3507
        %v5036 = vunpack.c.l.b16 %v3508
        %v5037 = vunpack.c.h.b16 %v3508
        %v5038 = vunpack.c.l.b16 %v3509
        %v5039 = vunpack.c.h.b16 %v3509
        %v5040 = vunpack.c.l.b16 %v3510
        %v5041 = vunpack.c.h.b16 %v3510
        %v5042 = vunpack.c.l.b16 %v3511
        %v5043 = vunpack.c.h.b16 %v3511
        %v5044 = vunpack.c.l.b16 %v3512
        %v5045 = vunpack.c.h.b16 %v3512
        %v5046 = vunpack.c.l.b16 %v3513
        %v5047 = vunpack.c.h.b16 %v3513
        %v5048 = vunpack.c.l.b16 %v3514
        %v5049 = vunpack.c.h.b16 %v3514
        %v5050 = vunpack.c.l.b16 %v3515
        %v5051 = vunpack.c.h.b16 %v3515
        %v5052 = vunpack.c.l.b16 %v3516
        %v5053 = vunpack.c.h.b16 %v3516
        %v5054 = vunpack.c.l.b16 %v3517
        %v5055 = vunpack.c.h.b16 %v3517
        %v5056 = vunpack.c.l.b16 %v3518
        %v5057 = vunpack.c.h.b16 %v3518
        %v5058 = vunpack.c.l.b16 %v3519
        %v5059 = vunpack.c.h.b16 %v3519
        %v5060 = vunpack.c.l.b16 %v3520
        %v5061 = vunpack.c.h.b16 %v3520
        %v5062 = vunpack.c.l.b16 %v3521
        %v5063 = vunpack.c.h.b16 %v3521
        %v5064 = vunpack.c.l.b16 %v3522
        %v5065 = vunpack.c.h.b16 %v3522
        %v5066 = vunpack.c.l.b16 %v3523
        %v5067 = vunpack.c.h.b16 %v3523
        %v5068 = vunpack.c.l.b16 %v3524
        %v5069 = vunpack.c.h.b16 %v3524
        %v5070 = vunpack.c.l.b16 %v3525
        %v5071 = vunpack.c.h.b16 %v3525
        %v5072 = vunpack.c.l.b16 %v3526
        %v5073 = vunpack.c.h.b16 %v3526
        %v5074 = vunpack.c.l.b16 %v3527
        %v5075 = vunpack.c.h.b16 %v3527
        %v5076 = vunpack.c.l.b16 %v3528
        %v5077 = vunpack.c.h.b16 %v3528
        %v5078 = vunpack.c.l.b16 %v3529
        %v5079 = vunpack.c.h.b16 %v3529
        %v5080 = vunpack.c.l.b16 %v3530
        %v5081 = vunpack.c.h.b16 %v3530
        %v5082 = vunpack.c.l.b16 %v3531
        %v5083 = vunpack.c.h.b16 %v3531
        %v5084 = vunpack.c.l.b16 %v3532
        %v5085 = vunpack.c.h.b16 %v3532
        %v5086 = vunpack.c.l.b16 %v3533
        %v5087 = vunpack.c.h.b16 %v3533
        %v5088 = vunpack.c.l.b16 %v3534
        %v5089 = vunpack.c.h.b16 %v3534
        %v5090 = vunpack.c.l.b16 %v3535
        %v5091 = vunpack.c.h.b16 %v3535
        %v5092 = vunpack.c.l.b16 %v3536
        %v5093 = vunpack.c.h.b16 %v3536
        %v5094 = vunpack.c.l.b16 %v3537
        %v5095 = vunpack.c.h.b16 %v3537
        %v5096 = vunpack.c.l.b16 %v3538
        %v5097 = vunpack.c.h.b16 %v3538
        %v5098 = vunpack.c.l.b16 %v3539
        %v5099 = vunpack.c.h.b16 %v3539
        %v5100 = vunpack.c.l.b16 %v3540
        %v5101 = vunpack.c.h.b16 %v3540
        %v5102 = vunpack.c.l.b16 %v3541
        %v5103 = vunpack.c.h.b16 %v3541
        %v5104 = vunpack.c.l.b16 %v3542
        %v5105 = vunpack.c.h.b16 %v3542
        %v5106 = vunpack.c.l.b16 %v3543
        %v5107 = vunpack.c.h.b16 %v3543
        %v5108 = vunpack.c.l.b16 %v3544
        %v5109 = vunpack.c.h.b16 %v3544
        %v5110 = vunpack.c.l.b16 %v3545
        %v5111 = vunpack.c.h.b16 %v3545
        %v5112 = vunpack.c.l.b16 %v3546
        %v5113 = vunpack.c.h.b16 %v3546
        %v5114 = vunpack.c.l.b16 %v3547
        %v5115 = vunpack.c.h.b16 %v3547
        %v5116 = vunpack.c.l.b16 %v3548
        %v5117 = vunpack.c.h.b16 %v3548
        %v5118 = vunpack.c.l.b16 %v3549
        %v5119 = vunpack.c.h.b16 %v3549
        %v5120 = vunpack.c.l.b16 %v3550
        %v5121 = vunpack.c.h.b16 %v3550
        %v5122 = vunpack.c.l.b16 %v3551
        %v5123 = vunpack.c.h.b16 %v3551
        %v5124 = vunpack.c.l.b16 %v3552
        %v5125 = vunpack.c.h.b16 %v3552
        %v5126 = vunpack.c.l.b16 %v3553
        %v5127 = vunpack.c.h.b16 %v3553
        %v5128 = vunpack.c.l.b16 %v3554
        %v5129 = vunpack.c.h.b16 %v3554
        %v5130 = vunpack.c.l.b16 %v3555
        %v5131 = vunpack.c.h.b16 %v3555
        %v5132 = vunpack.c.l.b16 %v3556
        %v5133 = vunpack.c.h.b16 %v3556
        %v5134 = vunpack.c.l.b16 %v3557
        %v5135 = vunpack.c.h.b16 %v3557
        %v5136 = vpack.c.b16 %v4120, %v4112
        %v5137 = vpack.c.b16 %v4121, %v4113
        %v5138 = vpack.c.b16 %v4122, %v4114
        %v5139 = vpack.c.b16 %v4123, %v4115
        %v5140 = vpack.c.b16 %v4124, %v4116
        %v5141 = vpack.c.b16 %v4125, %v4117
        %v5142 = vpack.c.b16 %v4126, %v4118
        %v5143 = vpack.c.b16 %v4127, %v4119
        %v5144 = vpack.c.b16 %v4136, %v4128
        %v5145 = vpack.c.b16 %v4137, %v4129
        %v5146 = vpack.c.b16 %v4138, %v4130
        %v5147 = vpack.c.b16 %v4139, %v4131
        %v5148 = vpack.c.b16 %v4140, %v4132
        %v5149 = vpack.c.b16 %v4141, %v4133
        %v5150 = vpack.c.b16 %v4142, %v4134
        %v5151 = vpack.c.b16 %v4143, %v4135
        %v5152 = vpack.c.b16 %v4152, %v4144
        %v5153 = vpack.c.b16 %v4153, %v4145
        %v5154 = vpack.c.b16 %v4154, %v4146
        %v5155 = vpack.c.b16 %v4155, %v4147
        %v5156 = vpack.c.b16 %v4156, %v4148
        %v5157 = vpack.c.b16 %v4157, %v4149
        %v5158 = vpack.c.b16 %v4158, %v4150
        %v5159 = vpack.c.b16 %v4159, %v4151
        %v5160 = vpack.c.b16 %v4168, %v4160
        %v5161 = vpack.c.b16 %v4169, %v4161
        %v5162 = vpack.c.b16 %v4170, %v4162
        %v5163 = vpack.c.b16 %v4171, %v4163
        %v5164 = vpack.c.b16 %v4172, %v4164
        %v5165 = vpack.c.b16 %v4173, %v4165
        %v5166 = vpack.c.b16 %v4174, %v4166
        %v5167 = vpack.c.b16 %v4175, %v4167
        %v5168 = vpack.c.b16 %v4184, %v4176
        %v5169 = vpack.c.b16 %v4185, %v4177
        %v5170 = vpack.c.b16 %v4186, %v4178
        %v5171 = vpack.c.b16 %v4187, %v4179
        %v5172 = vpack.c.b16 %v4188, %v4180
        %v5173 = vpack.c.b16 %v4189, %v4181
        %v5174 = vpack.c.b16 %v4190, %v4182
        %v5175 = vpack.c.b16 %v4191, %v4183
        %v5176 = vpack.c.b16 %v4200, %v4192
        %v5177 = vpack.c.b16 %v4201, %v4193
        %v5178 = vpack.c.b16 %v4202, %v4194
        %v5179 = vpack.c.b16 %v4203, %v4195
        %v5180 = vpack.c.b16 %v4204, %v4196
        %v5181 = vpack.c.b16 %v4205, %v4197
        %v5182 = vpack.c.b16 %v4206, %v4198
        %v5183 = vpack.c.b16 %v4207, %v4199
        %v5184 = vpack.c.b16 %v4216, %v4208
        %v5185 = vpack.c.b16 %v4217, %v4209
        %v5186 = vpack.c.b16 %v4218, %v4210
        %v5187 = vpack.c.b16 %v4219, %v4211
        %v5188 = vpack.c.b16 %v4220, %v4212
        %v5189 = vpack.c.b16 %v4221, %v4213
        %v5190 = vpack.c.b16 %v4222, %v4214
        %v5191 = vpack.c.b16 %v4223, %v4215
        %v5192 = vpack.c.b16 %v4232, %v4224
        %v5193 = vpack.c.b16 %v4233, %v4225
        %v5194 = vpack.c.b16 %v4234, %v4226
        %v5195 = vpack.c.b16 %v4235, %v4227
        %v5196 = vpack.c.b16 %v4236, %v4228
        %v5197 = vpack.c.b16 %v4237, %v4229
        %v5198 = vpack.c.b16 %v4238, %v4230
        %v5199 = vpack.c.b16 %v4239, %v4231
        %v5200 = vpack.c.b16 %v4248, %v4240
        %v5201 = vpack.c.b16 %v4249, %v4241
        %v5202 = vpack.c.b16 %v4250, %v4242
        %v5203 = vpack.c.b16 %v4251, %v4243
        %v5204 = vpack.c.b16 %v4252, %v4244
        %v5205 = vpack.c.b16 %v4253, %v4245
        %v5206 = vpack.c.b16 %v4254, %v4246
        %v5207 = vpack.c.b16 %v4255, %v4247
        %v5208 = vpack.c.b16 %v4264, %v4256
        %v5209 = vpack.c.b16 %v4265, %v4257
        %v5210 = vpack.c.b16 %v4266, %v4258
        %v5211 = vpack.c.b16 %v4267, %v4259
        %v5212 = vpack.c.b16 %v4268, %v4260
        %v5213 = vpack.c.b16 %v4269, %v4261
        %v5214 = vpack.c.b16 %v4270, %v4262
        %v5215 = vpack.c.b16 %v4271, %v4263
        %v5216 = vpack.c.b16 %v4280, %v4272
        %v5217 = vpack.c.b16 %v4281, %v4273
        %v5218 = vpack.c.b16 %v4282, %v4274
        %v5219 = vpack.c.b16 %v4283, %v4275
        %v5220 = vpack.c.b16 %v4284, %v4276
        %v5221 = vpack.c.b16 %v4285, %v4277
        %v5222 = vpack.c.b16 %v4286, %v4278
        %v5223 = vpack.c.b16 %v4287, %v4279
        %v5224 = vpack.c.b16 %v4296, %v4288
        %v5225 = vpack.c.b16 %v4297, %v4289
        %v5226 = vpack.c.b16 %v4298, %v4290
        %v5227 = vpack.c.b16 %v4299, %v4291
        %v5228 = vpack.c.b16 %v4300, %v4292
        %v5229 = vpack.c.b16 %v4301, %v4293
        %v5230 = vpack.c.b16 %v4302, %v4294
        %v5231 = vpack.c.b16 %v4303, %v4295
        %v5232 = vpack.c.b16 %v4312, %v4304
        %v5233 = vpack.c.b16 %v4313, %v4305
        %v5234 = vpack.c.b16 %v4314, %v4306
        %v5235 = vpack.c.b16 %v4315, %v4307
        %v5236 = vpack.c.b16 %v4316, %v4308
        %v5237 = vpack.c.b16 %v4317, %v4309
        %v5238 = vpack.c.b16 %v4318, %v4310
        %v5239 = vpack.c.b16 %v4319, %v4311
        %v5240 = vpack.c.b16 %v4328, %v4320
        %v5241 = vpack.c.b16 %v4329, %v4321
        %v5242 = vpack.c.b16 %v4330, %v4322
        %v5243 = vpack.c.b16 %v4331, %v4323
        %v5244 = vpack.c.b16 %v4332, %v4324
        %v5245 = vpack.c.b16 %v4333, %v4325
        %v5246 = vpack.c.b16 %v4334, %v4326
        %v5247 = vpack.c.b16 %v4335, %v4327
        %v5248 = vpack.c.b16 %v4344, %v4336
        %v5249 = vpack.c.b16 %v4345, %v4337
        %v5250 = vpack.c.b16 %v4346, %v4338
        %v5251 = vpack.c.b16 %v4347, %v4339
        %v5252 = vpack.c.b16 %v4348, %v4340
        %v5253 = vpack.c.b16 %v4349, %v4341
        %v5254 = vpack.c.b16 %v4350, %v4342
        %v5255 = vpack.c.b16 %v4351, %v4343
        %v5256 = vpack.c.b16 %v4360, %v4352
        %v5257 = vpack.c.b16 %v4361, %v4353
        %v5258 = vpack.c.b16 %v4362, %v4354
        %v5259 = vpack.c.b16 %v4363, %v4355
        %v5260 = vpack.c.b16 %v4364, %v4356
        %v5261 = vpack.c.b16 %v4365, %v4357
        %v5262 = vpack.c.b16 %v4366, %v4358
        %v5263 = vpack.c.b16 %v4367, %v4359
        %v5264 = vpack.c.b16 %v4376, %v4368
        %v5265 = vpack.c.b16 %v4377, %v4369
        %v5266 = vpack.c.b16 %v4378, %v4370
        %v5267 = vpack.c.b16 %v4379, %v4371
        %v5268 = vpack.c.b16 %v4380, %v4372
        %v5269 = vpack.c.b16 %v4381, %v4373
        %v5270 = vpack.c.b16 %v4382, %v4374
        %v5271 = vpack.c.b16 %v4383, %v4375
        %v5272 = vpack.c.b16 %v4392, %v4384
        %v5273 = vpack.c.b16 %v4393, %v4385
        %v5274 = vpack.c.b16 %v4394, %v4386
        %v5275 = vpack.c.b16 %v4395, %v4387
        %v5276 = vpack.c.b16 %v4396, %v4388
        %v5277 = vpack.c.b16 %v4397, %v4389
        %v5278 = vpack.c.b16 %v4398, %v4390
        %v5279 = vpack.c.b16 %v4399, %v4391
        %v5280 = vpack.c.b16 %v4408, %v4400
        %v5281 = vpack.c.b16 %v4409, %v4401
        %v5282 = vpack.c.b16 %v4410, %v4402
        %v5283 = vpack.c.b16 %v4411, %v4403
        %v5284 = vpack.c.b16 %v4412, %v4404
        %v5285 = vpack.c.b16 %v4413, %v4405
        %v5286 = vpack.c.b16 %v4414, %v4406
        %v5287 = vpack.c.b16 %v4415, %v4407
        %v5288 = vpack.c.b16 %v4424, %v4416
        %v5289 = vpack.c.b16 %v4425, %v4417
        %v5290 = vpack.c.b16 %v4426, %v4418
        %v5291 = vpack.c.b16 %v4427, %v4419
        %v5292 = vpack.c.b16 %v4428, %v4420
        %v5293 = vpack.c.b16 %v4429, %v4421
        %v5294 = vpack.c.b16 %v4430, %v4422
        %v5295 = vpack.c.b16 %v4431, %v4423
        %v5296 = vpack.c.b16 %v4440, %v4432
        %v5297 = vpack.c.b16 %v4441, %v4433
        %v5298 = vpack.c.b16 %v4442, %v4434
        %v5299 = vpack.c.b16 %v4443, %v4435
        %v5300 = vpack.c.b16 %v4444, %v4436
        %v5301 = vpack.c.b16 %v4445, %v4437
        %v5302 = vpack.c.b16 %v4446, %v4438
        %v5303 = vpack.c.b16 %v4447, %v4439
        %v5304 = vpack.c.b16 %v4456, %v4448
        %v5305 = vpack.c.b16 %v4457, %v4449
        %v5306 = vpack.c.b16 %v4458, %v4450
        %v5307 = vpack.c.b16 %v4459, %v4451
        %v5308 = vpack.c.b16 %v4460, %v4452
        %v5309 = vpack.c.b16 %v4461, %v4453
        %v5310 = vpack.c.b16 %v4462, %v4454
        %v5311 = vpack.c.b16 %v4463, %v4455
        %v5312 = vpack.c.b16 %v4472, %v4464
        %v5313 = vpack.c.b16 %v4473, %v4465
        %v5314 = vpack.c.b16 %v4474, %v4466
        %v5315 = vpack.c.b16 %v4475, %v4467
        %v5316 = vpack.c.b16 %v4476, %v4468
        %v5317 = vpack.c.b16 %v4477, %v4469
        %v5318 = vpack.c.b16 %v4478, %v4470
        %v5319 = vpack.c.b16 %v4479, %v4471
        %v5320 = vpack.c.b16 %v4488, %v4480
        %v5321 = vpack.c.b16 %v4489, %v4481
        %v5322 = vpack.c.b16 %v4490, %v4482
        %v5323 = vpack.c.b16 %v4491, %v4483
        %v5324 = vpack.c.b16 %v4492, %v4484
        %v5325 = vpack.c.b16 %v4493, %v4485
        %v5326 = vpack.c.b16 %v4494, %v4486
        %v5327 = vpack.c.b16 %v4495, %v4487
        %v5328 = vpack.c.b16 %v4504, %v4496
        %v5329 = vpack.c.b16 %v4505, %v4497
        %v5330 = vpack.c.b16 %v4506, %v4498
        %v5331 = vpack.c.b16 %v4507, %v4499
        %v5332 = vpack.c.b16 %v4508, %v4500
        %v5333 = vpack.c.b16 %v4509, %v4501
        %v5334 = vpack.c.b16 %v4510, %v4502
        %v5335 = vpack.c.b16 %v4511, %v4503
        %v5336 = vpack.c.b16 %v4520, %v4512
        %v5337 = vpack.c.b16 %v4521, %v4513
        %v5338 = vpack.c.b16 %v4522, %v4514
        %v5339 = vpack.c.b16 %v4523, %v4515
        %v5340 = vpack.c.b16 %v4524, %v4516
        %v5341 = vpack.c.b16 %v4525, %v4517
        %v5342 = vpack.c.b16 %v4526, %v4518
        %v5343 = vpack.c.b16 %v4527, %v4519
        %v5344 = vpack.c.b16 %v4536, %v4528
        %v5345 = vpack.c.b16 %v4537, %v4529
        %v5346 = vpack.c.b16 %v4538, %v4530
        %v5347 = vpack.c.b16 %v4539, %v4531
        %v5348 = vpack.c.b16 %v4540, %v4532
        %v5349 = vpack.c.b16 %v4541, %v4533
        %v5350 = vpack.c.b16 %v4542, %v4534
        %v5351 = vpack.c.b16 %v4543, %v4535
        %v5352 = vpack.c.b16 %v4552, %v4544
        %v5353 = vpack.c.b16 %v4553, %v4545
        %v5354 = vpack.c.b16 %v4554, %v4546
        %v5355 = vpack.c.b16 %v4555, %v4547
        %v5356 = vpack.c.b16 %v4556, %v4548
        %v5357 = vpack.c.b16 %v4557, %v4549
        %v5358 = vpack.c.b16 %v4558, %v4550
        %v5359 = vpack.c.b16 %v4559, %v4551
        %v5360 = vpack.c.b16 %v4568, %v4560
        %v5361 = vpack.c.b16 %v4569, %v4561
        %v5362 = vpack.c.b16 %v4570, %v4562
        %v5363 = vpack.c.b16 %v4571, %v4563
        %v5364 = vpack.c.b16 %v4572, %v4564
        %v5365 = vpack.c.b16 %v4573, %v4565
        %v5366 = vpack.c.b16 %v4574, %v4566
        %v5367 = vpack.c.b16 %v4575, %v4567
        %v5368 = vpack.c.b16 %v4584, %v4576
        %v5369 = vpack.c.b16 %v4585, %v4577
        %v5370 = vpack.c.b16 %v4586, %v4578
        %v5371 = vpack.c.b16 %v4587, %v4579
        %v5372 = vpack.c.b16 %v4588, %v4580
        %v5373 = vpack.c.b16 %v4589, %v4581
        %v5374 = vpack.c.b16 %v4590, %v4582
        %v5375 = vpack.c.b16 %v4591, %v4583
        %v5376 = vpack.c.b16 %v4600, %v4592
        %v5377 = vpack.c.b16 %v4601, %v4593
        %v5378 = vpack.c.b16 %v4602, %v4594
        %v5379 = vpack.c.b16 %v4603, %v4595
        %v5380 = vpack.c.b16 %v4604, %v4596
        %v5381 = vpack.c.b16 %v4605, %v4597
        %v5382 = vpack.c.b16 %v4606, %v4598
        %v5383 = vpack.c.b16 %v4607, %v4599
        %v5384 = vpack.c.b16 %v4616, %v4608
        %v5385 = vpack.c.b16 %v4617, %v4609
        %v5386 = vpack.c.b16 %v4618, %v4610
        %v5387 = vpack.c.b16 %v4619, %v4611
        %v5388 = vpack.c.b16 %v4620, %v4612
        %v5389 = vpack.c.b16 %v4621, %v4613
        %v5390 = vpack.c.b16 %v4622, %v4614
        %v5391 = vpack.c.b16 %v4623, %v4615
        %v5392 = vpack.c.b16 %v4632, %v4624
        %v5393 = vpack.c.b16 %v4633, %v4625
        %v5394 = vpack.c.b16 %v4634, %v4626
        %v5395 = vpack.c.b16 %v4635, %v4627
        %v5396 = vpack.c.b16 %v4636, %v4628
        %v5397 = vpack.c.b16 %v4637, %v4629
        %v5398 = vpack.c.b16 %v4638, %v4630
        %v5399 = vpack.c.b16 %v4639, %v4631
        %v5400 = vpack.c.b16 %v4648, %v4640
        %v5401 = vpack.c.b16 %v4649, %v4641
        %v5402 = vpack.c.b16 %v4650, %v4642
        %v5403 = vpack.c.b16 %v4651, %v4643
        %v5404 = vpack.c.b16 %v4652, %v4644
        %v5405 = vpack.c.b16 %v4653, %v4645
        %v5406 = vpack.c.b16 %v4654, %v4646
        %v5407 = vpack.c.b16 %v4655, %v4647
        %v5408 = vpack.c.b16 %v4664, %v4656
        %v5409 = vpack.c.b16 %v4665, %v4657
        %v5410 = vpack.c.b16 %v4666, %v4658
        %v5411 = vpack.c.b16 %v4667, %v4659
        %v5412 = vpack.c.b16 %v4668, %v4660
        %v5413 = vpack.c.b16 %v4669, %v4661
        %v5414 = vpack.c.b16 %v4670, %v4662
        %v5415 = vpack.c.b16 %v4671, %v4663
        %v5416 = vpack.c.b16 %v4680, %v4672
        %v5417 = vpack.c.b16 %v4681, %v4673
        %v5418 = vpack.c.b16 %v4682, %v4674
        %v5419 = vpack.c.b16 %v4683, %v4675
        %v5420 = vpack.c.b16 %v4684, %v4676
        %v5421 = vpack.c.b16 %v4685, %v4677
        %v5422 = vpack.c.b16 %v4686, %v4678
        %v5423 = vpack.c.b16 %v4687, %v4679
        %v5424 = vpack.c.b16 %v4696, %v4688
        %v5425 = vpack.c.b16 %v4697, %v4689
        %v5426 = vpack.c.b16 %v4698, %v4690
        %v5427 = vpack.c.b16 %v4699, %v4691
        %v5428 = vpack.c.b16 %v4700, %v4692
        %v5429 = vpack.c.b16 %v4701, %v4693
        %v5430 = vpack.c.b16 %v4702, %v4694
        %v5431 = vpack.c.b16 %v4703, %v4695
        %v5432 = vpack.c.b16 %v4712, %v4704
        %v5433 = vpack.c.b16 %v4713, %v4705
        %v5434 = vpack.c.b16 %v4714, %v4706
        %v5435 = vpack.c.b16 %v4715, %v4707
        %v5436 = vpack.c.b16 %v4716, %v4708
        %v5437 = vpack.c.b16 %v4717, %v4709
        %v5438 = vpack.c.b16 %v4718, %v4710
        %v5439 = vpack.c.b16 %v4719, %v4711
        %v5440 = vpack.c.b16 %v4728, %v4720
        %v5441 = vpack.c.b16 %v4729, %v4721
        %v5442 = vpack.c.b16 %v4730, %v4722
        %v5443 = vpack.c.b16 %v4731, %v4723
        %v5444 = vpack.c.b16 %v4732, %v4724
        %v5445 = vpack.c.b16 %v4733, %v4725
        %v5446 = vpack.c.b16 %v4734, %v4726
        %v5447 = vpack.c.b16 %v4735, %v4727
        %v5448 = vpack.c.b16 %v4744, %v4736
        %v5449 = vpack.c.b16 %v4745, %v4737
        %v5450 = vpack.c.b16 %v4746, %v4738
        %v5451 = vpack.c.b16 %v4747, %v4739
        %v5452 = vpack.c.b16 %v4748, %v4740
        %v5453 = vpack.c.b16 %v4749, %v4741
        %v5454 = vpack.c.b16 %v4750, %v4742
        %v5455 = vpack.c.b16 %v4751, %v4743
        %v5456 = vpack.c.b16 %v4760, %v4752
        %v5457 = vpack.c.b16 %v4761, %v4753
        %v5458 = vpack.c.b16 %v4762, %v4754
        %v5459 = vpack.c.b16 %v4763, %v4755
        %v5460 = vpack.c.b16 %v4764, %v4756
        %v5461 = vpack.c.b16 %v4765, %v4757
        %v5462 = vpack.c.b16 %v4766, %v4758
        %v5463 = vpack.c.b16 %v4767, %v4759
        %v5464 = vpack.c.b16 %v4776, %v4768
        %v5465 = vpack.c.b16 %v4777, %v4769
        %v5466 = vpack.c.b16 %v4778, %v4770
        %v5467 = vpack.c.b16 %v4779, %v4771
        %v5468 = vpack.c.b16 %v4780, %v4772
        %v5469 = vpack.c.b16 %v4781, %v4773
        %v5470 = vpack.c.b16 %v4782, %v4774
        %v5471 = vpack.c.b16 %v4783, %v4775
        %v5472 = vpack.c.b16 %v4792, %v4784
        %v5473 = vpack.c.b16 %v4793, %v4785
        %v5474 = vpack.c.b16 %v4794, %v4786
        %v5475 = vpack.c.b16 %v4795, %v4787
        %v5476 = vpack.c.b16 %v4796, %v4788
        %v5477 = vpack.c.b16 %v4797, %v4789
        %v5478 = vpack.c.b16 %v4798, %v4790
        %v5479 = vpack.c.b16 %v4799, %v4791
        %v5480 = vpack.c.b16 %v4808, %v4800
        %v5481 = vpack.c.b16 %v4809, %v4801
        %v5482 = vpack.c.b16 %v4810, %v4802
        %v5483 = vpack.c.b16 %v4811, %v4803
        %v5484 = vpack.c.b16 %v4812, %v4804
        %v5485 = vpack.c.b16 %v4813, %v4805
        %v5486 = vpack.c.b16 %v4814, %v4806
        %v5487 = vpack.c.b16 %v4815, %v4807
        %v5488 = vpack.c.b16 %v4824, %v4816
        %v5489 = vpack.c.b16 %v4825, %v4817
        %v5490 = vpack.c.b16 %v4826, %v4818
        %v5491 = vpack.c.b16 %v4827, %v4819
        %v5492 = vpack.c.b16 %v4828, %v4820
        %v5493 = vpack.c.b16 %v4829, %v4821
        %v5494 = vpack.c.b16 %v4830, %v4822
        %v5495 = vpack.c.b16 %v4831, %v4823
        %v5496 = vpack.c.b16 %v4840, %v4832
        %v5497 = vpack.c.b16 %v4841, %v4833
        %v5498 = vpack.c.b16 %v4842, %v4834
        %v5499 = vpack.c.b16 %v4843, %v4835
        %v5500 = vpack.c.b16 %v4844, %v4836
        %v5501 = vpack.c.b16 %v4845, %v4837
        %v5502 = vpack.c.b16 %v4846, %v4838
        %v5503 = vpack.c.b16 %v4847, %v4839
        %v5504 = vpack.c.b16 %v4856, %v4848
        %v5505 = vpack.c.b16 %v4857, %v4849
        %v5506 = vpack.c.b16 %v4858, %v4850
        %v5507 = vpack.c.b16 %v4859, %v4851
        %v5508 = vpack.c.b16 %v4860, %v4852
        %v5509 = vpack.c.b16 %v4861, %v4853
        %v5510 = vpack.c.b16 %v4862, %v4854
        %v5511 = vpack.c.b16 %v4863, %v4855
        %v5512 = vpack.c.b16 %v4872, %v4864
        %v5513 = vpack.c.b16 %v4873, %v4865
        %v5514 = vpack.c.b16 %v4874, %v4866
        %v5515 = vpack.c.b16 %v4875, %v4867
        %v5516 = vpack.c.b16 %v4876, %v4868
        %v5517 = vpack.c.b16 %v4877, %v4869
        %v5518 = vpack.c.b16 %v4878, %v4870
        %v5519 = vpack.c.b16 %v4879, %v4871
        %v5520 = vpack.c.b16 %v4888, %v4880
        %v5521 = vpack.c.b16 %v4889, %v4881
        %v5522 = vpack.c.b16 %v4890, %v4882
        %v5523 = vpack.c.b16 %v4891, %v4883
        %v5524 = vpack.c.b16 %v4892, %v4884
        %v5525 = vpack.c.b16 %v4893, %v4885
        %v5526 = vpack.c.b16 %v4894, %v4886
        %v5527 = vpack.c.b16 %v4895, %v4887
        %v5528 = vpack.c.b16 %v4904, %v4896
        %v5529 = vpack.c.b16 %v4905, %v4897
        %v5530 = vpack.c.b16 %v4906, %v4898
        %v5531 = vpack.c.b16 %v4907, %v4899
        %v5532 = vpack.c.b16 %v4908, %v4900
        %v5533 = vpack.c.b16 %v4909, %v4901
        %v5534 = vpack.c.b16 %v4910, %v4902
        %v5535 = vpack.c.b16 %v4911, %v4903
        %v5536 = vpack.c.b16 %v4920, %v4912
        %v5537 = vpack.c.b16 %v4921, %v4913
        %v5538 = vpack.c.b16 %v4922, %v4914
        %v5539 = vpack.c.b16 %v4923, %v4915
        %v5540 = vpack.c.b16 %v4924, %v4916
        %v5541 = vpack.c.b16 %v4925, %v4917
        %v5542 = vpack.c.b16 %v4926, %v4918
        %v5543 = vpack.c.b16 %v4927, %v4919
        %v5544 = vpack.c.b16 %v4936, %v4928
        %v5545 = vpack.c.b16 %v4937, %v4929
        %v5546 = vpack.c.b16 %v4938, %v4930
        %v5547 = vpack.c.b16 %v4939, %v4931
        %v5548 = vpack.c.b16 %v4940, %v4932
        %v5549 = vpack.c.b16 %v4941, %v4933
        %v5550 = vpack.c.b16 %v4942, %v4934
        %v5551 = vpack.c.b16 %v4943, %v4935
        %v5552 = vpack.c.b16 %v4952, %v4944
        %v5553 = vpack.c.b16 %v4953, %v4945
        %v5554 = vpack.c.b16 %v4954, %v4946
        %v5555 = vpack.c.b16 %v4955, %v4947
        %v5556 = vpack.c.b16 %v4956, %v4948
        %v5557 = vpack.c.b16 %v4957, %v4949
        %v5558 = vpack.c.b16 %v4958, %v4950
        %v5559 = vpack.c.b16 %v4959, %v4951
        %v5560 = vpack.c.b16 %v4968, %v4960
        %v5561 = vpack.c.b16 %v4969, %v4961
        %v5562 = vpack.c.b16 %v4970, %v4962
        %v5563 = vpack.c.b16 %v4971, %v4963
        %v5564 = vpack.c.b16 %v4972, %v4964
        %v5565 = vpack.c.b16 %v4973, %v4965
        %v5566 = vpack.c.b16 %v4974, %v4966
        %v5567 = vpack.c.b16 %v4975, %v4967
        %v5568 = vpack.c.b16 %v4984, %v4976
        %v5569 = vpack.c.b16 %v4985, %v4977
        %v5570 = vpack.c.b16 %v4986, %v4978
        %v5571 = vpack.c.b16 %v4987, %v4979
        %v5572 = vpack.c.b16 %v4988, %v4980
        %v5573 = vpack.c.b16 %v4989, %v4981
        %v5574 = vpack.c.b16 %v4990, %v4982
        %v5575 = vpack.c.b16 %v4991, %v4983
        %v5576 = vpack.c.b16 %v5000, %v4992
        %v5577 = vpack.c.b16 %v5001, %v4993
        %v5578 = vpack.c.b16 %v5002, %v4994
        %v5579 = vpack.c.b16 %v5003, %v4995
        %v5580 = vpack.c.b16 %v5004, %v4996
        %v5581 = vpack.c.b16 %v5005, %v4997
        %v5582 = vpack.c.b16 %v5006, %v4998
        %v5583 = vpack.c.b16 %v5007, %v4999
        %v5584 = vpack.c.b16 %v5016, %v5008
        %v5585 = vpack.c.b16 %v5017, %v5009
        %v5586 = vpack.c.b16 %v5018, %v5010
        %v5587 = vpack.c.b16 %v5019, %v5011
        %v5588 = vpack.c.b16 %v5020, %v5012
        %v5589 = vpack.c.b16 %v5021, %v5013
        %v5590 = vpack.c.b16 %v5022, %v5014
        %v5591 = vpack.c.b16 %v5023, %v5015
        %v5592 = vpack.c.b16 %v5032, %v5024
        %v5593 = vpack.c.b16 %v5033, %v5025
        %v5594 = vpack.c.b16 %v5034, %v5026
        %v5595 = vpack.c.b16 %v5035, %v5027
        %v5596 = vpack.c.b16 %v5036, %v5028
        %v5597 = vpack.c.b16 %v5037, %v5029
        %v5598 = vpack.c.b16 %v5038, %v5030
        %v5599 = vpack.c.b16 %v5039, %v5031
        %v5600 = vpack.c.b16 %v5048, %v5040
        %v5601 = vpack.c.b16 %v5049, %v5041
        %v5602 = vpack.c.b16 %v5050, %v5042
        %v5603 = vpack.c.b16 %v5051, %v5043
        %v5604 = vpack.c.b16 %v5052, %v5044
        %v5605 = vpack.c.b16 %v5053, %v5045
        %v5606 = vpack.c.b16 %v5054, %v5046
        %v5607 = vpack.c.b16 %v5055, %v5047
        %v5608 = vpack.c.b16 %v5064, %v5056
        %v5609 = vpack.c.b16 %v5065, %v5057
        %v5610 = vpack.c.b16 %v5066, %v5058
        %v5611 = vpack.c.b16 %v5067, %v5059
        %v5612 = vpack.c.b16 %v5068, %v5060
        %v5613 = vpack.c.b16 %v5069, %v5061
        %v5614 = vpack.c.b16 %v5070, %v5062
        %v5615 = vpack.c.b16 %v5071, %v5063
        %v5616 = vpack.c.b16 %v5080, %v5072
        %v5617 = vpack.c.b16 %v5081, %v5073
        %v5618 = vpack.c.b16 %v5082, %v5074
        %v5619 = vpack.c.b16 %v5083, %v5075
        %v5620 = vpack.c.b16 %v5084, %v5076
        %v5621 = vpack.c.b16 %v5085, %v5077
        %v5622 = vpack.c.b16 %v5086, %v5078
        %v5623 = vpack.c.b16 %v5087, %v5079
        %v5624 = vpack.c.b16 %v5096, %v5088
        %v5625 = vpack.c.b16 %v5097, %v5089
        %v5626 = vpack.c.b16 %v5098, %v5090
        %v5627 = vpack.c.b16 %v5099, %v5091
        %v5628 = vpack.c.b16 %v5100, %v5092
        %v5629 = vpack.c.b16 %v5101, %v5093
        %v5630 = vpack.c.b16 %v5102, %v5094
        %v5631 = vpack.c.b16 %v5103, %v5095
        %v5632 = vpack.c.b16 %v5112, %v5104
        %v5633 = vpack.c.b16 %v5113, %v5105
        %v5634 = vpack.c.b16 %v5114, %v5106
        %v5635 = vpack.c.b16 %v5115, %v5107
        %v5636 = vpack.c.b16 %v5116, %v5108
        %v5637 = vpack.c.b16 %v5117, %v5109
        %v5638 = vpack.c.b16 %v5118, %v5110
        %v5639 = vpack.c.b16 %v5119, %v5111
        %v5640 = vpack.c.b16 %v5128, %v5120
        %v5641 = vpack.c.b16 %v5129, %v5121
        %v5642 = vpack.c.b16 %v5130, %v5122
        %v5643 = vpack.c.b16 %v5131, %v5123
        %v5644 = vpack.c.b16 %v5132, %v5124
        %v5645 = vpack.c.b16 %v5133, %v5125
        %v5646 = vpack.c.b16 %v5134, %v5126
        %v5647 = vpack.c.b16 %v5135, %v5127
        %6160 = vmatprep.subr.bf16.mxu0 %v5137
        %6161 = vmatpush1.bf16.msra.mxu0 %v5136
        %6162 = vmatprep.subr.bf16.mxu0 %v5145
        %6163 = vmatpush1.bf16.msra.mxu0 %v5144
        %6164 = vmatprep.subr.bf16.mxu0 %v5153
        %6165 = vmatpush1.bf16.msra.mxu0 %v5152
        %6166 = vmatprep.subr.bf16.mxu0 %v5161
        %6167 = vmatpush1.bf16.msra.mxu0 %v5160
        %6168 = vmatprep.subr.bf16.mxu0 %v5169
        %6169 = vmatpush1.bf16.msra.mxu0 %v5168
        %6170 = vmatprep.subr.bf16.mxu0 %v5177
        %6171 = vmatpush1.bf16.msra.mxu0 %v5176
        %6172 = vmatprep.subr.bf16.mxu0 %v5185
        %6173 = vmatpush1.bf16.msra.mxu0 %v5184
        %6174 = vmatprep.subr.bf16.mxu0 %v5193
        %6175 = vmatpush1.bf16.msra.mxu0 %v5192
        %6176 = vmatprep.subr.bf16.mxu0 %v5201
        %6177 = vmatpush1.bf16.msra.mxu0 %v5200
        %6178 = vmatprep.subr.bf16.mxu0 %v5209
        %6179 = vmatpush1.bf16.msra.mxu0 %v5208
        %6180 = vmatprep.subr.bf16.mxu0 %v5217
        %6181 = vmatpush1.bf16.msra.mxu0 %v5216
        %6182 = vmatprep.subr.bf16.mxu0 %v5225
        %6183 = vmatpush1.bf16.msra.mxu0 %v5224
        %6184 = vmatprep.subr.bf16.mxu0 %v5233
        %6185 = vmatpush1.bf16.msra.mxu0 %v5232
        %6186 = vmatprep.subr.bf16.mxu0 %v5241
        %6187 = vmatpush1.bf16.msra.mxu0 %v5240
        %6188 = vmatprep.subr.bf16.mxu0 %v5249
        %6189 = vmatpush1.bf16.msra.mxu0 %v5248
        %6190 = vmatprep.subr.bf16.mxu0 %v5257
        %6191 = vmatpush1.bf16.msra.mxu0 %v5256
        %6192 = vmatprep.mubr.bf16.mxu0 %v3039
        %6193 = vmatmul.mubr.bf16.gmra.mrb[0].mxu0 %v3038
        %v6194 = vpop.f32.mrb[0].mxu0
        %v6195 = vadd.f32 %v3563, %v6194
        %v6196 = vpop.f32.mrb[0].mxu0
        %v6197 = vadd.f32 %v3567, %v6196
        %v6198 = vpop.f32.mrb[0].mxu0
        %v6199 = vpop.f32.mrb[0].mxu0
        %6200 = vdwg.mxu0
        %6201 = vmatprep.subr.bf16.mxu0 %v5265
        %6202 = vmatpush1.bf16.msra.mxu0 %v5264
        %6203 = vmatprep.subr.bf16.mxu0 %v5273
        %6204 = vmatpush1.bf16.msra.mxu0 %v5272
        %6205 = vmatprep.subr.bf16.mxu0 %v5281
        %6206 = vmatpush1.bf16.msra.mxu0 %v5280
        %6207 = vmatprep.subr.bf16.mxu0 %v5289
        %6208 = vmatpush1.bf16.msra.mxu0 %v5288
        %6209 = vmatprep.subr.bf16.mxu0 %v5297
        %6210 = vmatpush1.bf16.msra.mxu0 %v5296
        %6211 = vmatprep.subr.bf16.mxu0 %v5305
        %6212 = vmatpush1.bf16.msra.mxu0 %v5304
        %6213 = vmatprep.subr.bf16.mxu0 %v5313
        %6214 = vmatpush1.bf16.msra.mxu0 %v5312
        %6215 = vmatprep.subr.bf16.mxu0 %v5321
        %6216 = vmatpush1.bf16.msra.mxu0 %v5320
        %6217 = vmatprep.subr.bf16.mxu0 %v5329
        %6218 = vmatpush1.bf16.msra.mxu0 %v5328
        %6219 = vmatprep.subr.bf16.mxu0 %v5337
        %6220 = vmatpush1.bf16.msra.mxu0 %v5336
        %6221 = vmatprep.subr.bf16.mxu0 %v5345
        %6222 = vmatpush1.bf16.msra.mxu0 %v5344
        %6223 = vmatprep.subr.bf16.mxu0 %v5353
        %6224 = vmatpush1.bf16.msra.mxu0 %v5352
        %6225 = vmatprep.subr.bf16.mxu0 %v5361
        %6226 = vmatpush1.bf16.msra.mxu0 %v5360
        %6227 = vmatprep.subr.bf16.mxu0 %v5369
        %6228 = vmatpush1.bf16.msra.mxu0 %v5368
        %6229 = vmatprep.subr.bf16.mxu0 %v5377
        %6230 = vmatpush1.bf16.msra.mxu0 %v5376
        %6231 = vmatprep.subr.bf16.mxu0 %v5385
        %6232 = vmatpush1.bf16.msra.mxu0 %v5384
        %6233 = vmatprep.mubr.bf16.mxu0 %v3041
        %6234 = vmatmul.mubr.bf16.gmra.mrb[0].mxu0 %v3040
        %v6235 = vpop.f32.mrb[0].mxu0
        %v6236 = vadd.f32 %v6195, %v6235
        %v6237 = vpop.f32.mrb[0].mxu0
        %v6238 = vadd.f32 %v6197, %v6237
        %v6239 = vpop.f32.mrb[0].mxu0
        %v6240 = vpop.f32.mrb[0].mxu0
        %6241 = vdwg.mxu0
        %6242 = vmatprep.subr.bf16.mxu0 %v5393
        %6243 = vmatpush1.bf16.msra.mxu0 %v5392
        %6244 = vmatprep.subr.bf16.mxu0 %v5401
        %6245 = vmatpush1.bf16.msra.mxu0 %v5400
        %6246 = vmatprep.subr.bf16.mxu0 %v5409
        %6247 = vmatpush1.bf16.msra.mxu0 %v5408
        %6248 = vmatprep.subr.bf16.mxu0 %v5417
        %6249 = vmatpush1.bf16.msra.mxu0 %v5416
        %6250 = vmatprep.subr.bf16.mxu0 %v5425
        %6251 = vmatpush1.bf16.msra.mxu0 %v5424
        %6252 = vmatprep.subr.bf16.mxu0 %v5433
        %6253 = vmatpush1.bf16.msra.mxu0 %v5432
        %6254 = vmatprep.subr.bf16.mxu0 %v5441
        %6255 = vmatpush1.bf16.msra.mxu0 %v5440
        %6256 = vmatprep.subr.bf16.mxu0 %v5449
        %6257 = vmatpush1.bf16.msra.mxu0 %v5448
        %6258 = vmatprep.subr.bf16.mxu0 %v5457
        %6259 = vmatpush1.bf16.msra.mxu0 %v5456
        %6260 = vmatprep.subr.bf16.mxu0 %v5465
        %6261 = vmatpush1.bf16.msra.mxu0 %v5464
        %6262 = vmatprep.subr.bf16.mxu0 %v5473
        %6263 = vmatpush1.bf16.msra.mxu0 %v5472
        %6264 = vmatprep.subr.bf16.mxu0 %v5481
        %6265 = vmatpush1.bf16.msra.mxu0 %v5480
        %6266 = vmatprep.subr.bf16.mxu0 %v5489
        %6267 = vmatpush1.bf16.msra.mxu0 %v5488
        %6268 = vmatprep.subr.bf16.mxu0 %v5497
        %6269 = vmatpush1.bf16.msra.mxu0 %v5496
        %6270 = vmatprep.subr.bf16.mxu0 %v5505
        %6271 = vmatpush1.bf16.msra.mxu0 %v5504
        %6272 = vmatprep.subr.bf16.mxu0 %v5513
        %6273 = vmatpush1.bf16.msra.mxu0 %v5512
        %6274 = vmatprep.mubr.bf16.mxu0 %v3043
        %6275 = vmatmul.mubr.bf16.gmra.mrb[0].mxu0 %v3042
        %v6276 = vpop.f32.mrb[0].mxu0
        %v6277 = vadd.f32 %v6236, %v6276
        %v6278 = vpop.f32.mrb[0].mxu0
        %v6279 = vadd.f32 %v6238, %v6278
        %v6280 = vpop.f32.mrb[0].mxu0
        %v6281 = vpop.f32.mrb[0].mxu0
        %6282 = vdwg.mxu0
        %6283 = vmatprep.subr.bf16.mxu0 %v5521
        %6284 = vmatpush1.bf16.msra.mxu0 %v5520
        %6285 = vmatprep.subr.bf16.mxu0 %v5529
        %6286 = vmatpush1.bf16.msra.mxu0 %v5528
        %6287 = vmatprep.subr.bf16.mxu0 %v5537
        %6288 = vmatpush1.bf16.msra.mxu0 %v5536
        %6289 = vmatprep.subr.bf16.mxu0 %v5545
        %6290 = vmatpush1.bf16.msra.mxu0 %v5544
        %6291 = vmatprep.subr.bf16.mxu0 %v5553
        %6292 = vmatpush1.bf16.msra.mxu0 %v5552
        %6293 = vmatprep.subr.bf16.mxu0 %v5561
        %6294 = vmatpush1.bf16.msra.mxu0 %v5560
        %6295 = vmatprep.subr.bf16.mxu0 %v5569
        %6296 = vmatpush1.bf16.msra.mxu0 %v5568
        %6297 = vmatprep.subr.bf16.mxu0 %v5577
        %6298 = vmatpush1.bf16.msra.mxu0 %v5576
        %6299 = vmatprep.subr.bf16.mxu0 %v5585
        %6300 = vmatpush1.bf16.msra.mxu0 %v5584
        %6301 = vmatprep.subr.bf16.mxu0 %v5593
        %6302 = vmatpush1.bf16.msra.mxu0 %v5592
        %6303 = vmatprep.subr.bf16.mxu0 %v5601
        %6304 = vmatpush1.bf16.msra.mxu0 %v5600
        %6305 = vmatprep.subr.bf16.mxu0 %v5609
        %6306 = vmatpush1.bf16.msra.mxu0 %v5608
        %6307 = vmatprep.subr.bf16.mxu0 %v5617
        %6308 = vmatpush1.bf16.msra.mxu0 %v5616
        %6309 = vmatprep.subr.bf16.mxu0 %v5625
        %6310 = vmatpush1.bf16.msra.mxu0 %v5624
        %6311 = vmatprep.subr.bf16.mxu0 %v5633
        %6312 = vmatpush1.bf16.msra.mxu0 %v5632
        %6313 = vmatprep.subr.bf16.mxu0 %v5641
        %6314 = vmatpush1.bf16.msra.mxu0 %v5640
        %6315 = vmatprep.mubr.bf16.mxu0 %v3045
        %6316 = vmatmul.mubr.bf16.gmra.mrb[0].mxu0 %v3044
        %v6317 = vpop.f32.mrb[0].mxu0
        %v6318 = vadd.f32 %v6277, %v6317
        %v6319 = vpop.f32.mrb[0].mxu0
        %v6320 = vadd.f32 %v6279, %v6319
        %v6321 = vpop.f32.mrb[0].mxu0
        %v6322 = vpop.f32.mrb[0].mxu0
        %6323 = vdwg.mxu0
        %6324 = vmatprep.subr.bf16.mxu0 %v5139
        %6325 = vmatpush1.bf16.msra.mxu0 %v5138
        %6326 = vmatprep.subr.bf16.mxu0 %v5147
        %6327 = vmatpush1.bf16.msra.mxu0 %v5146
        %6328 = vmatprep.subr.bf16.mxu0 %v5155
        %6329 = vmatpush1.bf16.msra.mxu0 %v5154
        %6330 = vmatprep.subr.bf16.mxu0 %v5163
        %6331 = vmatpush1.bf16.msra.mxu0 %v5162
        %6332 = vmatprep.subr.bf16.mxu0 %v5171
        %6333 = vmatpush1.bf16.msra.mxu0 %v5170
        %6334 = vmatprep.subr.bf16.mxu0 %v5179
        %6335 = vmatpush1.bf16.msra.mxu0 %v5178
        %6336 = vmatprep.subr.bf16.mxu0 %v5187
        %6337 = vmatpush1.bf16.msra.mxu0 %v5186
        %6338 = vmatprep.subr.bf16.mxu0 %v5195
        %6339 = vmatpush1.bf16.msra.mxu0 %v5194
        %6340 = vmatprep.subr.bf16.mxu0 %v5203
        %6341 = vmatpush1.bf16.msra.mxu0 %v5202
        %6342 = vmatprep.subr.bf16.mxu0 %v5211
        %6343 = vmatpush1.bf16.msra.mxu0 %v5210
        %6344 = vmatprep.subr.bf16.mxu0 %v5219
        %6345 = vmatpush1.bf16.msra.mxu0 %v5218
        %6346 = vmatprep.subr.bf16.mxu0 %v5227
        %6347 = vmatpush1.bf16.msra.mxu0 %v5226
        %6348 = vmatprep.subr.bf16.mxu0 %v5235
        %6349 = vmatpush1.bf16.msra.mxu0 %v5234
        %6350 = vmatprep.subr.bf16.mxu0 %v5243
        %6351 = vmatpush1.bf16.msra.mxu0 %v5242
        %6352 = vmatprep.subr.bf16.mxu0 %v5251
        %6353 = vmatpush1.bf16.msra.mxu0 %v5250
        %6354 = vmatprep.subr.bf16.mxu0 %v5259
        %6355 = vmatpush1.bf16.msra.mxu0 %v5258
        %6356 = vmatprep.mubr.bf16.mxu0 %v3039
        %6357 = vmatmul.mubr.bf16.gmra.mrb[0].mxu0 %v3038
        %v6358 = vpop.f32.mrb[0].mxu0
        %v6359 = vadd.f32 %v3571, %v6358
        %v6360 = vpop.f32.mrb[0].mxu0
        %v6361 = vadd.f32 %v3575, %v6360
        %v6362 = vpop.f32.mrb[0].mxu0
        %v6363 = vpop.f32.mrb[0].mxu0
        %6364 = vdwg.mxu0
        %6365 = vmatprep.subr.bf16.mxu0 %v5267
        %6366 = vmatpush1.bf16.msra.mxu0 %v5266
        %6367 = vmatprep.subr.bf16.mxu0 %v5275
        %6368 = vmatpush1.bf16.msra.mxu0 %v5274
        %6369 = vmatprep.subr.bf16.mxu0 %v5283
        %6370 = vmatpush1.bf16.msra.mxu0 %v5282
        %6371 = vmatprep.subr.bf16.mxu0 %v5291
        %6372 = vmatpush1.bf16.msra.mxu0 %v5290
        %6373 = vmatprep.subr.bf16.mxu0 %v5299
        %6374 = vmatpush1.bf16.msra.mxu0 %v5298
        %6375 = vmatprep.subr.bf16.mxu0 %v5307
        %6376 = vmatpush1.bf16.msra.mxu0 %v5306
        %6377 = vmatprep.subr.bf16.mxu0 %v5315
        %6378 = vmatpush1.bf16.msra.mxu0 %v5314
        %6379 = vmatprep.subr.bf16.mxu0 %v5323
        %6380 = vmatpush1.bf16.msra.mxu0 %v5322
        %6381 = vmatprep.subr.bf16.mxu0 %v5331
        %6382 = vmatpush1.bf16.msra.mxu0 %v5330
        %6383 = vmatprep.subr.bf16.mxu0 %v5339
        %6384 = vmatpush1.bf16.msra.mxu0 %v5338
        %6385 = vmatprep.subr.bf16.mxu0 %v5347
        %6386 = vmatpush1.bf16.msra.mxu0 %v5346
        %6387 = vmatprep.subr.bf16.mxu0 %v5355
        %6388 = vmatpush1.bf16.msra.mxu0 %v5354
        %6389 = vmatprep.subr.bf16.mxu0 %v5363
        %6390 = vmatpush1.bf16.msra.mxu0 %v5362
        %6391 = vmatprep.subr.bf16.mxu0 %v5371
        %6392 = vmatpush1.bf16.msra.mxu0 %v5370
        %6393 = vmatprep.subr.bf16.mxu0 %v5379
        %6394 = vmatpush1.bf16.msra.mxu0 %v5378
        %6395 = vmatprep.subr.bf16.mxu0 %v5387
        %6396 = vmatpush1.bf16.msra.mxu0 %v5386
        %6397 = vmatprep.mubr.bf16.mxu0 %v3041
        %6398 = vmatmul.mubr.bf16.gmra.mrb[0].mxu0 %v3040
        %v6399 = vpop.f32.mrb[0].mxu0
        %v6400 = vadd.f32 %v6359, %v6399
        %v6401 = vpop.f32.mrb[0].mxu0
        %v6402 = vadd.f32 %v6361, %v6401
        %v6403 = vpop.f32.mrb[0].mxu0
        %v6404 = vpop.f32.mrb[0].mxu0
        %6405 = vdwg.mxu0
        %6406 = vmatprep.subr.bf16.mxu0 %v5395
        %6407 = vmatpush1.bf16.msra.mxu0 %v5394
        %6408 = vmatprep.subr.bf16.mxu0 %v5403
        %6409 = vmatpush1.bf16.msra.mxu0 %v5402
        %6410 = vmatprep.subr.bf16.mxu0 %v5411
        %6411 = vmatpush1.bf16.msra.mxu0 %v5410
        %6412 = vmatprep.subr.bf16.mxu0 %v5419
        %6413 = vmatpush1.bf16.msra.mxu0 %v5418
        %6414 = vmatprep.subr.bf16.mxu0 %v5427
        %6415 = vmatpush1.bf16.msra.mxu0 %v5426
        %6416 = vmatprep.subr.bf16.mxu0 %v5435
        %6417 = vmatpush1.bf16.msra.mxu0 %v5434
        %6418 = vmatprep.subr.bf16.mxu0 %v5443
        %6419 = vmatpush1.bf16.msra.mxu0 %v5442
        %6420 = vmatprep.subr.bf16.mxu0 %v5451
        %6421 = vmatpush1.bf16.msra.mxu0 %v5450
        %6422 = vmatprep.subr.bf16.mxu0 %v5459
        %6423 = vmatpush1.bf16.msra.mxu0 %v5458
        %6424 = vmatprep.subr.bf16.mxu0 %v5467
        %6425 = vmatpush1.bf16.msra.mxu0 %v5466
        %6426 = vmatprep.subr.bf16.mxu0 %v5475
        %6427 = vmatpush1.bf16.msra.mxu0 %v5474
        %6428 = vmatprep.subr.bf16.mxu0 %v5483
        %6429 = vmatpush1.bf16.msra.mxu0 %v5482
        %6430 = vmatprep.subr.bf16.mxu0 %v5491
        %6431 = vmatpush1.bf16.msra.mxu0 %v5490
        %6432 = vmatprep.subr.bf16.mxu0 %v5499
        %6433 = vmatpush1.bf16.msra.mxu0 %v5498
        %6434 = vmatprep.subr.bf16.mxu0 %v5507
        %6435 = vmatpush1.bf16.msra.mxu0 %v5506
        %6436 = vmatprep.subr.bf16.mxu0 %v5515
        %6437 = vmatpush1.bf16.msra.mxu0 %v5514
        %6438 = vmatprep.mubr.bf16.mxu0 %v3043
        %6439 = vmatmul.mubr.bf16.gmra.mrb[0].mxu0 %v3042
        %v6440 = vpop.f32.mrb[0].mxu0
        %v6441 = vadd.f32 %v6400, %v6440
        %v6442 = vpop.f32.mrb[0].mxu0
        %v6443 = vadd.f32 %v6402, %v6442
        %v6444 = vpop.f32.mrb[0].mxu0
        %v6445 = vpop.f32.mrb[0].mxu0
        %6446 = vdwg.mxu0
        %6447 = vmatprep.subr.bf16.mxu0 %v5523
        %6448 = vmatpush1.bf16.msra.mxu0 %v5522
        %6449 = vmatprep.subr.bf16.mxu0 %v5531
        %6450 = vmatpush1.bf16.msra.mxu0 %v5530
        %6451 = vmatprep.subr.bf16.mxu0 %v5539
        %6452 = vmatpush1.bf16.msra.mxu0 %v5538
        %6453 = vmatprep.subr.bf16.mxu0 %v5547
        %6454 = vmatpush1.bf16.msra.mxu0 %v5546
        %6455 = vmatprep.subr.bf16.mxu0 %v5555
        %6456 = vmatpush1.bf16.msra.mxu0 %v5554
        %6457 = vmatprep.subr.bf16.mxu0 %v5563
        %6458 = vmatpush1.bf16.msra.mxu0 %v5562
        %6459 = vmatprep.subr.bf16.mxu0 %v5571
        %6460 = vmatpush1.bf16.msra.mxu0 %v5570
        %6461 = vmatprep.subr.bf16.mxu0 %v5579
        %6462 = vmatpush1.bf16.msra.mxu0 %v5578
        %6463 = vmatprep.subr.bf16.mxu0 %v5587
        %6464 = vmatpush1.bf16.msra.mxu0 %v5586
        %6465 = vmatprep.subr.bf16.mxu0 %v5595
        %6466 = vmatpush1.bf16.msra.mxu0 %v5594
        %6467 = vmatprep.subr.bf16.mxu0 %v5603
        %6468 = vmatpush1.bf16.msra.mxu0 %v5602
        %6469 = vmatprep.subr.bf16.mxu0 %v5611
        %6470 = vmatpush1.bf16.msra.mxu0 %v5610
        %6471 = vmatprep.subr.bf16.mxu0 %v5619
        %6472 = vmatpush1.bf16.msra.mxu0 %v5618
        %6473 = vmatprep.subr.bf16.mxu0 %v5627
        %6474 = vmatpush1.bf16.msra.mxu0 %v5626
        %6475 = vmatprep.subr.bf16.mxu0 %v5635
        %6476 = vmatpush1.bf16.msra.mxu0 %v5634
        %6477 = vmatprep.subr.bf16.mxu0 %v5643
        %6478 = vmatpush1.bf16.msra.mxu0 %v5642
        %6479 = vmatprep.mubr.bf16.mxu0 %v3045
        %6480 = vmatmul.mubr.bf16.gmra.mrb[0].mxu0 %v3044
        %v6481 = vpop.f32.mrb[0].mxu0
        %v6482 = vadd.f32 %v6441, %v6481
        %v6483 = vpop.f32.mrb[0].mxu0
        %v6484 = vadd.f32 %v6443, %v6483
        %v6485 = vpop.f32.mrb[0].mxu0
        %v6486 = vpop.f32.mrb[0].mxu0
        %6487 = vdwg.mxu0
        %6488 = vmatprep.subr.bf16.mxu0 %v5141
        %6489 = vmatpush1.bf16.msra.mxu0 %v5140
        %6490 = vmatprep.subr.bf16.mxu0 %v5149
        %6491 = vmatpush1.bf16.msra.mxu0 %v5148
        %6492 = vmatprep.subr.bf16.mxu0 %v5157
        %6493 = vmatpush1.bf16.msra.mxu0 %v5156
        %6494 = vmatprep.subr.bf16.mxu0 %v5165
        %6495 = vmatpush1.bf16.msra.mxu0 %v5164
        %6496 = vmatprep.subr.bf16.mxu0 %v5173
        %6497 = vmatpush1.bf16.msra.mxu0 %v5172
        %6498 = vmatprep.subr.bf16.mxu0 %v5181
        %6499 = vmatpush1.bf16.msra.mxu0 %v5180
        %6500 = vmatprep.subr.bf16.mxu0 %v5189
        %6501 = vmatpush1.bf16.msra.mxu0 %v5188
        %6502 = vmatprep.subr.bf16.mxu0 %v5197
        %6503 = vmatpush1.bf16.msra.mxu0 %v5196
        %6504 = vmatprep.subr.bf16.mxu0 %v5205
        %6505 = vmatpush1.bf16.msra.mxu0 %v5204
        %6506 = vmatprep.subr.bf16.mxu0 %v5213
        %6507 = vmatpush1.bf16.msra.mxu0 %v5212
        %6508 = vmatprep.subr.bf16.mxu0 %v5221
        %6509 = vmatpush1.bf16.msra.mxu0 %v5220
        %6510 = vmatprep.subr.bf16.mxu0 %v5229
        %6511 = vmatpush1.bf16.msra.mxu0 %v5228
        %6512 = vmatprep.subr.bf16.mxu0 %v5237
        %6513 = vmatpush1.bf16.msra.mxu0 %v5236
        %6514 = vmatprep.subr.bf16.mxu0 %v5245
        %6515 = vmatpush1.bf16.msra.mxu0 %v5244
        %6516 = vmatprep.subr.bf16.mxu0 %v5253
        %6517 = vmatpush1.bf16.msra.mxu0 %v5252
        %6518 = vmatprep.subr.bf16.mxu0 %v5261
        %6519 = vmatpush1.bf16.msra.mxu0 %v5260
        %6520 = vmatprep.mubr.bf16.mxu0 %v3039
        %6521 = vmatmul.mubr.bf16.gmra.mrb[0].mxu0 %v3038
        %v6522 = vpop.f32.mrb[0].mxu0
        %v6523 = vadd.f32 %v3579, %v6522
        %v6524 = vpop.f32.mrb[0].mxu0
        %v6525 = vadd.f32 %v3583, %v6524
        %v6526 = vpop.f32.mrb[0].mxu0
        %v6527 = vpop.f32.mrb[0].mxu0
        %6528 = vdwg.mxu0
        %6529 = vmatprep.subr.bf16.mxu0 %v5269
        %6530 = vmatpush1.bf16.msra.mxu0 %v5268
        %6531 = vmatprep.subr.bf16.mxu0 %v5277
        %6532 = vmatpush1.bf16.msra.mxu0 %v5276
        %6533 = vmatprep.subr.bf16.mxu0 %v5285
        %6534 = vmatpush1.bf16.msra.mxu0 %v5284
        %6535 = vmatprep.subr.bf16.mxu0 %v5293
        %6536 = vmatpush1.bf16.msra.mxu0 %v5292
        %6537 = vmatprep.subr.bf16.mxu0 %v5301
        %6538 = vmatpush1.bf16.msra.mxu0 %v5300
        %6539 = vmatprep.subr.bf16.mxu0 %v5309
        %6540 = vmatpush1.bf16.msra.mxu0 %v5308
        %6541 = vmatprep.subr.bf16.mxu0 %v5317
        %6542 = vmatpush1.bf16.msra.mxu0 %v5316
        %6543 = vmatprep.subr.bf16.mxu0 %v5325
        %6544 = vmatpush1.bf16.msra.mxu0 %v5324
        %6545 = vmatprep.subr.bf16.mxu0 %v5333
        %6546 = vmatpush1.bf16.msra.mxu0 %v5332
        %6547 = vmatprep.subr.bf16.mxu0 %v5341
        %6548 = vmatpush1.bf16.msra.mxu0 %v5340
        %6549 = vmatprep.subr.bf16.mxu0 %v5349
        %6550 = vmatpush1.bf16.msra.mxu0 %v5348
        %6551 = vmatprep.subr.bf16.mxu0 %v5357
        %6552 = vmatpush1.bf16.msra.mxu0 %v5356
        %6553 = vmatprep.subr.bf16.mxu0 %v5365
        %6554 = vmatpush1.bf16.msra.mxu0 %v5364
        %6555 = vmatprep.subr.bf16.mxu0 %v5373
        %6556 = vmatpush1.bf16.msra.mxu0 %v5372
        %6557 = vmatprep.subr.bf16.mxu0 %v5381
        %6558 = vmatpush1.bf16.msra.mxu0 %v5380
        %6559 = vmatprep.subr.bf16.mxu0 %v5389
        %6560 = vmatpush1.bf16.msra.mxu0 %v5388
        %6561 = vmatprep.mubr.bf16.mxu0 %v3041
        %6562 = vmatmul.mubr.bf16.gmra.mrb[0].mxu0 %v3040
        %v6563 = vpop.f32.mrb[0].mxu0
        %v6564 = vadd.f32 %v6523, %v6563
        %v6565 = vpop.f32.mrb[0].mxu0
        %v6566 = vadd.f32 %v6525, %v6565
        %v6567 = vpop.f32.mrb[0].mxu0
        %v6568 = vpop.f32.mrb[0].mxu0
        %6569 = vdwg.mxu0
        %6570 = vmatprep.subr.bf16.mxu0 %v5397
        %6571 = vmatpush1.bf16.msra.mxu0 %v5396
        %6572 = vmatprep.subr.bf16.mxu0 %v5405
        %6573 = vmatpush1.bf16.msra.mxu0 %v5404
        %6574 = vmatprep.subr.bf16.mxu0 %v5413
        %6575 = vmatpush1.bf16.msra.mxu0 %v5412
        %6576 = vmatprep.subr.bf16.mxu0 %v5421
        %6577 = vmatpush1.bf16.msra.mxu0 %v5420
        %6578 = vmatprep.subr.bf16.mxu0 %v5429
        %6579 = vmatpush1.bf16.msra.mxu0 %v5428
        %6580 = vmatprep.subr.bf16.mxu0 %v5437
        %6581 = vmatpush1.bf16.msra.mxu0 %v5436
        %6582 = vmatprep.subr.bf16.mxu0 %v5445
        %6583 = vmatpush1.bf16.msra.mxu0 %v5444
        %6584 = vmatprep.subr.bf16.mxu0 %v5453
        %6585 = vmatpush1.bf16.msra.mxu0 %v5452
        %6586 = vmatprep.subr.bf16.mxu0 %v5461
        %6587 = vmatpush1.bf16.msra.mxu0 %v5460
        %6588 = vmatprep.subr.bf16.mxu0 %v5469
        %6589 = vmatpush1.bf16.msra.mxu0 %v5468
        %6590 = vmatprep.subr.bf16.mxu0 %v5477
        %6591 = vmatpush1.bf16.msra.mxu0 %v5476
        %6592 = vmatprep.subr.bf16.mxu0 %v5485
        %6593 = vmatpush1.bf16.msra.mxu0 %v5484
        %6594 = vmatprep.subr.bf16.mxu0 %v5493
        %6595 = vmatpush1.bf16.msra.mxu0 %v5492
        %6596 = vmatprep.subr.bf16.mxu0 %v5501
        %6597 = vmatpush1.bf16.msra.mxu0 %v5500
        %6598 = vmatprep.subr.bf16.mxu0 %v5509
        %6599 = vmatpush1.bf16.msra.mxu0 %v5508
        %6600 = vmatprep.subr.bf16.mxu0 %v5517
        %6601 = vmatpush1.bf16.msra.mxu0 %v5516
        %6602 = vmatprep.mubr.bf16.mxu0 %v3043
        %6603 = vmatmul.mubr.bf16.gmra.mrb[0].mxu0 %v3042
        %v6604 = vpop.f32.mrb[0].mxu0
        %v6605 = vadd.f32 %v6564, %v6604
        %v6606 = vpop.f32.mrb[0].mxu0
        %v6607 = vadd.f32 %v6566, %v6606
        %v6608 = vpop.f32.mrb[0].mxu0
        %v6609 = vpop.f32.mrb[0].mxu0
        %6610 = vdwg.mxu0
        %6611 = vmatprep.subr.bf16.mxu0 %v5525
        %6612 = vmatpush1.bf16.msra.mxu0 %v5524
        %6613 = vmatprep.subr.bf16.mxu0 %v5533
        %6614 = vmatpush1.bf16.msra.mxu0 %v5532
        %6615 = vmatprep.subr.bf16.mxu0 %v5541
        %6616 = vmatpush1.bf16.msra.mxu0 %v5540
        %6617 = vmatprep.subr.bf16.mxu0 %v5549
        %6618 = vmatpush1.bf16.msra.mxu0 %v5548
        %6619 = vmatprep.subr.bf16.mxu0 %v5557
        %6620 = vmatpush1.bf16.msra.mxu0 %v5556
        %6621 = vmatprep.subr.bf16.mxu0 %v5565
        %6622 = vmatpush1.bf16.msra.mxu0 %v5564
        %6623 = vmatprep.subr.bf16.mxu0 %v5573
        %6624 = vmatpush1.bf16.msra.mxu0 %v5572
        %6625 = vmatprep.subr.bf16.mxu0 %v5581
        %6626 = vmatpush1.bf16.msra.mxu0 %v5580
        %6627 = vmatprep.subr.bf16.mxu0 %v5589
        %6628 = vmatpush1.bf16.msra.mxu0 %v5588
        %6629 = vmatprep.subr.bf16.mxu0 %v5597
        %6630 = vmatpush1.bf16.msra.mxu0 %v5596
        %6631 = vmatprep.subr.bf16.mxu0 %v5605
        %6632 = vmatpush1.bf16.msra.mxu0 %v5604
        %6633 = vmatprep.subr.bf16.mxu0 %v5613
        %6634 = vmatpush1.bf16.msra.mxu0 %v5612
        %6635 = vmatprep.subr.bf16.mxu0 %v5621
        %6636 = vmatpush1.bf16.msra.mxu0 %v5620
        %6637 = vmatprep.subr.bf16.mxu0 %v5629
        %6638 = vmatpush1.bf16.msra.mxu0 %v5628
        %6639 = vmatprep.subr.bf16.mxu0 %v5637
        %6640 = vmatpush1.bf16.msra.mxu0 %v5636
        %6641 = vmatprep.subr.bf16.mxu0 %v5645
        %6642 = vmatpush1.bf16.msra.mxu0 %v5644
        %6643 = vmatprep.mubr.bf16.mxu0 %v3045
        %6644 = vmatmul.mubr.bf16.gmra.mrb[0].mxu0 %v3044
        %v6645 = vpop.f32.mrb[0].mxu0
        %v6646 = vadd.f32 %v6605, %v6645
        %v6647 = vpop.f32.mrb[0].mxu0
        %v6648 = vadd.f32 %v6607, %v6647
        %v6649 = vpop.f32.mrb[0].mxu0
        %v6650 = vpop.f32.mrb[0].mxu0
        %6651 = vdwg.mxu0
        %6652 = vmatprep.subr.bf16.mxu0 %v5143
        %6653 = vmatpush1.bf16.msra.mxu0 %v5142
        %6654 = vmatprep.subr.bf16.mxu0 %v5151
        %6655 = vmatpush1.bf16.msra.mxu0 %v5150
        %6656 = vmatprep.subr.bf16.mxu0 %v5159
        %6657 = vmatpush1.bf16.msra.mxu0 %v5158
        %6658 = vmatprep.subr.bf16.mxu0 %v5167
        %6659 = vmatpush1.bf16.msra.mxu0 %v5166
        %6660 = vmatprep.subr.bf16.mxu0 %v5175
        %6661 = vmatpush1.bf16.msra.mxu0 %v5174
        %6662 = vmatprep.subr.bf16.mxu0 %v5183
        %6663 = vmatpush1.bf16.msra.mxu0 %v5182
        %6664 = vmatprep.subr.bf16.mxu0 %v5191
        %6665 = vmatpush1.bf16.msra.mxu0 %v5190
        %6666 = vmatprep.subr.bf16.mxu0 %v5199
        %6667 = vmatpush1.bf16.msra.mxu0 %v5198
        %6668 = vmatprep.subr.bf16.mxu0 %v5207
        %6669 = vmatpush1.bf16.msra.mxu0 %v5206
        %6670 = vmatprep.subr.bf16.mxu0 %v5215
        %6671 = vmatpush1.bf16.msra.mxu0 %v5214
        %6672 = vmatprep.subr.bf16.mxu0 %v5223
        %6673 = vmatpush1.bf16.msra.mxu0 %v5222
        %6674 = vmatprep.subr.bf16.mxu0 %v5231
        %6675 = vmatpush1.bf16.msra.mxu0 %v5230
        %6676 = vmatprep.subr.bf16.mxu0 %v5239
        %6677 = vmatpush1.bf16.msra.mxu0 %v5238
        %6678 = vmatprep.subr.bf16.mxu0 %v5247
        %6679 = vmatpush1.bf16.msra.mxu0 %v5246
        %6680 = vmatprep.subr.bf16.mxu0 %v5255
        %6681 = vmatpush1.bf16.msra.mxu0 %v5254
        %6682 = vmatprep.subr.bf16.mxu0 %v5263
        %6683 = vmatpush1.bf16.msra.mxu0 %v5262
        %6684 = vmatprep.mubr.bf16.mxu0 %v3039
        %6685 = vmatmul.mubr.bf16.gmra.mrb[0].mxu0 %v3038
        %v6686 = vpop.f32.mrb[0].mxu0
        %v6687 = vadd.f32 %v3587, %v6686
        %v6688 = vpop.f32.mrb[0].mxu0
        %v6689 = vadd.f32 %v3591, %v6688
        %v6690 = vpop.f32.mrb[0].mxu0
        %v6691 = vpop.f32.mrb[0].mxu0
        %6692 = vdwg.mxu0
        %6693 = vmatprep.subr.bf16.mxu0 %v5271
        %6694 = vmatpush1.bf16.msra.mxu0 %v5270
        %6695 = vmatprep.subr.bf16.mxu0 %v5279
        %6696 = vmatpush1.bf16.msra.mxu0 %v5278
        %6697 = vmatprep.subr.bf16.mxu0 %v5287
        %6698 = vmatpush1.bf16.msra.mxu0 %v5286
        %6699 = vmatprep.subr.bf16.mxu0 %v5295
        %6700 = vmatpush1.bf16.msra.mxu0 %v5294
        %6701 = vmatprep.subr.bf16.mxu0 %v5303
        %6702 = vmatpush1.bf16.msra.mxu0 %v5302
        %6703 = vmatprep.subr.bf16.mxu0 %v5311
        %6704 = vmatpush1.bf16.msra.mxu0 %v5310
        %6705 = vmatprep.subr.bf16.mxu0 %v5319
        %6706 = vmatpush1.bf16.msra.mxu0 %v5318
        %6707 = vmatprep.subr.bf16.mxu0 %v5327
        %6708 = vmatpush1.bf16.msra.mxu0 %v5326
        %6709 = vmatprep.subr.bf16.mxu0 %v5335
        %6710 = vmatpush1.bf16.msra.mxu0 %v5334
        %6711 = vmatprep.subr.bf16.mxu0 %v5343
        %6712 = vmatpush1.bf16.msra.mxu0 %v5342
        %6713 = vmatprep.subr.bf16.mxu0 %v5351
        %6714 = vmatpush1.bf16.msra.mxu0 %v5350
        %6715 = vmatprep.subr.bf16.mxu0 %v5359
        %6716 = vmatpush1.bf16.msra.mxu0 %v5358
        %6717 = vmatprep.subr.bf16.mxu0 %v5367
        %6718 = vmatpush1.bf16.msra.mxu0 %v5366
        %6719 = vmatprep.subr.bf16.mxu0 %v5375
        %6720 = vmatpush1.bf16.msra.mxu0 %v5374
        %6721 = vmatprep.subr.bf16.mxu0 %v5383
        %6722 = vmatpush1.bf16.msra.mxu0 %v5382
        %6723 = vmatprep.subr.bf16.mxu0 %v5391
        %6724 = vmatpush1.bf16.msra.mxu0 %v5390
        %6725 = vmatprep.mubr.bf16.mxu0 %v3041
        %6726 = vmatmul.mubr.bf16.gmra.mrb[0].mxu0 %v3040
        %v6727 = vpop.f32.mrb[0].mxu0
        %v6728 = vadd.f32 %v6687, %v6727
        %v6729 = vpop.f32.mrb[0].mxu0
        %v6730 = vadd.f32 %v6689, %v6729
        %v6731 = vpop.f32.mrb[0].mxu0
        %v6732 = vpop.f32.mrb[0].mxu0
        %6733 = vdwg.mxu0
        %6734 = vmatprep.subr.bf16.mxu0 %v5399
        %6735 = vmatpush1.bf16.msra.mxu0 %v5398
        %6736 = vmatprep.subr.bf16.mxu0 %v5407
        %6737 = vmatpush1.bf16.msra.mxu0 %v5406
        %6738 = vmatprep.subr.bf16.mxu0 %v5415
        %6739 = vmatpush1.bf16.msra.mxu0 %v5414
        %6740 = vmatprep.subr.bf16.mxu0 %v5423
        %6741 = vmatpush1.bf16.msra.mxu0 %v5422
        %6742 = vmatprep.subr.bf16.mxu0 %v5431
        %6743 = vmatpush1.bf16.msra.mxu0 %v5430
        %6744 = vmatprep.subr.bf16.mxu0 %v5439
        %6745 = vmatpush1.bf16.msra.mxu0 %v5438
        %6746 = vmatprep.subr.bf16.mxu0 %v5447
        %6747 = vmatpush1.bf16.msra.mxu0 %v5446
        %6748 = vmatprep.subr.bf16.mxu0 %v5455
        %6749 = vmatpush1.bf16.msra.mxu0 %v5454
        %6750 = vmatprep.subr.bf16.mxu0 %v5463
        %6751 = vmatpush1.bf16.msra.mxu0 %v5462
        %6752 = vmatprep.subr.bf16.mxu0 %v5471
        %6753 = vmatpush1.bf16.msra.mxu0 %v5470
        %6754 = vmatprep.subr.bf16.mxu0 %v5479
        %6755 = vmatpush1.bf16.msra.mxu0 %v5478
        %6756 = vmatprep.subr.bf16.mxu0 %v5487
        %6757 = vmatpush1.bf16.msra.mxu0 %v5486
        %6758 = vmatprep.subr.bf16.mxu0 %v5495
        %6759 = vmatpush1.bf16.msra.mxu0 %v5494
        %6760 = vmatprep.subr.bf16.mxu0 %v5503
        %6761 = vmatpush1.bf16.msra.mxu0 %v5502
        %6762 = vmatprep.subr.bf16.mxu0 %v5511
        %6763 = vmatpush1.bf16.msra.mxu0 %v5510
        %6764 = vmatprep.subr.bf16.mxu0 %v5519
        %6765 = vmatpush1.bf16.msra.mxu0 %v5518
        %6766 = vmatprep.mubr.bf16.mxu0 %v3043
        %6767 = vmatmul.mubr.bf16.gmra.mrb[0].mxu0 %v3042
        %v6768 = vpop.f32.mrb[0].mxu0
        %v6769 = vadd.f32 %v6728, %v6768
        %v6770 = vpop.f32.mrb[0].mxu0
        %v6771 = vadd.f32 %v6730, %v6770
        %v6772 = vpop.f32.mrb[0].mxu0
        %v6773 = vpop.f32.mrb[0].mxu0
        %6774 = vdwg.mxu0
        %6775 = vmatprep.subr.bf16.mxu0 %v5527
        %6776 = vmatpush1.bf16.msra.mxu0 %v5526
        %6777 = vmatprep.subr.bf16.mxu0 %v5535
        %6778 = vmatpush1.bf16.msra.mxu0 %v5534
        %6779 = vmatprep.subr.bf16.mxu0 %v5543
        %6780 = vmatpush1.bf16.msra.mxu0 %v5542
        %6781 = vmatprep.subr.bf16.mxu0 %v5551
        %6782 = vmatpush1.bf16.msra.mxu0 %v5550
        %6783 = vmatprep.subr.bf16.mxu0 %v5559
        %6784 = vmatpush1.bf16.msra.mxu0 %v5558
        %6785 = vmatprep.subr.bf16.mxu0 %v5567
        %6786 = vmatpush1.bf16.msra.mxu0 %v5566
        %6787 = vmatprep.subr.bf16.mxu0 %v5575
        %6788 = vmatpush1.bf16.msra.mxu0 %v5574
        %6789 = vmatprep.subr.bf16.mxu0 %v5583
        %6790 = vmatpush1.bf16.msra.mxu0 %v5582
        %6791 = vmatprep.subr.bf16.mxu0 %v5591
        %6792 = vmatpush1.bf16.msra.mxu0 %v5590
        %6793 = vmatprep.subr.bf16.mxu0 %v5599
        %6794 = vmatpush1.bf16.msra.mxu0 %v5598
        %6795 = vmatprep.subr.bf16.mxu0 %v5607
        %6796 = vmatpush1.bf16.msra.mxu0 %v5606
        %6797 = vmatprep.subr.bf16.mxu0 %v5615
        %6798 = vmatpush1.bf16.msra.mxu0 %v5614
        %6799 = vmatprep.subr.bf16.mxu0 %v5623
        %6800 = vmatpush1.bf16.msra.mxu0 %v5622
        %6801 = vmatprep.subr.bf16.mxu0 %v5631
        %6802 = vmatpush1.bf16.msra.mxu0 %v5630
        %6803 = vmatprep.subr.bf16.mxu0 %v5639
        %6804 = vmatpush1.bf16.msra.mxu0 %v5638
        %6805 = vmatprep.subr.bf16.mxu0 %v5647
        %6806 = vmatpush1.bf16.msra.mxu0 %v5646
        %6807 = vmatprep.mubr.bf16.mxu0 %v3045
        %6808 = vmatmul.mubr.bf16.gmra.mrb[0].mxu0 %v3044
        %v6809 = vpop.f32.mrb[0].mxu0
        %v6810 = vadd.f32 %v6769, %v6809
        %v6811 = vpop.f32.mrb[0].mxu0
        %v6812 = vadd.f32 %v6771, %v6811
        %v6813 = vpop.f32.mrb[0].mxu0
        %v6814 = vpop.f32.mrb[0].mxu0
        %6815 = vdwg.mxu0
        %vm6816 = vcmask 523264
        %6817 = vst.msk [vmem:[%s472] sm:$0xff] %vm6816, %v6318
        %6819 = vrot.lane.b32.xlu0 %v6318, 64
        %v6820 = vpop.permute.xlu0 %6819
        %s6822 = scalar_lea.vmem %s472, 8 [#allocation17]
        %6823 = vst.msk [vmem:[%s6822] sm:$0xff] %vm6816, %v6820
        %s6824 = scalar_lea.vmem %s472, 16 [#allocation17]
        %6825 = vst.msk [vmem:[%s6824] sm:$0xff] %vm6816, %v6320
        %6827 = vrot.lane.b32.xlu0 %v6320, 64
        %v6828 = vpop.permute.xlu0 %6827
        %s6830 = scalar_lea.vmem %s472, 24 [#allocation17]
        %6831 = vst.msk [vmem:[%s6830] sm:$0xff] %vm6816, %v6828
        %s6832 = scalar_lea.vmem %s472, 32 [#allocation17]
        %6833 = vst.msk [vmem:[%s6832] sm:$0xff] %vm6816, %v6482
        %6835 = vrot.lane.b32.xlu0 %v6482, 64
        %v6836 = vpop.permute.xlu0 %6835
        %s6838 = scalar_lea.vmem %s472, 40 [#allocation17]
        %6839 = vst.msk [vmem:[%s6838] sm:$0xff] %vm6816, %v6836
        %s6840 = scalar_lea.vmem %s472, 48 [#allocation17]
        %6841 = vst.msk [vmem:[%s6840] sm:$0xff] %vm6816, %v6484
        %6843 = vrot.lane.b32.xlu0 %v6484, 64
        %v6844 = vpop.permute.xlu0 %6843
        %s6846 = scalar_lea.vmem %s472, 56 [#allocation17]
        %6847 = vst.msk [vmem:[%s6846] sm:$0xff] %vm6816, %v6844
        %s6848 = scalar_lea.vmem %s472, 64 [#allocation17]
        %6849 = vst.msk [vmem:[%s6848] sm:$0xff] %vm6816, %v6646
        %6851 = vrot.lane.b32.xlu0 %v6646, 64
        %v6852 = vpop.permute.xlu0 %6851
        %s6854 = scalar_lea.vmem %s472, 72 [#allocation17]
        %6855 = vst.msk [vmem:[%s6854] sm:$0xff] %vm6816, %v6852
        %s6856 = scalar_lea.vmem %s472, 80 [#allocation17]
        %6857 = vst.msk [vmem:[%s6856] sm:$0xff] %vm6816, %v6648
        %6859 = vrot.lane.b32.xlu0 %v6648, 64
        %v6860 = vpop.permute.xlu0 %6859
        %s6862 = scalar_lea.vmem %s472, 88 [#allocation17]
        %6863 = vst.msk [vmem:[%s6862] sm:$0xff] %vm6816, %v6860
        %s6864 = scalar_lea.vmem %s472, 96 [#allocation17]
        %6865 = vst.msk [vmem:[%s6864] sm:$0xff] %vm6816, %v6810
        %6867 = vrot.lane.b32.xlu0 %v6810, 64
        %v6868 = vpop.permute.xlu0 %6867
        %s6870 = scalar_lea.vmem %s472, 104 [#allocation17]
        %6871 = vst.msk [vmem:[%s6870] sm:$0xff] %vm6816, %v6868
        %s6872 = scalar_lea.vmem %s472, 112 [#allocation17]
        %6873 = vst.msk [vmem:[%s6872] sm:$0xff] %vm6816, %v6812
        %6875 = vrot.lane.b32.xlu0 %v6812, 64
        %v6876 = vpop.permute.xlu0 %6875
        %s6878 = scalar_lea.vmem %s472, 120 [#allocation17]
        %6879 = vst.msk [vmem:[%s6878] sm:$0xff] %vm6816, %v6876
        %s6880 = sand.u32 %s248, 1
        %s6881 = scalar_lea.sflag [#allocation4], %s6880
        %s6882 = sand.u32 %s248, 1
        %s6883 = smul.addr %s6882, 128
        %s6884 = scalar_lea.vmem [#allocation17], %s6883
        // Predicated region
        $region93: #{tpu_custom_call.1} parent=55 // pred_check
          %p6885 = pneg %p258
        $region94: #{tpu_custom_call.1} parent=55 // pred_check_branch
          %6887 = sbr.rel (%p6885) target = $region96
        $region95: #{tpu_custom_call.1} parent=55 // pred_region
          %s6889 = ssub.s32 2048, 2048
          %6890 = vsyncadd %s6881, %s6889
          %s6891 = smul.addr %s34, 16
          %s6892 = sadd.s32 %s35, %s6891
          %s6893 = smul.addr %s6892, 128
          %s6894 = scalar_lea.hbm %s9, %s6893
          %s6895 = sshll.u32 %s6884, 4
          %s6896 = int_to_ptr.vmem [resolvable:$true] %s6895
          %6901 = dma.vmem_to_hbm [thread:$0]  %s6896, 2048, %s6894, %s6881, 128, 128, 8
        $region96: #{tpu_custom_call.1} parent=55 // pred_fallthru
          _
      $region56: #{tpu_custom_call.1} parent=5 // pred_fallthru
        _
      %p6902 = scmp.le.s32.totalorder 2, %s25
      // Predicated region
      $region97: #{tpu_custom_call.1} parent=5 // pred_check
        %p6903 = pneg %p6902
      $region98: #{tpu_custom_call.1} parent=5 // pred_check_branch
        %6905 = sbr.rel (%p6903) target = $region100
      $region99: #{tpu_custom_call.1} parent=5 // pred_region
        %s6906 = ssub.s32 %s25, 2
        // Predicated region
        $region101: #{tpu_custom_call.1} parent=99 // pred_check
          %p6907 = pneg %p264
        $region102: #{tpu_custom_call.1} parent=99 // pred_check_branch
          %6909 = sbr.rel (%p6907) target = $region104
        $region103: #{tpu_custom_call.1} parent=99 // pred_region
          %s6910 = sand.u32 %s249, 1
          %s6911 = scalar_lea.sflag [#allocation4], %s6910
          %s6912 = sand.u32 %s249, 1
          %s6913 = smul.addr %s6912, 128
          %s6914 = scalar_lea.vmem [#allocation17], %s6913
          %6915 = dma.done %s6911, 2048
        $region104: #{tpu_custom_call.1} parent=99 // pred_fallthru
          _
      $region100: #{tpu_custom_call.1} parent=5 // pred_fallthru
        _
    $region6: #{tpu_custom_call.1} parent=1 // loop_footer
      %s29 = sadd.s32 1, %s25
    $region7: #{tpu_custom_call.1} parent=1 // loop_footer_branch
      %24 = sbr.rel target = $region3
    $region8: #{tpu_custom_call.1} parent=1 // loop_exit
      _
    %6916 = vsyncpa [#allocation3], 1
    %s6917 = scalar_lea.sflag [#allocation3], 1
    %6918 = vsyncpa %s6917, 1
    %6919 = vsyncpa [#allocation6], 1
    %6920 = vsyncpa [#allocation9], 1
    %6921 = vsyncpa [#allocation12], 1
    %6922 = vsyncpa [#allocation15], 1
    %6923 = vsyncpa [#allocation4], 1
    %s6924 = scalar_lea.sflag [#allocation4], 1
    %6925 = vsyncpa %s6924, 1

</llo_original>
